<compile_context>
chip_gen: v6e
topology: v6e:2x2x1
jax: 0.10.0
libtpu: 0.0.40
codegen_flags: <defaults>
</compile_context>

<pallas_src>
import jax
import jax.numpy as jnp
from jax.experimental import pallas as pl
from jax.experimental.pallas import tpu as pltpu


def basic_block_kernel(xp_ref, w1_ref, w2_ref, bias_ref, o_ref, mid_ref):
  """One batch element per grid step (NHWC, channels padded to Cp = 128k).

  xp_ref  : (H+2, W+2, Cp) bf16  zero-padded input tile
  w1_ref  : (9*Cp, Cp)     bf16  conv1 weights (tap-major rows), BN1 scale folded
  w2_ref  : (9*Cp, Cp)     bf16  conv2 weights (tap-major rows), BN2 scale folded
  bias_ref: (2, Cp)        f32   rows = [bn1 bias, bn2 bias]
  o_ref   : (H, W, Cp)     f32   output tile (lane-dense last dim)
  mid_ref : (H+2, W+2, Cp) bf16  scratch for the padded relu(bn1(conv1)) output
  """
  H, W, C = o_ref.shape
  HW = H * W
  K = 9 * C

  def im2col(src_ref):
    # Tap order (dh-major, then dw) matches the (3,3,Cp,Cp)->(9*Cp,Cp) weight
    # reshape in the wrapper.  dh slices are outer-dim offsets (cheap); dw
    # slices are small static sublane shifts.
    # TODO(synk): the dw=1/2 taps are sublane-misaligned; a pltpu.roll-based
    # tap derivation could move that shuffle onto the (idle) XLU slot.
    taps = [src_ref[dh:dh + H, dw:dw + W, :]
            for dh in range(3) for dw in range(3)]
    return jnp.concatenate(taps, axis=-1).reshape(HW, K)

  # ---- conv1 (single MXU matmul, f32 acc) + bn1 bias + relu -----------------
  acc1 = jnp.dot(im2col(xp_ref), w1_ref[...],
                 preferred_element_type=jnp.float32)            # (HW, C) f32
  out1 = jnp.maximum(acc1 + bias_ref[0:1, :], 0.0)

  # ---- padded intermediate (bf16): zero only the 1-px border, write interior
  zrow = jnp.zeros((1, W + 2, C), jnp.bfloat16)
  zcol = jnp.zeros((H, 1, C), jnp.bfloat16)
  mid_ref[0:1, :, :] = zrow
  mid_ref[H + 1:H + 2, :, :] = zrow
  mid_ref[1:H + 1, 0:1, :] = zcol
  mid_ref[1:H + 1, W + 1:W + 2, :] = zcol
  mid_ref[1:H + 1, 1:W + 1, :] = out1.reshape(H, W, C).astype(jnp.bfloat16)

  # ---- conv2 (single MXU matmul, f32 acc) + bn2 bias -------------------------
  acc2 = jnp.dot(im2col(mid_ref), w2_ref[...],
                 preferred_element_type=jnp.float32)            # (HW, C) f32
  out2 = (acc2 + bias_ref[1:2, :]).reshape(H, W, C)

  # ---- residual add + relu: identity re-read lazily from VMEM (no long-lived
  # f32 copy held live across both convs) --------------------------------------
  identity = xp_ref[1:H + 1, 1:W + 1, :].astype(jnp.float32)
  o_ref[...] = jnp.maximum(out2 + identity, 0.0)


@jax.jit
def basic_block(x_nchw, w1_hwio, w2_hwio, s1, b1, s2, b2):
  """x_nchw: (N, C, H, W) float32. Returns (N, C, H, W) float32."""
  N, Cin, H, W = x_nchw.shape
  Cout = w1_hwio.shape[-1]
  if Cin != Cout:
    raise ValueError("BasicBlock with stride=1 / downsample=None needs Cin == Cout")

  # Lane-dense channel padding (multiple of 128).
  Cp = max(128, ((Cout + 127) // 128) * 128)

  # NCHW -> NHWC, zero-pad H/W by 1 and channels to Cp; stream as bf16
  # (halves HBM input traffic; residual becomes bf16-quantized — inference OK).
  x_nhwc = jnp.transpose(x_nchw, (0, 2, 3, 1))
  xp = jnp.pad(x_nhwc, ((0, 0), (1, 1), (1, 1), (0, Cp - Cin))).astype(jnp.bfloat16)

  # Fold BN scale into weights, pad channels, flatten the 3x3 taps into the
  # contraction dim: (3, 3, Cp, Cp) -> (9*Cp, Cp); bf16 for the MXU.
  def prep_w(w_hwio, scale):
    w = w_hwio.astype(jnp.float32) * scale.astype(jnp.float32)[None, None, None, :]
    w = jnp.pad(w, ((0, 0), (0, 0), (0, Cp - Cin), (0, Cp - Cout)))
    return w.reshape(9 * Cp, Cp).astype(jnp.bfloat16)

  w1p = prep_w(w1_hwio, s1)
  w2p = prep_w(w2_hwio, s2)

  bias = jnp.stack([
      jnp.pad(b1.astype(jnp.float32), (0, Cp - Cout)),
      jnp.pad(b2.astype(jnp.float32), (0, Cp - Cout)),
  ])  # (2, Cp); padded channels get zero weights/bias -> stay exactly 0

  out_nhwc = pl.pallas_call(
      basic_block_kernel,
      out_shape=jax.ShapeDtypeStruct((N, H, W, Cp), jnp.float32),
      grid_spec=pltpu.PrefetchScalarGridSpec(
          num_scalar_prefetch=0,
          grid=(N,),
          in_specs=[
              pl.BlockSpec((None, H + 2, W + 2, Cp), lambda n: (n, 0, 0, 0)),
              # Grid-invariant index maps: weights/bias are not re-fetched
              # across grid steps.
              pl.BlockSpec((9 * Cp, Cp), lambda n: (0, 0)),
              pl.BlockSpec((9 * Cp, Cp), lambda n: (0, 0)),
              pl.BlockSpec((2, Cp), lambda n: (0, 0)),
          ],
          out_specs=pl.BlockSpec((None, H, W, Cp), lambda n: (n, 0, 0, 0)),
          scratch_shapes=[pltpu.VMEM((H + 2, W + 2, Cp), jnp.bfloat16)],
      ),
      compiler_params=pltpu.CompilerParams(
          dimension_semantics=("parallel",),
          # Modest explicit scoped-VMEM limit; size up for real ResNet channel
          # counts (v7x has 64 MiB physical VMEM per TensorCore).
          vmem_limit_bytes=32 * 1024 * 1024),
  )(xp, w1p, w2p, bias)

  # Strip channel padding, back to NCHW.
  return jnp.transpose(out_nhwc[..., :Cout], (0, 3, 1, 2))


# ----------------------------- reference (pure JAX, f32) ---------------------
def _conv3x3_ref(x_nhwc, w_hwio):
  return jax.lax.conv_general_dilated(
      x_nhwc, w_hwio, window_strides=(1, 1),
      padding=((1, 1), (1, 1)),
      dimension_numbers=("NHWC", "HWIO", "NHWC"))


def basic_block_ref(x_nchw, w1_hwio, w2_hwio, s1, b1, s2, b2):
  x = jnp.transpose(x_nchw, (0, 2, 3, 1))
  out = _conv3x3_ref(x, w1_hwio) * s1 + b1
  out = jnp.maximum(out, 0.0)
  out = _conv3x3_ref(out, w2_hwio) * s2 + b2
  out = jnp.maximum(out + x, 0.0)
  return jnp.transpose(out, (0, 3, 1, 2))


if __name__ == "__main__":
  # BasicBlock(inplanes=8, planes=8, stride=1, downsample=None)
  N, C, H, W = 2, 8, 16, 16
  key = jax.random.PRNGKey(0)
  kx, kw1, kw2, kg1, kb1, km1, kv1, kg2, kb2, km2, kv2 = jax.random.split(key, 11)

  x = jax.random.normal(kx, (N, C, H, W), jnp.float32)

  # Conv weights: PyTorch layout (out, in, kh, kw) -> HWIO for the kernel.
  w1_oihw = jax.random.normal(kw1, (C, C, 3, 3), jnp.float32) * 0.1
  w2_oihw = jax.random.normal(kw2, (C, C, 3, 3), jnp.float32) * 0.1
  w1_hwio = jnp.transpose(w1_oihw, (2, 3, 1, 0))
  w2_hwio = jnp.transpose(w2_oihw, (2, 3, 1, 0))

  # BatchNorm parameters (eval mode) folded to scale/bias.
  eps = 1e-5
  gamma1 = 1.0 + 0.1 * jax.random.normal(kg1, (C,), jnp.float32)
  beta1 = 0.1 * jax.random.normal(kb1, (C,), jnp.float32)
  mean1 = 0.1 * jax.random.normal(km1, (C,), jnp.float32)
  var1 = jax.random.uniform(kv1, (C,), jnp.float32, 0.5, 1.5)
  gamma2 = 1.0 + 0.1 * jax.random.normal(kg2, (C,), jnp.float32)
  beta2 = 0.1 * jax.random.normal(kb2, (C,), jnp.float32)
  mean2 = 0.1 * jax.random.normal(km2, (C,), jnp.float32)
  var2 = jax.random.uniform(kv2, (C,), jnp.float32, 0.5, 1.5)

  s1 = gamma1 / jnp.sqrt(var1 + eps)
  b1 = beta1 - mean1 * s1
  s2 = gamma2 / jnp.sqrt(var2 + eps)
  b2 = beta2 - mean2 * s2

  out = basic_block(x, w1_hwio, w2_hwio, s1, b1, s2, b2)
  out = jax.block_until_ready(out)

  ref = basic_block_ref(x, w1_hwio, w2_hwio, s1, b1, s2, b2)
  assert out.shape == (N, C, H, W)
  # bf16 matmul operands, bf16-streamed input (so the residual is also bf16-
  # quantized) with f32 accumulation: tolerance covers the quantization.
  max_err = float(jnp.max(jnp.abs(out - ref)))
  assert max_err < 7.5e-2, f"mismatch vs reference: max abs err = {max_err}"

  print("KERNEL_OK")
</pallas_src>

<mosaic_0001>
module attributes {stable_mosaic.version = 11 : i64} {
  func.func @basic_block_kernel(%arg0: i32, %arg1: memref<1x18x18x128xbf16, #tpu.memory_space<vmem>>, %arg2: memref<1152x128xbf16, #tpu.memory_space<vmem>>, %arg3: memref<1152x128xbf16, #tpu.memory_space<vmem>>, %arg4: memref<2x128xf32, #tpu.memory_space<vmem>>, %arg5: memref<1x16x16x128xf32, #tpu.memory_space<vmem>>, %arg6: memref<18x18x128xbf16, #tpu.memory_space<vmem>>) attributes {dimension_semantics = [#tpu.dimension_semantics<parallel>], iteration_bounds = array<i64: 2>, scalar_prefetch = 0 : i64, scratch_operands = 1 : i64, tpu.core_type = #tpu.core_type<tc>, window_params = [{transform_indices = @transform_0, window_bounds = array<i64: 1, 18, 18, 128>}, {pipeline_mode = #tpu.pipeline_mode<synchronous>, transform_indices = @transform_1, window_bounds = array<i64: 1152, 128>}, {pipeline_mode = #tpu.pipeline_mode<synchronous>, transform_indices = @transform_2, window_bounds = array<i64: 1152, 128>}, {pipeline_mode = #tpu.pipeline_mode<synchronous>, transform_indices = @transform_3, window_bounds = array<i64: 2, 128>}, {transform_indices = @transform_4, window_bounds = array<i64: 1, 16, 16, 128>}]} {
    %c0 = arith.constant 0 : index
    %c0_0 = arith.constant 0 : index
    %c0_1 = arith.constant 0 : index
    %c0_2 = arith.constant 0 : index
    %0 = vector.load %arg1[%c0, %c0_0, %c0_1, %c0_2] : memref<1x18x18x128xbf16, #tpu.memory_space<vmem>>, vector<1x16x16x128xbf16>
    %1 = vector.shape_cast %0 : vector<1x16x16x128xbf16> to vector<16x16x128xbf16>
    %c0_3 = arith.constant 0 : index
    %c0_4 = arith.constant 0 : index
    %c1 = arith.constant 1 : index
    %c0_5 = arith.constant 0 : index
    %2 = vector.load %arg1[%c0_3, %c0_4, %c1, %c0_5] : memref<1x18x18x128xbf16, #tpu.memory_space<vmem>>, vector<1x16x16x128xbf16>
    %3 = vector.shape_cast %2 : vector<1x16x16x128xbf16> to vector<16x16x128xbf16>
    %c0_6 = arith.constant 0 : index
    %c0_7 = arith.constant 0 : index
    %c2 = arith.constant 2 : index
    %c0_8 = arith.constant 0 : index
    %4 = vector.load %arg1[%c0_6, %c0_7, %c2, %c0_8] : memref<1x18x18x128xbf16, #tpu.memory_space<vmem>>, vector<1x16x16x128xbf16>
    %5 = vector.shape_cast %4 : vector<1x16x16x128xbf16> to vector<16x16x128xbf16>
    %c0_9 = arith.constant 0 : index
    %c1_10 = arith.constant 1 : index
    %c0_11 = arith.constant 0 : index
    %c0_12 = arith.constant 0 : index
    %6 = vector.load %arg1[%c0_9, %c1_10, %c0_11, %c0_12] : memref<1x18x18x128xbf16, #tpu.memory_space<vmem>>, vector<1x16x16x128xbf16>
    %7 = vector.shape_cast %6 : vector<1x16x16x128xbf16> to vector<16x16x128xbf16>
    %c0_13 = arith.constant 0 : index
    %c1_14 = arith.constant 1 : index
    %c1_15 = arith.constant 1 : index
    %c0_16 = arith.constant 0 : index
    %8 = vector.load %arg1[%c0_13, %c1_14, %c1_15, %c0_16] : memref<1x18x18x128xbf16, #tpu.memory_space<vmem>>, vector<1x16x16x128xbf16>
    %9 = vector.shape_cast %8 : vector<1x16x16x128xbf16> to vector<16x16x128xbf16>
    %c0_17 = arith.constant 0 : index
    %c1_18 = arith.constant 1 : index
    %c2_19 = arith.constant 2 : index
    %c0_20 = arith.constant 0 : index
    %10 = vector.load %arg1[%c0_17, %c1_18, %c2_19, %c0_20] : memref<1x18x18x128xbf16, #tpu.memory_space<vmem>>, vector<1x16x16x128xbf16>
    %11 = vector.shape_cast %10 : vector<1x16x16x128xbf16> to vector<16x16x128xbf16>
    %c0_21 = arith.constant 0 : index
    %c2_22 = arith.constant 2 : index
    %c0_23 = arith.constant 0 : index
    %c0_24 = arith.constant 0 : index
    %12 = vector.load %arg1[%c0_21, %c2_22, %c0_23, %c0_24] : memref<1x18x18x128xbf16, #tpu.memory_space<vmem>>, vector<1x16x16x128xbf16>
    %13 = vector.shape_cast %12 : vector<1x16x16x128xbf16> to vector<16x16x128xbf16>
    %c0_25 = arith.constant 0 : index
    %c2_26 = arith.constant 2 : index
    %c1_27 = arith.constant 1 : index
    %c0_28 = arith.constant 0 : index
    %14 = vector.load %arg1[%c0_25, %c2_26, %c1_27, %c0_28] : memref<1x18x18x128xbf16, #tpu.memory_space<vmem>>, vector<1x16x16x128xbf16>
    %15 = vector.shape_cast %14 : vector<1x16x16x128xbf16> to vector<16x16x128xbf16>
    %c0_29 = arith.constant 0 : index
    %c2_30 = arith.constant 2 : index
    %c2_31 = arith.constant 2 : index
    %c0_32 = arith.constant 0 : index
    %16 = vector.load %arg1[%c0_29, %c2_30, %c2_31, %c0_32] : memref<1x18x18x128xbf16, #tpu.memory_space<vmem>>, vector<1x16x16x128xbf16>
    %17 = vector.shape_cast %16 : vector<1x16x16x128xbf16> to vector<16x16x128xbf16>
    %18 = tpu.concatenate %1, %3, %5, %7, %9, %11, %13, %15, %17 in 2 : vector<16x16x128xbf16>, vector<16x16x128xbf16>, vector<16x16x128xbf16>, vector<16x16x128xbf16>, vector<16x16x128xbf16>, vector<16x16x128xbf16>, vector<16x16x128xbf16>, vector<16x16x128xbf16>, vector<16x16x128xbf16> -> vector<16x16x1152xbf16>
    %19 = vector.shape_cast %18 : vector<16x16x1152xbf16> to vector<256x1152xbf16>
    %c0_33 = arith.constant 0 : index
    %c0_34 = arith.constant 0 : index
    %20 = vector.load %arg2[%c0_33, %c0_34] : memref<1152x128xbf16, #tpu.memory_space<vmem>>, vector<1152x128xbf16>
    %cst = arith.constant dense<0.000000e+00> : vector<256x128xf32>
    %21 = tpu.matmul %19, %20, %cst {dimension_numbers = #tpu.dot_dimension_numbers<[1], [0], [0], [1], [0, 0, 1, 1], [], []>} : vector<256x1152xbf16>, vector<1152x128xbf16>, vector<256x128xf32> -> vector<256x128xf32>
    %c0_35 = arith.constant 0 : index
    %c0_36 = arith.constant 0 : index
    %22 = vector.load %arg4[%c0_35, %c0_36] : memref<2x128xf32, #tpu.memory_space<vmem>>, vector<1x128xf32>
    %23 = vector.broadcast %22 : vector<1x128xf32> to vector<256x128xf32>
    %24 = arith.addf %21, %23 : vector<256x128xf32>
    %cst_37 = arith.constant 0.000000e+00 : f32
    %25 = vector.broadcast %cst_37 : f32 to vector<256x128xf32>
    %26 = arith.maximumf %24, %25 : vector<256x128xf32>
    %cst_38 = arith.constant 0.000000e+00 : bf16
    %27 = vector.broadcast %cst_38 : bf16 to vector<1x18x128xbf16>
    %cst_39 = arith.constant 0.000000e+00 : bf16
    %28 = vector.broadcast %cst_39 : bf16 to vector<16x1x128xbf16>
    %c0_40 = arith.constant 0 : index
    %c0_41 = arith.constant 0 : index
    %c0_42 = arith.constant 0 : index
    %29 = vector.load %arg6[%c0_40, %c0_41, %c0_42] : memref<18x18x128xbf16, #tpu.memory_space<vmem>>, vector<1x18x128xbf16>
    tpu.vector_store %arg6[%c0_40, %c0_41, %c0_42], %27 {strides = array<i32>} : memref<18x18x128xbf16, #tpu.memory_space<vmem>>, vector<1x18x128xbf16>,
    %c17 = arith.constant 17 : index
    %c0_43 = arith.constant 0 : index
    %c0_44 = arith.constant 0 : index
    %30 = vector.load %arg6[%c17, %c0_43, %c0_44] : memref<18x18x128xbf16, #tpu.memory_space<vmem>>, vector<1x18x128xbf16>
    tpu.vector_store %arg6[%c17, %c0_43, %c0_44], %27 {strides = array<i32>} : memref<18x18x128xbf16, #tpu.memory_space<vmem>>, vector<1x18x128xbf16>,
    %c1_45 = arith.constant 1 : index
    %c0_46 = arith.constant 0 : index
    %c0_47 = arith.constant 0 : index
    %31 = vector.load %arg6[%c1_45, %c0_46, %c0_47] : memref<18x18x128xbf16, #tpu.memory_space<vmem>>, vector<16x1x128xbf16>
    tpu.vector_store %arg6[%c1_45, %c0_46, %c0_47], %28 {strides = array<i32>} : memref<18x18x128xbf16, #tpu.memory_space<vmem>>, vector<16x1x128xbf16>,
    %c1_48 = arith.constant 1 : index
    %c17_49 = arith.constant 17 : index
    %c0_50 = arith.constant 0 : index
    %32 = vector.load %arg6[%c1_48, %c17_49, %c0_50] : memref<18x18x128xbf16, #tpu.memory_space<vmem>>, vector<16x1x128xbf16>
    tpu.vector_store %arg6[%c1_48, %c17_49, %c0_50], %28 {strides = array<i32>} : memref<18x18x128xbf16, #tpu.memory_space<vmem>>, vector<16x1x128xbf16>,
    %33 = vector.shape_cast %26 : vector<256x128xf32> to vector<16x16x128xf32>
    %34 = arith.truncf %33 : vector<16x16x128xf32> to vector<16x16x128xbf16>
    %c1_51 = arith.constant 1 : index
    %c1_52 = arith.constant 1 : index
    %c0_53 = arith.constant 0 : index
    %35 = vector.load %arg6[%c1_51, %c1_52, %c0_53] : memref<18x18x128xbf16, #tpu.memory_space<vmem>>, vector<16x16x128xbf16>
    tpu.vector_store %arg6[%c1_51, %c1_52, %c0_53], %34 {strides = array<i32>} : memref<18x18x128xbf16, #tpu.memory_space<vmem>>, vector<16x16x128xbf16>,
    %c0_54 = arith.constant 0 : index
    %c0_55 = arith.constant 0 : index
    %c0_56 = arith.constant 0 : index
    %36 = vector.load %arg6[%c0_54, %c0_55, %c0_56] : memref<18x18x128xbf16, #tpu.memory_space<vmem>>, vector<16x16x128xbf16>
    %c0_57 = arith.constant 0 : index
    %c1_58 = arith.constant 1 : index
    %c0_59 = arith.constant 0 : index
    %37 = vector.load %arg6[%c0_57, %c1_58, %c0_59] : memref<18x18x128xbf16, #tpu.memory_space<vmem>>, vector<16x16x128xbf16>
    %c0_60 = arith.constant 0 : index
    %c2_61 = arith.constant 2 : index
    %c0_62 = arith.constant 0 : index
    %38 = vector.load %arg6[%c0_60, %c2_61, %c0_62] : memref<18x18x128xbf16, #tpu.memory_space<vmem>>, vector<16x16x128xbf16>
    %c1_63 = arith.constant 1 : index
    %c0_64 = arith.constant 0 : index
    %c0_65 = arith.constant 0 : index
    %39 = vector.load %arg6[%c1_63, %c0_64, %c0_65] : memref<18x18x128xbf16, #tpu.memory_space<vmem>>, vector<16x16x128xbf16>
    %c1_66 = arith.constant 1 : index
    %c1_67 = arith.constant 1 : index
    %c0_68 = arith.constant 0 : index
    %40 = vector.load %arg6[%c1_66, %c1_67, %c0_68] : memref<18x18x128xbf16, #tpu.memory_space<vmem>>, vector<16x16x128xbf16>
    %c1_69 = arith.constant 1 : index
    %c2_70 = arith.constant 2 : index
    %c0_71 = arith.constant 0 : index
    %41 = vector.load %arg6[%c1_69, %c2_70, %c0_71] : memref<18x18x128xbf16, #tpu.memory_space<vmem>>, vector<16x16x128xbf16>
    %c2_72 = arith.constant 2 : index
    %c0_73 = arith.constant 0 : index
    %c0_74 = arith.constant 0 : index
    %42 = vector.load %arg6[%c2_72, %c0_73, %c0_74] : memref<18x18x128xbf16, #tpu.memory_space<vmem>>, vector<16x16x128xbf16>
    %c2_75 = arith.constant 2 : index
    %c1_76 = arith.constant 1 : index
    %c0_77 = arith.constant 0 : index
    %43 = vector.load %arg6[%c2_75, %c1_76, %c0_77] : memref<18x18x128xbf16, #tpu.memory_space<vmem>>, vector<16x16x128xbf16>
    %c2_78 = arith.constant 2 : index
    %c2_79 = arith.constant 2 : index
    %c0_80 = arith.constant 0 : index
    %44 = vector.load %arg6[%c2_78, %c2_79, %c0_80] : memref<18x18x128xbf16, #tpu.memory_space<vmem>>, vector<16x16x128xbf16>
    %45 = tpu.concatenate %36, %37, %38, %39, %40, %41, %42, %43, %44 in 2 : vector<16x16x128xbf16>, vector<16x16x128xbf16>, vector<16x16x128xbf16>, vector<16x16x128xbf16>, vector<16x16x128xbf16>, vector<16x16x128xbf16>, vector<16x16x128xbf16>, vector<16x16x128xbf16>, vector<16x16x128xbf16> -> vector<16x16x1152xbf16>
    %46 = vector.shape_cast %45 : vector<16x16x1152xbf16> to vector<256x1152xbf16>
    %c0_81 = arith.constant 0 : index
    %c0_82 = arith.constant 0 : index
    %47 = vector.load %arg3[%c0_81, %c0_82] : memref<1152x128xbf16, #tpu.memory_space<vmem>>, vector<1152x128xbf16>
    %cst_83 = arith.constant dense<0.000000e+00> : vector<256x128xf32>
    %48 = tpu.matmul %46, %47, %cst_83 {dimension_numbers = #tpu.dot_dimension_numbers<[1], [0], [0], [1], [0, 0, 1, 1], [], []>} : vector<256x1152xbf16>, vector<1152x128xbf16>, vector<256x128xf32> -> vector<256x128xf32>
    %c1_84 = arith.constant 1 : index
    %c0_85 = arith.constant 0 : index
    %49 = vector.load %arg4[%c1_84, %c0_85] : memref<2x128xf32, #tpu.memory_space<vmem>>, vector<1x128xf32>
    %50 = vector.broadcast %49 : vector<1x128xf32> to vector<256x128xf32>
    %51 = arith.addf %48, %50 : vector<256x128xf32>
    %52 = vector.shape_cast %51 : vector<256x128xf32> to vector<16x16x128xf32>
    %c0_86 = arith.constant 0 : index
    %c1_87 = arith.constant 1 : index
    %c1_88 = arith.constant 1 : index
    %c0_89 = arith.constant 0 : index
    %53 = vector.load %arg1[%c0_86, %c1_87, %c1_88, %c0_89] : memref<1x18x18x128xbf16, #tpu.memory_space<vmem>>, vector<1x16x16x128xbf16>
    %54 = vector.shape_cast %53 : vector<1x16x16x128xbf16> to vector<16x16x128xbf16>
    %55 = arith.extf %54 : vector<16x16x128xbf16> to vector<16x16x128xf32>
    %56 = arith.addf %52, %55 : vector<16x16x128xf32>
    %cst_90 = arith.constant 0.000000e+00 : f32
    %57 = vector.broadcast %cst_90 : f32 to vector<16x16x128xf32>
    %58 = arith.maximumf %56, %57 : vector<16x16x128xf32>
    %c0_91 = arith.constant 0 : index
    %c0_92 = arith.constant 0 : index
    %c0_93 = arith.constant 0 : index
    %c0_94 = arith.constant 0 : index
    %59 = vector.load %arg5[%c0_91, %c0_92, %c0_93, %c0_94] : memref<1x16x16x128xf32, #tpu.memory_space<vmem>>, vector<1x16x16x128xf32>
    %60 = vector.shape_cast %59 : vector<1x16x16x128xf32> to vector<16x16x128xf32>
    %61 = vector.shape_cast %58 : vector<16x16x128xf32> to vector<1x16x16x128xf32>
    tpu.vector_store %arg5[%c0_91, %c0_92, %c0_93, %c0_94], %61 {strides = array<i32>} : memref<1x16x16x128xf32, #tpu.memory_space<vmem>>, vector<1x16x16x128xf32>,
    return
  }
  func.func @transform_0(%arg0: i32) -> (i32, i32, i32, i32) {
    %c0_i32 = arith.constant 0 : i32
    %c0_i32_0 = arith.constant 0 : i32
    %c0_i32_1 = arith.constant 0 : i32
    %c0_i32_2 = arith.constant 0 : i32
    return %arg0, %c0_i32, %c0_i32_0, %c0_i32_1 : i32, i32, i32, i32
  }
  func.func @transform_1(%arg0: i32) -> (i32, i32) {
    %c0_i32 = arith.constant 0 : i32
    %c0_i32_0 = arith.constant 0 : i32
    %c0_i32_1 = arith.constant 0 : i32
    return %c0_i32, %c0_i32_0 : i32, i32
  }
  func.func @transform_2(%arg0: i32) -> (i32, i32) {
    %c0_i32 = arith.constant 0 : i32
    %c0_i32_0 = arith.constant 0 : i32
    %c0_i32_1 = arith.constant 0 : i32
    return %c0_i32, %c0_i32_0 : i32, i32
  }
  func.func @transform_3(%arg0: i32) -> (i32, i32) {
    %c0_i32 = arith.constant 0 : i32
    %c0_i32_0 = arith.constant 0 : i32
    %c0_i32_1 = arith.constant 0 : i32
    return %c0_i32, %c0_i32_0 : i32, i32
  }
  func.func @transform_4(%arg0: i32) -> (i32, i32, i32, i32) {
    %c0_i32 = arith.constant 0 : i32
    %c0_i32_0 = arith.constant 0 : i32
    %c0_i32_1 = arith.constant 0 : i32
    %c0_i32_2 = arith.constant 0 : i32
    return %arg0, %c0_i32, %c0_i32_0, %c0_i32_1 : i32, i32, i32, i32
  }
}

</mosaic_0001>

<llo_original>
// kernel: basic_block.1
$region0: #{basic_block.1}
  #allocation0 [shape = 'u32[]', space=smem, size = 0x4, offset = 0x4, fixed_abs, tag = 'smem constant byte address 0x4 - core index']
  #allocation1 [shape = 'u32[144,128]{1,0:T(1,128)}', space=vmem, size = 0x12000, scoped, tag = 'internal scratch']
  #allocation2 [shape = 'bf16[18,18,128]{2,1,0:T(8,128)(2,1)}', space=vmem, size = 0x1b000, scoped, tag = 'scratch operand']
  %s0 = inlined_call_operand.vmem [shape: bf16[2,18,18,128], index: 0, kind: input, shape index: {}]
  %s1 = inlined_call_operand.vmem [shape: bf16[1152,128], index: 1, kind: input, shape index: {}]
  %s2 = inlined_call_operand.vmem [shape: bf16[1152,128], index: 2, kind: input, shape index: {}]
  %s3 = inlined_call_operand.vmem [shape: f32[2,128], index: 3, kind: input, shape index: {}]
  %s4 = inlined_call_operand.vmem [shape: f32[2,16,16,128], index: 4, kind: output, shape index: {}]
  %s5 = sld [smem:[#allocation0]]
  $region49: #{basic_block.1} parent=0
    _
  %s7 = ssub.s32 1, %s5
  %s8 = scalar_select 0, %s7, %s5
  loop: start=0, step=1, limit=4
  $region2: #{basic_block.1} parent=0 // loop_pre_header
    _
  $region3: #{basic_block.1} parent=0 // loop_header
    %s10 = sphi 0, %s14
    %p11 = scmp.ge.s32.totalorder %s10, 4
    %s20 = sphi 0, %s22
    %s23 = sphi 0, %s20
    %s24 = sphi 0, %s23
    %s40 = sphi 0, %s24
    %s44 = sphi 0, %s44
    %s46 = sphi 0, %s44
    %s47 = sphi 0, %s46
    %s61 = sphi 0, %s47
    %s65 = sphi 0, %s65
    %s67 = sphi 0, %s65
    %s68 = sphi 0, %s67
    %s82 = sphi 0, %s68
    %s86 = sphi 0, %s86
    %s88 = sphi 0, %s86
    %s89 = sphi 0, %s88
    %s103 = sphi 0, %s89
    %s109 = sphi 0, %s111
    %s112 = sphi 0, %s109
    %s113 = sphi 0, %s112
    %s129 = sphi 0, %s113
  $region4: #{basic_block.1} parent=0 // loop_header_branch
    %13 = sbr.rel (%p11) target = $region8
  $region5: #{basic_block.1} parent=0 // loop_body
    %s15 = ssub.s32 %s10, 1
    %s16 = ssub.s32 %s10, 2
    %s17 = sadd.s32 %s10, 1
    %s18 = ssub.s32 %s10, %s17
    %p19 = scmp.eq.s32.totalorder %s18, 0
    %s21 = sadd.s32 %s20, 1
    %s22 = scalar_select %p19, %s20, %s21
    %p25 = pneg %p19
    %p26 = scmp.eq.s32.totalorder %s10, 1
    %p27 = por %p25, %p26
    %p28 = scmp.ne.s32.totalorder %s20, %s23
    %p29 = scmp.eq.s32.totalorder %s10, 0
    %p30 = por %p28, %p29
    %p31 = scmp.ne.s32.totalorder %s20, %s23
    %p32 = scmp.eq.s32.totalorder %s15, 1
    %p33 = por %p31, %p32
    %p34 = scmp.ne.s32.totalorder %s23, %s24
    %p35 = scmp.eq.s32.totalorder %s15, 0
    %p36 = por %p34, %p35
    %p37 = scmp.ne.s32.totalorder %s23, %s24
    %p38 = scmp.eq.s32.totalorder %s16, 1
    %p39 = por %p37, %p38
    %p41 = scmp.ne.s32.totalorder %s24, %s40
    %p42 = scmp.eq.s32.totalorder %s16, 0
    %p43 = por %p41, %p42
    %s45 = sadd.s32 %s44, 1
    %p48 = scmp.eq.s32.totalorder %s10, 1
    %p49 = scmp.ne.s32.totalorder %s44, %s46
    %p50 = scmp.eq.s32.totalorder %s10, 0
    %p51 = por %p49, %p50
    %p52 = scmp.ne.s32.totalorder %s44, %s46
    %p53 = scmp.eq.s32.totalorder %s15, 1
    %p54 = por %p52, %p53
    %p55 = scmp.ne.s32.totalorder %s46, %s47
    %p56 = scmp.eq.s32.totalorder %s15, 0
    %p57 = por %p55, %p56
    %p58 = scmp.ne.s32.totalorder %s46, %s47
    %p59 = scmp.eq.s32.totalorder %s16, 1
    %p60 = por %p58, %p59
    %p62 = scmp.ne.s32.totalorder %s47, %s61
    %p63 = scmp.eq.s32.totalorder %s16, 0
    %p64 = por %p62, %p63
    %s66 = sadd.s32 %s65, 1
    %p69 = scmp.eq.s32.totalorder %s10, 1
    %p70 = scmp.ne.s32.totalorder %s65, %s67
    %p71 = scmp.eq.s32.totalorder %s10, 0
    %p72 = por %p70, %p71
    %p73 = scmp.ne.s32.totalorder %s65, %s67
    %p74 = scmp.eq.s32.totalorder %s15, 1
    %p75 = por %p73, %p74
    %p76 = scmp.ne.s32.totalorder %s67, %s68
    %p77 = scmp.eq.s32.totalorder %s15, 0
    %p78 = por %p76, %p77
    %p79 = scmp.ne.s32.totalorder %s67, %s68
    %p80 = scmp.eq.s32.totalorder %s16, 1
    %p81 = por %p79, %p80
    %p83 = scmp.ne.s32.totalorder %s68, %s82
    %p84 = scmp.eq.s32.totalorder %s16, 0
    %p85 = por %p83, %p84
    %s87 = sadd.s32 %s86, 1
    %p90 = scmp.eq.s32.totalorder %s10, 1
    %p91 = scmp.ne.s32.totalorder %s86, %s88
    %p92 = scmp.eq.s32.totalorder %s10, 0
    %p93 = por %p91, %p92
    %p94 = scmp.ne.s32.totalorder %s86, %s88
    %p95 = scmp.eq.s32.totalorder %s15, 1
    %p96 = por %p94, %p95
    %p97 = scmp.ne.s32.totalorder %s88, %s89
    %p98 = scmp.eq.s32.totalorder %s15, 0
    %p99 = por %p97, %p98
    %p100 = scmp.ne.s32.totalorder %s88, %s89
    %p101 = scmp.eq.s32.totalorder %s16, 1
    %p102 = por %p100, %p101
    %p104 = scmp.ne.s32.totalorder %s89, %s103
    %p105 = scmp.eq.s32.totalorder %s16, 0
    %p106 = por %p104, %p105
    %s107 = ssub.s32 %s10, %s17
    %p108 = scmp.eq.s32.totalorder %s107, 0
    %s110 = sadd.s32 %s109, 1
    %s111 = scalar_select %p108, %s109, %s110
    %p114 = pneg %p108
    %p115 = scmp.eq.s32.totalorder %s10, 1
    %p116 = por %p114, %p115
    %p117 = scmp.ne.s32.totalorder %s109, %s112
    %p118 = scmp.eq.s32.totalorder %s10, 0
    %p119 = por %p117, %p118
    %p120 = scmp.ne.s32.totalorder %s109, %s112
    %p121 = scmp.eq.s32.totalorder %s15, 1
    %p122 = por %p120, %p121
    %p123 = scmp.ne.s32.totalorder %s112, %s113
    %p124 = scmp.eq.s32.totalorder %s15, 0
    %p125 = por %p123, %p124
    %p126 = scmp.ne.s32.totalorder %s112, %s113
    %p127 = scmp.eq.s32.totalorder %s16, 1
    %p128 = por %p126, %p127
    %p130 = scmp.ne.s32.totalorder %s113, %s129
    %p131 = scmp.eq.s32.totalorder %s16, 0
    %p132 = por %p130, %p131
    %p133 = scmp.le.s32.totalorder 1, %s10
    %p134 = scmp.lt.s32.totalorder %s10, 3
    %p135 = pnand %p133, %p134
    %p136 = pneg %p135
    // Predicated region
    $region9: #{basic_block.1} parent=5 // pred_check
      _
    $region10: #{basic_block.1} parent=5 // pred_check_branch
      %138 = sbr.rel (%p135) target = $region12
    $region11: #{basic_block.1} parent=5 // pred_region
      %s139 = ssub.s32 %s10, 1
      // Predicated region
      $region13: #{basic_block.1} parent=11 // pred_check
        %p140 = pneg %p57
      $region14: #{basic_block.1} parent=11 // pred_check_branch
        %142 = sbr.rel (%p140) target = $region16
      $region15: #{basic_block.1} parent=11 // pred_region
        _
      $region16: #{basic_block.1} parent=11 // pred_fallthru
        _
      // Predicated region
      $region17: #{basic_block.1} parent=11 // pred_check
        %p143 = pneg %p78
      $region18: #{basic_block.1} parent=11 // pred_check_branch
        %145 = sbr.rel (%p143) target = $region20
      $region19: #{basic_block.1} parent=11 // pred_region
        _
      $region20: #{basic_block.1} parent=11 // pred_fallthru
        _
      // Predicated region
      $region21: #{basic_block.1} parent=11 // pred_check
        %p146 = pneg %p99
      $region22: #{basic_block.1} parent=11 // pred_check_branch
        %148 = sbr.rel (%p146) target = $region24
      $region23: #{basic_block.1} parent=11 // pred_region
        _
      $region24: #{basic_block.1} parent=11 // pred_fallthru
        _
    $region12: #{basic_block.1} parent=5 // pred_fallthru
      _
    %p149 = scmp.lt.s32.totalorder %s10, 2
    // Predicated region
    $region25: #{basic_block.1} parent=5 // pred_check
      %p150 = pneg %p149
    $region26: #{basic_block.1} parent=5 // pred_check_branch
      %152 = sbr.rel (%p150) target = $region28
    $region27: #{basic_block.1} parent=5 // pred_region
      // Predicated region
      $region29: #{basic_block.1} parent=27 // pred_check
        %p153 = pneg %p30
      $region30: #{basic_block.1} parent=27 // pred_check_branch
        %155 = sbr.rel (%p153) target = $region32
      $region31: #{basic_block.1} parent=27 // pred_region
        %p156 = scmp.lt.s32.totalorder %s10, 1
        %s157 = scalar_select %p156, %s10, 1
        %s158 = smul.addr %s157, 54
        %s159 = smul.addr %s158, 4
        %s160 = scalar_lea.vmem %s0, %s159
      $region32: #{basic_block.1} parent=27 // pred_fallthru
        _
    $region28: #{basic_block.1} parent=5 // pred_fallthru
      _
    %p161 = scmp.le.s32.totalorder 1, %s10
    %p162 = scmp.lt.s32.totalorder %s10, 3
    %p163 = pnand %p161, %p162
    %p164 = pneg %p163
    // Predicated region
    $region33: #{basic_block.1} parent=5 // pred_check
      _
    $region34: #{basic_block.1} parent=5 // pred_check_branch
      %166 = sbr.rel (%p163) target = $region36
    $region35: #{basic_block.1} parent=5 // pred_region
      %s167 = ssub.s32 %s10, 1
      %p168 = scmp.lt.s32.totalorder %s15, 1
      %s169 = scalar_select %p168, %s15, 1
      %s170 = smul.addr %s169, 54
      %s171 = smul.addr %s170, 4
      %s172 = scalar_lea.vmem %s0, %s171
      %p173 = pneg %p36
      %p174 = pneg %p33
      %p175 = pneg %p57
      %p176 = pneg %p54
      %p177 = pneg %p78
      %p178 = pneg %p75
      %p179 = pneg %p99
      %p180 = pneg %p96
      %p181 = pneg %p125
      %p182 = pneg %p122
      %p183 = scmp.lt.s32.totalorder %s15, 1
      %s184 = scalar_select %p183, %s15, 1
      %s185 = smul.addr %s184, 32
      %s186 = smul.addr %s185, 8
      %s187 = scalar_lea.vmem %s4, %s186
      %p188 = scmp.lt.s32.totalorder %s15, 1
      %s189 = scalar_select %p188, %s15, 1
      %s190 = smul.addr %s189, 54
      %s191 = smul.addr %s190, 4
      %s192 = scalar_lea.vmem %s0, %s191
      %p193 = scmp.lt.s32.totalorder %s15, 1
      %s194 = scalar_select %p193, %s15, 1
      %s195 = smul.addr %s194, 32
      %s196 = smul.addr %s195, 8
      %s197 = scalar_lea.vmem %s4, %s196
      %v199 = vld [vmem:[%s192] sm:$0xf]
      %v200 = vld [vmem:[%s192 + $0x4] sm:$0xf]
      %v201 = vld [vmem:[%s192 + $0xc] sm:$0xf]
      %v202 = vld [vmem:[%s192 + $0x10] sm:$0xf]
      %v203 = vld [vmem:[%s192 + $0x18] sm:$0xf]
      %v204 = vld [vmem:[%s192 + $0x1c] sm:$0xf]
      %v205 = vld [vmem:[%s192 + $0x24] sm:$0xf]
      %v206 = vld [vmem:[%s192 + $0x28] sm:$0xf]
      %v207 = vld [vmem:[%s192 + $0x30] sm:$0xf]
      %v208 = vld [vmem:[%s192 + $0x34] sm:$0xf]
      %v209 = vld [vmem:[%s192 + $0x3c] sm:$0xf]
      %v210 = vld [vmem:[%s192 + $0x40] sm:$0xf]
      %v211 = vld [vmem:[%s192 + $0x48] sm:$0xf]
      %v212 = vld [vmem:[%s192 + $0x4c] sm:$0xf]
      %v213 = vld [vmem:[%s192 + $0x54] sm:$0xf]
      %v214 = vld [vmem:[%s192 + $0x58] sm:$0xf]
      %v215 = vld [vmem:[%s192 + $0x60] sm:$0xf]
      %v216 = vld [vmem:[%s192 + $0x64] sm:$0xf]
      %v217 = vld [vmem:[%s192 + $0x6c] sm:$0xf]
      %v218 = vld [vmem:[%s192 + $0x70] sm:$0xf]
      %v219 = vld [vmem:[%s192 + $0x78] sm:$0xf]
      %v220 = vld [vmem:[%s192 + $0x7c] sm:$0xf]
      %v221 = vld [vmem:[%s192 + $0x84] sm:$0xf]
      %v222 = vld [vmem:[%s192 + $0x88] sm:$0xf]
      %v223 = vld [vmem:[%s192 + $0x90] sm:$0xf]
      %v224 = vld [vmem:[%s192 + $0x94] sm:$0xf]
      %v225 = vld [vmem:[%s192 + $0x9c] sm:$0xf]
      %v226 = vld [vmem:[%s192 + $0xa0] sm:$0xf]
      %v227 = vld [vmem:[%s192 + $0xa8] sm:$0xf]
      %v228 = vld [vmem:[%s192 + $0xac] sm:$0xf]
      %v229 = vld [vmem:[%s192 + $0xb4] sm:$0xf]
      %v230 = vld [vmem:[%s192 + $0xb8] sm:$0xf]
      %v231 = vld [vmem:[%s192 + $0x8] sm:$0x1]
      %v232 = vld [vmem:[%s192 + $0x14] sm:$0x1]
      %v233 = vld [vmem:[%s192 + $0x20] sm:$0x1]
      %v234 = vld [vmem:[%s192 + $0x2c] sm:$0x1]
      %v235 = vld [vmem:[%s192 + $0x38] sm:$0x1]
      %v236 = vld [vmem:[%s192 + $0x44] sm:$0x1]
      %v237 = vld [vmem:[%s192 + $0x50] sm:$0x1]
      %v238 = vld [vmem:[%s192 + $0x5c] sm:$0x1]
      %v239 = vld [vmem:[%s192 + $0x68] sm:$0x1]
      %v240 = vld [vmem:[%s192 + $0x74] sm:$0x1]
      %v241 = vld [vmem:[%s192 + $0x80] sm:$0x1]
      %v242 = vld [vmem:[%s192 + $0x8c] sm:$0x1]
      %v243 = vld [vmem:[%s192 + $0x98] sm:$0x1]
      %v244 = vld [vmem:[%s192 + $0xa4] sm:$0x1]
      %v245 = vld [vmem:[%s192 + $0xb0] sm:$0x1]
      %v246 = vld [vmem:[%s192 + $0xbc] sm:$0x1]
      %v247 = vld [vmem:[%s192] sm:$0xe]
      %v248 = vld [vmem:[%s192 + $0xc] sm:$0xe]
      %v249 = vld [vmem:[%s192 + $0x18] sm:$0xe]
      %v250 = vld [vmem:[%s192 + $0x24] sm:$0xe]
      %v251 = vld [vmem:[%s192 + $0x30] sm:$0xe]
      %v252 = vld [vmem:[%s192 + $0x3c] sm:$0xe]
      %v253 = vld [vmem:[%s192 + $0x48] sm:$0xe]
      %v254 = vld [vmem:[%s192 + $0x54] sm:$0xe]
      %v255 = vld [vmem:[%s192 + $0x60] sm:$0xe]
      %v256 = vld [vmem:[%s192 + $0x6c] sm:$0xe]
      %v257 = vld [vmem:[%s192 + $0x78] sm:$0xe]
      %v258 = vld [vmem:[%s192 + $0x84] sm:$0xe]
      %v259 = vld [vmem:[%s192 + $0x90] sm:$0xe]
      %v260 = vld [vmem:[%s192 + $0x9c] sm:$0xe]
      %v261 = vld [vmem:[%s192 + $0xa8] sm:$0xe]
      %v262 = vld [vmem:[%s192 + $0xb4] sm:$0xe]
      %s263 = scalar_lea.vmem %s192, 12
      %v264 = vld [vmem:[%s263] sm:$0xf]
      %v265 = vld [vmem:[%s263 + $0x4] sm:$0xf]
      %v266 = vld [vmem:[%s263 + $0xc] sm:$0xf]
      %v267 = vld [vmem:[%s263 + $0x10] sm:$0xf]
      %v268 = vld [vmem:[%s263 + $0x18] sm:$0xf]
      %v269 = vld [vmem:[%s263 + $0x1c] sm:$0xf]
      %v270 = vld [vmem:[%s263 + $0x24] sm:$0xf]
      %v271 = vld [vmem:[%s263 + $0x28] sm:$0xf]
      %v272 = vld [vmem:[%s263 + $0x30] sm:$0xf]
      %v273 = vld [vmem:[%s263 + $0x34] sm:$0xf]
      %v274 = vld [vmem:[%s263 + $0x3c] sm:$0xf]
      %v275 = vld [vmem:[%s263 + $0x40] sm:$0xf]
      %v276 = vld [vmem:[%s263 + $0x48] sm:$0xf]
      %v277 = vld [vmem:[%s263 + $0x4c] sm:$0xf]
      %v278 = vld [vmem:[%s263 + $0x54] sm:$0xf]
      %v279 = vld [vmem:[%s263 + $0x58] sm:$0xf]
      %v280 = vld [vmem:[%s263 + $0x60] sm:$0xf]
      %v281 = vld [vmem:[%s263 + $0x64] sm:$0xf]
      %v282 = vld [vmem:[%s263 + $0x6c] sm:$0xf]
      %v283 = vld [vmem:[%s263 + $0x70] sm:$0xf]
      %v284 = vld [vmem:[%s263 + $0x78] sm:$0xf]
      %v285 = vld [vmem:[%s263 + $0x7c] sm:$0xf]
      %v286 = vld [vmem:[%s263 + $0x84] sm:$0xf]
      %v287 = vld [vmem:[%s263 + $0x88] sm:$0xf]
      %v288 = vld [vmem:[%s263 + $0x90] sm:$0xf]
      %v289 = vld [vmem:[%s263 + $0x94] sm:$0xf]
      %v290 = vld [vmem:[%s263 + $0x9c] sm:$0xf]
      %v291 = vld [vmem:[%s263 + $0xa0] sm:$0xf]
      %v292 = vld [vmem:[%s263 + $0xa8] sm:$0xf]
      %v293 = vld [vmem:[%s263 + $0xac] sm:$0xf]
      %v294 = vld [vmem:[%s263 + $0xb4] sm:$0xf]
      %v295 = vld [vmem:[%s263 + $0xb8] sm:$0xf]
      %v296 = vld [vmem:[%s263 + $0x8] sm:$0x1]
      %v297 = vld [vmem:[%s263 + $0x14] sm:$0x1]
      %v298 = vld [vmem:[%s263 + $0x20] sm:$0x1]
      %v299 = vld [vmem:[%s263 + $0x2c] sm:$0x1]
      %v300 = vld [vmem:[%s263 + $0x38] sm:$0x1]
      %v301 = vld [vmem:[%s263 + $0x44] sm:$0x1]
      %v302 = vld [vmem:[%s263 + $0x50] sm:$0x1]
      %v303 = vld [vmem:[%s263 + $0x5c] sm:$0x1]
      %v304 = vld [vmem:[%s263 + $0x68] sm:$0x1]
      %v305 = vld [vmem:[%s263 + $0x74] sm:$0x1]
      %v306 = vld [vmem:[%s263 + $0x80] sm:$0x1]
      %v307 = vld [vmem:[%s263 + $0x8c] sm:$0x1]
      %v308 = vld [vmem:[%s263 + $0x98] sm:$0x1]
      %v309 = vld [vmem:[%s263 + $0xa4] sm:$0x1]
      %v310 = vld [vmem:[%s263 + $0xb0] sm:$0x1]
      %v311 = vld [vmem:[%s263 + $0xbc] sm:$0x1]
      %v312 = vld [vmem:[%s263] sm:$0xe]
      %v313 = vld [vmem:[%s263 + $0xc] sm:$0xe]
      %v314 = vld [vmem:[%s263 + $0x18] sm:$0xe]
      %v315 = vld [vmem:[%s263 + $0x24] sm:$0xe]
      %v316 = vld [vmem:[%s263 + $0x30] sm:$0xe]
      %v317 = vld [vmem:[%s263 + $0x3c] sm:$0xe]
      %v318 = vld [vmem:[%s263 + $0x48] sm:$0xe]
      %v319 = vld [vmem:[%s263 + $0x54] sm:$0xe]
      %v320 = vld [vmem:[%s263 + $0x60] sm:$0xe]
      %v321 = vld [vmem:[%s263 + $0x6c] sm:$0xe]
      %v322 = vld [vmem:[%s263 + $0x78] sm:$0xe]
      %v323 = vld [vmem:[%s263 + $0x84] sm:$0xe]
      %v324 = vld [vmem:[%s263 + $0x90] sm:$0xe]
      %v325 = vld [vmem:[%s263 + $0x9c] sm:$0xe]
      %v326 = vld [vmem:[%s263 + $0xa8] sm:$0xe]
      %v327 = vld [vmem:[%s263 + $0xb4] sm:$0xe]
      %s328 = scalar_lea.vmem %s192, 24
      %v329 = vld [vmem:[%s328] sm:$0xf]
      %v330 = vld [vmem:[%s328 + $0x4] sm:$0xf]
      %v331 = vld [vmem:[%s328 + $0xc] sm:$0xf]
      %v332 = vld [vmem:[%s328 + $0x10] sm:$0xf]
      %v333 = vld [vmem:[%s328 + $0x18] sm:$0xf]
      %v334 = vld [vmem:[%s328 + $0x1c] sm:$0xf]
      %v335 = vld [vmem:[%s328 + $0x24] sm:$0xf]
      %v336 = vld [vmem:[%s328 + $0x28] sm:$0xf]
      %v337 = vld [vmem:[%s328 + $0x30] sm:$0xf]
      %v338 = vld [vmem:[%s328 + $0x34] sm:$0xf]
      %v339 = vld [vmem:[%s328 + $0x3c] sm:$0xf]
      %v340 = vld [vmem:[%s328 + $0x40] sm:$0xf]
      %v341 = vld [vmem:[%s328 + $0x48] sm:$0xf]
      %v342 = vld [vmem:[%s328 + $0x4c] sm:$0xf]
      %v343 = vld [vmem:[%s328 + $0x54] sm:$0xf]
      %v344 = vld [vmem:[%s328 + $0x58] sm:$0xf]
      %v345 = vld [vmem:[%s328 + $0x60] sm:$0xf]
      %v346 = vld [vmem:[%s328 + $0x64] sm:$0xf]
      %v347 = vld [vmem:[%s328 + $0x6c] sm:$0xf]
      %v348 = vld [vmem:[%s328 + $0x70] sm:$0xf]
      %v349 = vld [vmem:[%s328 + $0x78] sm:$0xf]
      %v350 = vld [vmem:[%s328 + $0x7c] sm:$0xf]
      %v351 = vld [vmem:[%s328 + $0x84] sm:$0xf]
      %v352 = vld [vmem:[%s328 + $0x88] sm:$0xf]
      %v353 = vld [vmem:[%s328 + $0x90] sm:$0xf]
      %v354 = vld [vmem:[%s328 + $0x94] sm:$0xf]
      %v355 = vld [vmem:[%s328 + $0x9c] sm:$0xf]
      %v356 = vld [vmem:[%s328 + $0xa0] sm:$0xf]
      %v357 = vld [vmem:[%s328 + $0xa8] sm:$0xf]
      %v358 = vld [vmem:[%s328 + $0xac] sm:$0xf]
      %v359 = vld [vmem:[%s328 + $0xb4] sm:$0xf]
      %v360 = vld [vmem:[%s328 + $0xb8] sm:$0xf]
      %v361 = vld [vmem:[%s328 + $0x8] sm:$0x1]
      %v362 = vld [vmem:[%s328 + $0x14] sm:$0x1]
      %v363 = vld [vmem:[%s328 + $0x20] sm:$0x1]
      %v364 = vld [vmem:[%s328 + $0x2c] sm:$0x1]
      %v365 = vld [vmem:[%s328 + $0x38] sm:$0x1]
      %v366 = vld [vmem:[%s328 + $0x44] sm:$0x1]
      %v367 = vld [vmem:[%s328 + $0x50] sm:$0x1]
      %v368 = vld [vmem:[%s328 + $0x5c] sm:$0x1]
      %v369 = vld [vmem:[%s328 + $0x68] sm:$0x1]
      %v370 = vld [vmem:[%s328 + $0x74] sm:$0x1]
      %v371 = vld [vmem:[%s328 + $0x80] sm:$0x1]
      %v372 = vld [vmem:[%s328 + $0x8c] sm:$0x1]
      %v373 = vld [vmem:[%s328 + $0x98] sm:$0x1]
      %v374 = vld [vmem:[%s328 + $0xa4] sm:$0x1]
      %v375 = vld [vmem:[%s328 + $0xb0] sm:$0x1]
      %v376 = vld [vmem:[%s328 + $0xbc] sm:$0x1]
      %v377 = vld [vmem:[%s328] sm:$0xe]
      %v378 = vld [vmem:[%s328 + $0xc] sm:$0xe]
      %v379 = vld [vmem:[%s328 + $0x18] sm:$0xe]
      %v380 = vld [vmem:[%s328 + $0x24] sm:$0xe]
      %v381 = vld [vmem:[%s328 + $0x30] sm:$0xe]
      %v382 = vld [vmem:[%s328 + $0x3c] sm:$0xe]
      %v383 = vld [vmem:[%s328 + $0x48] sm:$0xe]
      %v384 = vld [vmem:[%s328 + $0x54] sm:$0xe]
      %v385 = vld [vmem:[%s328 + $0x60] sm:$0xe]
      %v386 = vld [vmem:[%s328 + $0x6c] sm:$0xe]
      %v387 = vld [vmem:[%s328 + $0x78] sm:$0xe]
      %v388 = vld [vmem:[%s328 + $0x84] sm:$0xe]
      %v389 = vld [vmem:[%s328 + $0x90] sm:$0xe]
      %v390 = vld [vmem:[%s328 + $0x9c] sm:$0xe]
      %v391 = vld [vmem:[%s328 + $0xa8] sm:$0xe]
      %v392 = vld [vmem:[%s328 + $0xb4] sm:$0xe]
      %v425 = vunpack.c.l.b16 %v199
      %v426 = vunpack.c.l.b16 %v200
      %v427 = vunpack.c.l.b16 %v201
      %v428 = vunpack.c.l.b16 %v202
      %v429 = vunpack.c.l.b16 %v203
      %v430 = vunpack.c.l.b16 %v204
      %v431 = vunpack.c.l.b16 %v205
      %v432 = vunpack.c.l.b16 %v206
      %v433 = vunpack.c.l.b16 %v207
      %v434 = vunpack.c.l.b16 %v208
      %v435 = vunpack.c.l.b16 %v209
      %v436 = vunpack.c.l.b16 %v210
      %v437 = vunpack.c.l.b16 %v211
      %v438 = vunpack.c.l.b16 %v212
      %v439 = vunpack.c.l.b16 %v213
      %v440 = vunpack.c.l.b16 %v214
      %v441 = vunpack.c.l.b16 %v215
      %v442 = vunpack.c.l.b16 %v216
      %v443 = vunpack.c.l.b16 %v217
      %v444 = vunpack.c.l.b16 %v218
      %v445 = vunpack.c.l.b16 %v219
      %v446 = vunpack.c.l.b16 %v220
      %v447 = vunpack.c.l.b16 %v221
      %v448 = vunpack.c.l.b16 %v222
      %v449 = vunpack.c.l.b16 %v223
      %v450 = vunpack.c.l.b16 %v224
      %v451 = vunpack.c.l.b16 %v225
      %v452 = vunpack.c.l.b16 %v226
      %v453 = vunpack.c.l.b16 %v227
      %v454 = vunpack.c.l.b16 %v228
      %v455 = vunpack.c.l.b16 %v229
      %v456 = vunpack.c.l.b16 %v230
      %v457 = vpack.c.b16 %v426, %v425
      %v458 = vpack.c.b16 %v428, %v427
      %v459 = vpack.c.b16 %v430, %v429
      %v460 = vpack.c.b16 %v432, %v431
      %v461 = vpack.c.b16 %v434, %v433
      %v462 = vpack.c.b16 %v436, %v435
      %v463 = vpack.c.b16 %v438, %v437
      %v464 = vpack.c.b16 %v440, %v439
      %v465 = vpack.c.b16 %v442, %v441
      %v466 = vpack.c.b16 %v444, %v443
      %v467 = vpack.c.b16 %v446, %v445
      %v468 = vpack.c.b16 %v448, %v447
      %v469 = vpack.c.b16 %v450, %v449
      %v470 = vpack.c.b16 %v452, %v451
      %v471 = vpack.c.b16 %v454, %v453
      %v472 = vpack.c.b16 %v456, %v455
      %v505 = vunpack.c.l.b16 %v231
      %v506 = vunpack.c.l.b16 %v232
      %v507 = vunpack.c.l.b16 %v233
      %v508 = vunpack.c.l.b16 %v234
      %v509 = vunpack.c.l.b16 %v235
      %v510 = vunpack.c.l.b16 %v236
      %v511 = vunpack.c.l.b16 %v237
      %v512 = vunpack.c.l.b16 %v238
      %v513 = vunpack.c.l.b16 %v239
      %v514 = vunpack.c.l.b16 %v240
      %v515 = vunpack.c.l.b16 %v241
      %v516 = vunpack.c.l.b16 %v242
      %v517 = vunpack.c.l.b16 %v243
      %v518 = vunpack.c.l.b16 %v244
      %v519 = vunpack.c.l.b16 %v245
      %v520 = vunpack.c.l.b16 %v246
      %v521 = vpack.c.b16 %v505, %v505
      %v522 = vpack.c.b16 %v506, %v506
      %v523 = vpack.c.b16 %v507, %v507
      %v524 = vpack.c.b16 %v508, %v508
      %v525 = vpack.c.b16 %v509, %v509
      %v526 = vpack.c.b16 %v510, %v510
      %v527 = vpack.c.b16 %v511, %v511
      %v528 = vpack.c.b16 %v512, %v512
      %v529 = vpack.c.b16 %v513, %v513
      %v530 = vpack.c.b16 %v514, %v514
      %v531 = vpack.c.b16 %v515, %v515
      %v532 = vpack.c.b16 %v516, %v516
      %v533 = vpack.c.b16 %v517, %v517
      %v534 = vpack.c.b16 %v518, %v518
      %v535 = vpack.c.b16 %v519, %v519
      %v536 = vpack.c.b16 %v520, %v520
      %vm537 = vsmask.f32 7424
      %v539 = vshrl.u32 %v457, 16
      %v541 = vshll.u32 %v457, 16
      %v543 = vrot.slane %v541, 1
      %v544 = vor.u32 %v539, %v543
      %v546 = vshll.u32 %v521, 16
      %v548 = vrot.slane %v546, 1
      %v549 = vsel %vm537, %v544, %v548
      %v551 = vshrl.u32 %v458, 16
      %v553 = vshll.u32 %v458, 16
      %v555 = vrot.slane %v553, 1
      %v556 = vor.u32 %v551, %v555
      %v558 = vshll.u32 %v522, 16
      %v560 = vrot.slane %v558, 1
      %v561 = vsel %vm537, %v556, %v560
      %v563 = vshrl.u32 %v459, 16
      %v565 = vshll.u32 %v459, 16
      %v567 = vrot.slane %v565, 1
      %v568 = vor.u32 %v563, %v567
      %v570 = vshll.u32 %v523, 16
      %v572 = vrot.slane %v570, 1
      %v573 = vsel %vm537, %v568, %v572
      %v575 = vshrl.u32 %v460, 16
      %v577 = vshll.u32 %v460, 16
      %v579 = vrot.slane %v577, 1
      %v580 = vor.u32 %v575, %v579
      %v582 = vshll.u32 %v524, 16
      %v584 = vrot.slane %v582, 1
      %v585 = vsel %vm537, %v580, %v584
      %v587 = vshrl.u32 %v461, 16
      %v589 = vshll.u32 %v461, 16
      %v591 = vrot.slane %v589, 1
      %v592 = vor.u32 %v587, %v591
      %v594 = vshll.u32 %v525, 16
      %v596 = vrot.slane %v594, 1
      %v597 = vsel %vm537, %v592, %v596
      %v599 = vshrl.u32 %v462, 16
      %v601 = vshll.u32 %v462, 16
      %v603 = vrot.slane %v601, 1
      %v604 = vor.u32 %v599, %v603
      %v606 = vshll.u32 %v526, 16
      %v608 = vrot.slane %v606, 1
      %v609 = vsel %vm537, %v604, %v608
      %v611 = vshrl.u32 %v463, 16
      %v613 = vshll.u32 %v463, 16
      %v615 = vrot.slane %v613, 1
      %v616 = vor.u32 %v611, %v615
      %v618 = vshll.u32 %v527, 16
      %v620 = vrot.slane %v618, 1
      %v621 = vsel %vm537, %v616, %v620
      %v623 = vshrl.u32 %v464, 16
      %v625 = vshll.u32 %v464, 16
      %v627 = vrot.slane %v625, 1
      %v628 = vor.u32 %v623, %v627
      %v630 = vshll.u32 %v528, 16
      %v632 = vrot.slane %v630, 1
      %v633 = vsel %vm537, %v628, %v632
      %v635 = vshrl.u32 %v465, 16
      %v637 = vshll.u32 %v465, 16
      %v639 = vrot.slane %v637, 1
      %v640 = vor.u32 %v635, %v639
      %v642 = vshll.u32 %v529, 16
      %v644 = vrot.slane %v642, 1
      %v645 = vsel %vm537, %v640, %v644
      %v647 = vshrl.u32 %v466, 16
      %v649 = vshll.u32 %v466, 16
      %v651 = vrot.slane %v649, 1
      %v652 = vor.u32 %v647, %v651
      %v654 = vshll.u32 %v530, 16
      %v656 = vrot.slane %v654, 1
      %v657 = vsel %vm537, %v652, %v656
      %v659 = vshrl.u32 %v467, 16
      %v661 = vshll.u32 %v467, 16
      %v663 = vrot.slane %v661, 1
      %v664 = vor.u32 %v659, %v663
      %v666 = vshll.u32 %v531, 16
      %v668 = vrot.slane %v666, 1
      %v669 = vsel %vm537, %v664, %v668
      %v671 = vshrl.u32 %v468, 16
      %v673 = vshll.u32 %v468, 16
      %v675 = vrot.slane %v673, 1
      %v676 = vor.u32 %v671, %v675
      %v678 = vshll.u32 %v532, 16
      %v680 = vrot.slane %v678, 1
      %v681 = vsel %vm537, %v676, %v680
      %v683 = vshrl.u32 %v469, 16
      %v685 = vshll.u32 %v469, 16
      %v687 = vrot.slane %v685, 1
      %v688 = vor.u32 %v683, %v687
      %v690 = vshll.u32 %v533, 16
      %v692 = vrot.slane %v690, 1
      %v693 = vsel %vm537, %v688, %v692
      %v695 = vshrl.u32 %v470, 16
      %v697 = vshll.u32 %v470, 16
      %v699 = vrot.slane %v697, 1
      %v700 = vor.u32 %v695, %v699
      %v702 = vshll.u32 %v534, 16
      %v704 = vrot.slane %v702, 1
      %v705 = vsel %vm537, %v700, %v704
      %v707 = vshrl.u32 %v471, 16
      %v709 = vshll.u32 %v471, 16
      %v711 = vrot.slane %v709, 1
      %v712 = vor.u32 %v707, %v711
      %v714 = vshll.u32 %v535, 16
      %v716 = vrot.slane %v714, 1
      %v717 = vsel %vm537, %v712, %v716
      %v719 = vshrl.u32 %v472, 16
      %v721 = vshll.u32 %v472, 16
      %v723 = vrot.slane %v721, 1
      %v724 = vor.u32 %v719, %v723
      %v726 = vshll.u32 %v536, 16
      %v728 = vrot.slane %v726, 1
      %v729 = vsel %vm537, %v724, %v728
      %v762 = vunpack.c.l.b16 %v247
      %v763 = vunpack.c.l.b16 %v248
      %v764 = vunpack.c.l.b16 %v249
      %v765 = vunpack.c.l.b16 %v250
      %v766 = vunpack.c.l.b16 %v251
      %v767 = vunpack.c.l.b16 %v252
      %v768 = vunpack.c.l.b16 %v253
      %v769 = vunpack.c.l.b16 %v254
      %v770 = vunpack.c.l.b16 %v255
      %v771 = vunpack.c.l.b16 %v256
      %v772 = vunpack.c.l.b16 %v257
      %v773 = vunpack.c.l.b16 %v258
      %v774 = vunpack.c.l.b16 %v259
      %v775 = vunpack.c.l.b16 %v260
      %v776 = vunpack.c.l.b16 %v261
      %v777 = vunpack.c.l.b16 %v262
      %v778 = vpack.c.b16 %v426, %v762
      %v779 = vpack.c.b16 %v428, %v763
      %v780 = vpack.c.b16 %v430, %v764
      %v781 = vpack.c.b16 %v432, %v765
      %v782 = vpack.c.b16 %v434, %v766
      %v783 = vpack.c.b16 %v436, %v767
      %v784 = vpack.c.b16 %v438, %v768
      %v785 = vpack.c.b16 %v440, %v769
      %v786 = vpack.c.b16 %v442, %v770
      %v787 = vpack.c.b16 %v444, %v771
      %v788 = vpack.c.b16 %v446, %v772
      %v789 = vpack.c.b16 %v448, %v773
      %v790 = vpack.c.b16 %v450, %v774
      %v791 = vpack.c.b16 %v452, %v775
      %v792 = vpack.c.b16 %v454, %v776
      %v793 = vpack.c.b16 %v456, %v777
      %vm794 = vcmask 1046528
      %v795 = vrot.slane %v778, 1
      %v796 = vrot.slane %v521, 1
      %v797 = vsel %vm794, %v795, %v796
      %v798 = vrot.slane %v779, 1
      %v799 = vrot.slane %v522, 1
      %v800 = vsel %vm794, %v798, %v799
      %v801 = vrot.slane %v780, 1
      %v802 = vrot.slane %v523, 1
      %v803 = vsel %vm794, %v801, %v802
      %v804 = vrot.slane %v781, 1
      %v805 = vrot.slane %v524, 1
      %v806 = vsel %vm794, %v804, %v805
      %v807 = vrot.slane %v782, 1
      %v808 = vrot.slane %v525, 1
      %v809 = vsel %vm794, %v807, %v808
      %v810 = vrot.slane %v783, 1
      %v811 = vrot.slane %v526, 1
      %v812 = vsel %vm794, %v810, %v811
      %v813 = vrot.slane %v784, 1
      %v814 = vrot.slane %v527, 1
      %v815 = vsel %vm794, %v813, %v814
      %v816 = vrot.slane %v785, 1
      %v817 = vrot.slane %v528, 1
      %v818 = vsel %vm794, %v816, %v817
      %v819 = vrot.slane %v786, 1
      %v820 = vrot.slane %v529, 1
      %v821 = vsel %vm794, %v819, %v820
      %v822 = vrot.slane %v787, 1
      %v823 = vrot.slane %v530, 1
      %v824 = vsel %vm794, %v822, %v823
      %v825 = vrot.slane %v788, 1
      %v826 = vrot.slane %v531, 1
      %v827 = vsel %vm794, %v825, %v826
      %v828 = vrot.slane %v789, 1
      %v829 = vrot.slane %v532, 1
      %v830 = vsel %vm794, %v828, %v829
      %v831 = vrot.slane %v790, 1
      %v832 = vrot.slane %v533, 1
      %v833 = vsel %vm794, %v831, %v832
      %v834 = vrot.slane %v791, 1
      %v835 = vrot.slane %v534, 1
      %v836 = vsel %vm794, %v834, %v835
      %v837 = vrot.slane %v792, 1
      %v838 = vrot.slane %v535, 1
      %v839 = vsel %vm794, %v837, %v838
      %v840 = vrot.slane %v793, 1
      %v841 = vrot.slane %v536, 1
      %v842 = vsel %vm794, %v840, %v841
      %v891 = vunpack.c.l.b16 %v264
      %v892 = vunpack.c.l.b16 %v265
      %v893 = vunpack.c.l.b16 %v266
      %v894 = vunpack.c.l.b16 %v267
      %v895 = vunpack.c.l.b16 %v268
      %v896 = vunpack.c.l.b16 %v269
      %v897 = vunpack.c.l.b16 %v270
      %v898 = vunpack.c.l.b16 %v271
      %v899 = vunpack.c.l.b16 %v272
      %v900 = vunpack.c.l.b16 %v273
      %v901 = vunpack.c.l.b16 %v274
      %v902 = vunpack.c.l.b16 %v275
      %v903 = vunpack.c.l.b16 %v276
      %v904 = vunpack.c.l.b16 %v277
      %v905 = vunpack.c.l.b16 %v278
      %v906 = vunpack.c.l.b16 %v279
      %v907 = vunpack.c.l.b16 %v280
      %v908 = vunpack.c.l.b16 %v281
      %v909 = vunpack.c.l.b16 %v282
      %v910 = vunpack.c.l.b16 %v283
      %v911 = vunpack.c.l.b16 %v284
      %v912 = vunpack.c.l.b16 %v285
      %v913 = vunpack.c.l.b16 %v286
      %v914 = vunpack.c.l.b16 %v287
      %v915 = vunpack.c.l.b16 %v288
      %v916 = vunpack.c.l.b16 %v289
      %v917 = vunpack.c.l.b16 %v290
      %v918 = vunpack.c.l.b16 %v291
      %v919 = vunpack.c.l.b16 %v292
      %v920 = vunpack.c.l.b16 %v293
      %v921 = vunpack.c.l.b16 %v294
      %v922 = vunpack.c.l.b16 %v295
      %v923 = vpack.c.b16 %v892, %v891
      %v924 = vpack.c.b16 %v894, %v893
      %v925 = vpack.c.b16 %v896, %v895
      %v926 = vpack.c.b16 %v898, %v897
      %v927 = vpack.c.b16 %v900, %v899
      %v928 = vpack.c.b16 %v902, %v901
      %v929 = vpack.c.b16 %v904, %v903
      %v930 = vpack.c.b16 %v906, %v905
      %v931 = vpack.c.b16 %v908, %v907
      %v932 = vpack.c.b16 %v910, %v909
      %v933 = vpack.c.b16 %v912, %v911
      %v934 = vpack.c.b16 %v914, %v913
      %v935 = vpack.c.b16 %v916, %v915
      %v936 = vpack.c.b16 %v918, %v917
      %v937 = vpack.c.b16 %v920, %v919
      %v938 = vpack.c.b16 %v922, %v921
      %v971 = vunpack.c.l.b16 %v296
      %v972 = vunpack.c.l.b16 %v297
      %v973 = vunpack.c.l.b16 %v298
      %v974 = vunpack.c.l.b16 %v299
      %v975 = vunpack.c.l.b16 %v300
      %v976 = vunpack.c.l.b16 %v301
      %v977 = vunpack.c.l.b16 %v302
      %v978 = vunpack.c.l.b16 %v303
      %v979 = vunpack.c.l.b16 %v304
      %v980 = vunpack.c.l.b16 %v305
      %v981 = vunpack.c.l.b16 %v306
      %v982 = vunpack.c.l.b16 %v307
      %v983 = vunpack.c.l.b16 %v308
      %v984 = vunpack.c.l.b16 %v309
      %v985 = vunpack.c.l.b16 %v310
      %v986 = vunpack.c.l.b16 %v311
      %v987 = vpack.c.b16 %v971, %v971
      %v988 = vpack.c.b16 %v972, %v972
      %v989 = vpack.c.b16 %v973, %v973
      %v990 = vpack.c.b16 %v974, %v974
      %v991 = vpack.c.b16 %v975, %v975
      %v992 = vpack.c.b16 %v976, %v976
      %v993 = vpack.c.b16 %v977, %v977
      %v994 = vpack.c.b16 %v978, %v978
      %v995 = vpack.c.b16 %v979, %v979
      %v996 = vpack.c.b16 %v980, %v980
      %v997 = vpack.c.b16 %v981, %v981
      %v998 = vpack.c.b16 %v982, %v982
      %v999 = vpack.c.b16 %v983, %v983
      %v1000 = vpack.c.b16 %v984, %v984
      %v1001 = vpack.c.b16 %v985, %v985
      %v1002 = vpack.c.b16 %v986, %v986
      %v1004 = vshrl.u32 %v923, 16
      %v1006 = vshll.u32 %v923, 16
      %v1008 = vrot.slane %v1006, 1
      %v1009 = vor.u32 %v1004, %v1008
      %v1011 = vshll.u32 %v987, 16
      %v1013 = vrot.slane %v1011, 1
      %v1014 = vsel %vm537, %v1009, %v1013
      %v1016 = vshrl.u32 %v924, 16
      %v1018 = vshll.u32 %v924, 16
      %v1020 = vrot.slane %v1018, 1
      %v1021 = vor.u32 %v1016, %v1020
      %v1023 = vshll.u32 %v988, 16
      %v1025 = vrot.slane %v1023, 1
      %v1026 = vsel %vm537, %v1021, %v1025
      %v1028 = vshrl.u32 %v925, 16
      %v1030 = vshll.u32 %v925, 16
      %v1032 = vrot.slane %v1030, 1
      %v1033 = vor.u32 %v1028, %v1032
      %v1035 = vshll.u32 %v989, 16
      %v1037 = vrot.slane %v1035, 1
      %v1038 = vsel %vm537, %v1033, %v1037
      %v1040 = vshrl.u32 %v926, 16
      %v1042 = vshll.u32 %v926, 16
      %v1044 = vrot.slane %v1042, 1
      %v1045 = vor.u32 %v1040, %v1044
      %v1047 = vshll.u32 %v990, 16
      %v1049 = vrot.slane %v1047, 1
      %v1050 = vsel %vm537, %v1045, %v1049
      %v1052 = vshrl.u32 %v927, 16
      %v1054 = vshll.u32 %v927, 16
      %v1056 = vrot.slane %v1054, 1
      %v1057 = vor.u32 %v1052, %v1056
      %v1059 = vshll.u32 %v991, 16
      %v1061 = vrot.slane %v1059, 1
      %v1062 = vsel %vm537, %v1057, %v1061
      %v1064 = vshrl.u32 %v928, 16
      %v1066 = vshll.u32 %v928, 16
      %v1068 = vrot.slane %v1066, 1
      %v1069 = vor.u32 %v1064, %v1068
      %v1071 = vshll.u32 %v992, 16
      %v1073 = vrot.slane %v1071, 1
      %v1074 = vsel %vm537, %v1069, %v1073
      %v1076 = vshrl.u32 %v929, 16
      %v1078 = vshll.u32 %v929, 16
      %v1080 = vrot.slane %v1078, 1
      %v1081 = vor.u32 %v1076, %v1080
      %v1083 = vshll.u32 %v993, 16
      %v1085 = vrot.slane %v1083, 1
      %v1086 = vsel %vm537, %v1081, %v1085
      %v1088 = vshrl.u32 %v930, 16
      %v1090 = vshll.u32 %v930, 16
      %v1092 = vrot.slane %v1090, 1
      %v1093 = vor.u32 %v1088, %v1092
      %v1095 = vshll.u32 %v994, 16
      %v1097 = vrot.slane %v1095, 1
      %v1098 = vsel %vm537, %v1093, %v1097
      %v1100 = vshrl.u32 %v931, 16
      %v1102 = vshll.u32 %v931, 16
      %v1104 = vrot.slane %v1102, 1
      %v1105 = vor.u32 %v1100, %v1104
      %v1107 = vshll.u32 %v995, 16
      %v1109 = vrot.slane %v1107, 1
      %v1110 = vsel %vm537, %v1105, %v1109
      %v1112 = vshrl.u32 %v932, 16
      %v1114 = vshll.u32 %v932, 16
      %v1116 = vrot.slane %v1114, 1
      %v1117 = vor.u32 %v1112, %v1116
      %v1119 = vshll.u32 %v996, 16
      %v1121 = vrot.slane %v1119, 1
      %v1122 = vsel %vm537, %v1117, %v1121
      %v1124 = vshrl.u32 %v933, 16
      %v1126 = vshll.u32 %v933, 16
      %v1128 = vrot.slane %v1126, 1
      %v1129 = vor.u32 %v1124, %v1128
      %v1131 = vshll.u32 %v997, 16
      %v1133 = vrot.slane %v1131, 1
      %v1134 = vsel %vm537, %v1129, %v1133
      %v1136 = vshrl.u32 %v934, 16
      %v1138 = vshll.u32 %v934, 16
      %v1140 = vrot.slane %v1138, 1
      %v1141 = vor.u32 %v1136, %v1140
      %v1143 = vshll.u32 %v998, 16
      %v1145 = vrot.slane %v1143, 1
      %v1146 = vsel %vm537, %v1141, %v1145
      %v1148 = vshrl.u32 %v935, 16
      %v1150 = vshll.u32 %v935, 16
      %v1152 = vrot.slane %v1150, 1
      %v1153 = vor.u32 %v1148, %v1152
      %v1155 = vshll.u32 %v999, 16
      %v1157 = vrot.slane %v1155, 1
      %v1158 = vsel %vm537, %v1153, %v1157
      %v1160 = vshrl.u32 %v936, 16
      %v1162 = vshll.u32 %v936, 16
      %v1164 = vrot.slane %v1162, 1
      %v1165 = vor.u32 %v1160, %v1164
      %v1167 = vshll.u32 %v1000, 16
      %v1169 = vrot.slane %v1167, 1
      %v1170 = vsel %vm537, %v1165, %v1169
      %v1172 = vshrl.u32 %v937, 16
      %v1174 = vshll.u32 %v937, 16
      %v1176 = vrot.slane %v1174, 1
      %v1177 = vor.u32 %v1172, %v1176
      %v1179 = vshll.u32 %v1001, 16
      %v1181 = vrot.slane %v1179, 1
      %v1182 = vsel %vm537, %v1177, %v1181
      %v1184 = vshrl.u32 %v938, 16
      %v1186 = vshll.u32 %v938, 16
      %v1188 = vrot.slane %v1186, 1
      %v1189 = vor.u32 %v1184, %v1188
      %v1191 = vshll.u32 %v1002, 16
      %v1193 = vrot.slane %v1191, 1
      %v1194 = vsel %vm537, %v1189, %v1193
      %v1227 = vunpack.c.l.b16 %v312
      %v1228 = vunpack.c.l.b16 %v313
      %v1229 = vunpack.c.l.b16 %v314
      %v1230 = vunpack.c.l.b16 %v315
      %v1231 = vunpack.c.l.b16 %v316
      %v1232 = vunpack.c.l.b16 %v317
      %v1233 = vunpack.c.l.b16 %v318
      %v1234 = vunpack.c.l.b16 %v319
      %v1235 = vunpack.c.l.b16 %v320
      %v1236 = vunpack.c.l.b16 %v321
      %v1237 = vunpack.c.l.b16 %v322
      %v1238 = vunpack.c.l.b16 %v323
      %v1239 = vunpack.c.l.b16 %v324
      %v1240 = vunpack.c.l.b16 %v325
      %v1241 = vunpack.c.l.b16 %v326
      %v1242 = vunpack.c.l.b16 %v327
      %v1243 = vpack.c.b16 %v892, %v1227
      %v1244 = vpack.c.b16 %v894, %v1228
      %v1245 = vpack.c.b16 %v896, %v1229
      %v1246 = vpack.c.b16 %v898, %v1230
      %v1247 = vpack.c.b16 %v900, %v1231
      %v1248 = vpack.c.b16 %v902, %v1232
      %v1249 = vpack.c.b16 %v904, %v1233
      %v1250 = vpack.c.b16 %v906, %v1234
      %v1251 = vpack.c.b16 %v908, %v1235
      %v1252 = vpack.c.b16 %v910, %v1236
      %v1253 = vpack.c.b16 %v912, %v1237
      %v1254 = vpack.c.b16 %v914, %v1238
      %v1255 = vpack.c.b16 %v916, %v1239
      %v1256 = vpack.c.b16 %v918, %v1240
      %v1257 = vpack.c.b16 %v920, %v1241
      %v1258 = vpack.c.b16 %v922, %v1242
      %v1259 = vrot.slane %v1243, 1
      %v1260 = vrot.slane %v987, 1
      %v1261 = vsel %vm794, %v1259, %v1260
      %v1262 = vrot.slane %v1244, 1
      %v1263 = vrot.slane %v988, 1
      %v1264 = vsel %vm794, %v1262, %v1263
      %v1265 = vrot.slane %v1245, 1
      %v1266 = vrot.slane %v989, 1
      %v1267 = vsel %vm794, %v1265, %v1266
      %v1268 = vrot.slane %v1246, 1
      %v1269 = vrot.slane %v990, 1
      %v1270 = vsel %vm794, %v1268, %v1269
      %v1271 = vrot.slane %v1247, 1
      %v1272 = vrot.slane %v991, 1
      %v1273 = vsel %vm794, %v1271, %v1272
      %v1274 = vrot.slane %v1248, 1
      %v1275 = vrot.slane %v992, 1
      %v1276 = vsel %vm794, %v1274, %v1275
      %v1277 = vrot.slane %v1249, 1
      %v1278 = vrot.slane %v993, 1
      %v1279 = vsel %vm794, %v1277, %v1278
      %v1280 = vrot.slane %v1250, 1
      %v1281 = vrot.slane %v994, 1
      %v1282 = vsel %vm794, %v1280, %v1281
      %v1283 = vrot.slane %v1251, 1
      %v1284 = vrot.slane %v995, 1
      %v1285 = vsel %vm794, %v1283, %v1284
      %v1286 = vrot.slane %v1252, 1
      %v1287 = vrot.slane %v996, 1
      %v1288 = vsel %vm794, %v1286, %v1287
      %v1289 = vrot.slane %v1253, 1
      %v1290 = vrot.slane %v997, 1
      %v1291 = vsel %vm794, %v1289, %v1290
      %v1292 = vrot.slane %v1254, 1
      %v1293 = vrot.slane %v998, 1
      %v1294 = vsel %vm794, %v1292, %v1293
      %v1295 = vrot.slane %v1255, 1
      %v1296 = vrot.slane %v999, 1
      %v1297 = vsel %vm794, %v1295, %v1296
      %v1298 = vrot.slane %v1256, 1
      %v1299 = vrot.slane %v1000, 1
      %v1300 = vsel %vm794, %v1298, %v1299
      %v1301 = vrot.slane %v1257, 1
      %v1302 = vrot.slane %v1001, 1
      %v1303 = vsel %vm794, %v1301, %v1302
      %v1304 = vrot.slane %v1258, 1
      %v1305 = vrot.slane %v1002, 1
      %v1306 = vsel %vm794, %v1304, %v1305
      %v1355 = vunpack.c.l.b16 %v329
      %v1356 = vunpack.c.l.b16 %v330
      %v1357 = vunpack.c.l.b16 %v331
      %v1358 = vunpack.c.l.b16 %v332
      %v1359 = vunpack.c.l.b16 %v333
      %v1360 = vunpack.c.l.b16 %v334
      %v1361 = vunpack.c.l.b16 %v335
      %v1362 = vunpack.c.l.b16 %v336
      %v1363 = vunpack.c.l.b16 %v337
      %v1364 = vunpack.c.l.b16 %v338
      %v1365 = vunpack.c.l.b16 %v339
      %v1366 = vunpack.c.l.b16 %v340
      %v1367 = vunpack.c.l.b16 %v341
      %v1368 = vunpack.c.l.b16 %v342
      %v1369 = vunpack.c.l.b16 %v343
      %v1370 = vunpack.c.l.b16 %v344
      %v1371 = vunpack.c.l.b16 %v345
      %v1372 = vunpack.c.l.b16 %v346
      %v1373 = vunpack.c.l.b16 %v347
      %v1374 = vunpack.c.l.b16 %v348
      %v1375 = vunpack.c.l.b16 %v349
      %v1376 = vunpack.c.l.b16 %v350
      %v1377 = vunpack.c.l.b16 %v351
      %v1378 = vunpack.c.l.b16 %v352
      %v1379 = vunpack.c.l.b16 %v353
      %v1380 = vunpack.c.l.b16 %v354
      %v1381 = vunpack.c.l.b16 %v355
      %v1382 = vunpack.c.l.b16 %v356
      %v1383 = vunpack.c.l.b16 %v357
      %v1384 = vunpack.c.l.b16 %v358
      %v1385 = vunpack.c.l.b16 %v359
      %v1386 = vunpack.c.l.b16 %v360
      %v1387 = vpack.c.b16 %v1356, %v1355
      %v1388 = vpack.c.b16 %v1358, %v1357
      %v1389 = vpack.c.b16 %v1360, %v1359
      %v1390 = vpack.c.b16 %v1362, %v1361
      %v1391 = vpack.c.b16 %v1364, %v1363
      %v1392 = vpack.c.b16 %v1366, %v1365
      %v1393 = vpack.c.b16 %v1368, %v1367
      %v1394 = vpack.c.b16 %v1370, %v1369
      %v1395 = vpack.c.b16 %v1372, %v1371
      %v1396 = vpack.c.b16 %v1374, %v1373
      %v1397 = vpack.c.b16 %v1376, %v1375
      %v1398 = vpack.c.b16 %v1378, %v1377
      %v1399 = vpack.c.b16 %v1380, %v1379
      %v1400 = vpack.c.b16 %v1382, %v1381
      %v1401 = vpack.c.b16 %v1384, %v1383
      %v1402 = vpack.c.b16 %v1386, %v1385
      %v1435 = vunpack.c.l.b16 %v361
      %v1436 = vunpack.c.l.b16 %v362
      %v1437 = vunpack.c.l.b16 %v363
      %v1438 = vunpack.c.l.b16 %v364
      %v1439 = vunpack.c.l.b16 %v365
      %v1440 = vunpack.c.l.b16 %v366
      %v1441 = vunpack.c.l.b16 %v367
      %v1442 = vunpack.c.l.b16 %v368
      %v1443 = vunpack.c.l.b16 %v369
      %v1444 = vunpack.c.l.b16 %v370
      %v1445 = vunpack.c.l.b16 %v371
      %v1446 = vunpack.c.l.b16 %v372
      %v1447 = vunpack.c.l.b16 %v373
      %v1448 = vunpack.c.l.b16 %v374
      %v1449 = vunpack.c.l.b16 %v375
      %v1450 = vunpack.c.l.b16 %v376
      %v1451 = vpack.c.b16 %v1435, %v1435
      %v1452 = vpack.c.b16 %v1436, %v1436
      %v1453 = vpack.c.b16 %v1437, %v1437
      %v1454 = vpack.c.b16 %v1438, %v1438
      %v1455 = vpack.c.b16 %v1439, %v1439
      %v1456 = vpack.c.b16 %v1440, %v1440
      %v1457 = vpack.c.b16 %v1441, %v1441
      %v1458 = vpack.c.b16 %v1442, %v1442
      %v1459 = vpack.c.b16 %v1443, %v1443
      %v1460 = vpack.c.b16 %v1444, %v1444
      %v1461 = vpack.c.b16 %v1445, %v1445
      %v1462 = vpack.c.b16 %v1446, %v1446
      %v1463 = vpack.c.b16 %v1447, %v1447
      %v1464 = vpack.c.b16 %v1448, %v1448
      %v1465 = vpack.c.b16 %v1449, %v1449
      %v1466 = vpack.c.b16 %v1450, %v1450
      %v1468 = vshrl.u32 %v1387, 16
      %v1470 = vshll.u32 %v1387, 16
      %v1472 = vrot.slane %v1470, 1
      %v1473 = vor.u32 %v1468, %v1472
      %v1475 = vshll.u32 %v1451, 16
      %v1477 = vrot.slane %v1475, 1
      %v1478 = vsel %vm537, %v1473, %v1477
      %v1480 = vshrl.u32 %v1388, 16
      %v1482 = vshll.u32 %v1388, 16
      %v1484 = vrot.slane %v1482, 1
      %v1485 = vor.u32 %v1480, %v1484
      %v1487 = vshll.u32 %v1452, 16
      %v1489 = vrot.slane %v1487, 1
      %v1490 = vsel %vm537, %v1485, %v1489
      %v1492 = vshrl.u32 %v1389, 16
      %v1494 = vshll.u32 %v1389, 16
      %v1496 = vrot.slane %v1494, 1
      %v1497 = vor.u32 %v1492, %v1496
      %v1499 = vshll.u32 %v1453, 16
      %v1501 = vrot.slane %v1499, 1
      %v1502 = vsel %vm537, %v1497, %v1501
      %v1504 = vshrl.u32 %v1390, 16
      %v1506 = vshll.u32 %v1390, 16
      %v1508 = vrot.slane %v1506, 1
      %v1509 = vor.u32 %v1504, %v1508
      %v1511 = vshll.u32 %v1454, 16
      %v1513 = vrot.slane %v1511, 1
      %v1514 = vsel %vm537, %v1509, %v1513
      %v1516 = vshrl.u32 %v1391, 16
      %v1518 = vshll.u32 %v1391, 16
      %v1520 = vrot.slane %v1518, 1
      %v1521 = vor.u32 %v1516, %v1520
      %v1523 = vshll.u32 %v1455, 16
      %v1525 = vrot.slane %v1523, 1
      %v1526 = vsel %vm537, %v1521, %v1525
      %v1528 = vshrl.u32 %v1392, 16
      %v1530 = vshll.u32 %v1392, 16
      %v1532 = vrot.slane %v1530, 1
      %v1533 = vor.u32 %v1528, %v1532
      %v1535 = vshll.u32 %v1456, 16
      %v1537 = vrot.slane %v1535, 1
      %v1538 = vsel %vm537, %v1533, %v1537
      %v1540 = vshrl.u32 %v1393, 16
      %v1542 = vshll.u32 %v1393, 16
      %v1544 = vrot.slane %v1542, 1
      %v1545 = vor.u32 %v1540, %v1544
      %v1547 = vshll.u32 %v1457, 16
      %v1549 = vrot.slane %v1547, 1
      %v1550 = vsel %vm537, %v1545, %v1549
      %v1552 = vshrl.u32 %v1394, 16
      %v1554 = vshll.u32 %v1394, 16
      %v1556 = vrot.slane %v1554, 1
      %v1557 = vor.u32 %v1552, %v1556
      %v1559 = vshll.u32 %v1458, 16
      %v1561 = vrot.slane %v1559, 1
      %v1562 = vsel %vm537, %v1557, %v1561
      %v1564 = vshrl.u32 %v1395, 16
      %v1566 = vshll.u32 %v1395, 16
      %v1568 = vrot.slane %v1566, 1
      %v1569 = vor.u32 %v1564, %v1568
      %v1571 = vshll.u32 %v1459, 16
      %v1573 = vrot.slane %v1571, 1
      %v1574 = vsel %vm537, %v1569, %v1573
      %v1576 = vshrl.u32 %v1396, 16
      %v1578 = vshll.u32 %v1396, 16
      %v1580 = vrot.slane %v1578, 1
      %v1581 = vor.u32 %v1576, %v1580
      %v1583 = vshll.u32 %v1460, 16
      %v1585 = vrot.slane %v1583, 1
      %v1586 = vsel %vm537, %v1581, %v1585
      %v1588 = vshrl.u32 %v1397, 16
      %v1590 = vshll.u32 %v1397, 16
      %v1592 = vrot.slane %v1590, 1
      %v1593 = vor.u32 %v1588, %v1592
      %v1595 = vshll.u32 %v1461, 16
      %v1597 = vrot.slane %v1595, 1
      %v1598 = vsel %vm537, %v1593, %v1597
      %v1600 = vshrl.u32 %v1398, 16
      %v1602 = vshll.u32 %v1398, 16
      %v1604 = vrot.slane %v1602, 1
      %v1605 = vor.u32 %v1600, %v1604
      %v1607 = vshll.u32 %v1462, 16
      %v1609 = vrot.slane %v1607, 1
      %v1610 = vsel %vm537, %v1605, %v1609
      %v1612 = vshrl.u32 %v1399, 16
      %v1614 = vshll.u32 %v1399, 16
      %v1616 = vrot.slane %v1614, 1
      %v1617 = vor.u32 %v1612, %v1616
      %v1619 = vshll.u32 %v1463, 16
      %v1621 = vrot.slane %v1619, 1
      %v1622 = vsel %vm537, %v1617, %v1621
      %v1624 = vshrl.u32 %v1400, 16
      %v1626 = vshll.u32 %v1400, 16
      %v1628 = vrot.slane %v1626, 1
      %v1629 = vor.u32 %v1624, %v1628
      %v1631 = vshll.u32 %v1464, 16
      %v1633 = vrot.slane %v1631, 1
      %v1634 = vsel %vm537, %v1629, %v1633
      %v1636 = vshrl.u32 %v1401, 16
      %v1638 = vshll.u32 %v1401, 16
      %v1640 = vrot.slane %v1638, 1
      %v1641 = vor.u32 %v1636, %v1640
      %v1643 = vshll.u32 %v1465, 16
      %v1645 = vrot.slane %v1643, 1
      %v1646 = vsel %vm537, %v1641, %v1645
      %v1648 = vshrl.u32 %v1402, 16
      %v1650 = vshll.u32 %v1402, 16
      %v1652 = vrot.slane %v1650, 1
      %v1653 = vor.u32 %v1648, %v1652
      %v1655 = vshll.u32 %v1466, 16
      %v1657 = vrot.slane %v1655, 1
      %v1658 = vsel %vm537, %v1653, %v1657
      %v1691 = vunpack.c.l.b16 %v377
      %v1692 = vunpack.c.l.b16 %v378
      %v1693 = vunpack.c.l.b16 %v379
      %v1694 = vunpack.c.l.b16 %v380
      %v1695 = vunpack.c.l.b16 %v381
      %v1696 = vunpack.c.l.b16 %v382
      %v1697 = vunpack.c.l.b16 %v383
      %v1698 = vunpack.c.l.b16 %v384
      %v1699 = vunpack.c.l.b16 %v385
      %v1700 = vunpack.c.l.b16 %v386
      %v1701 = vunpack.c.l.b16 %v387
      %v1702 = vunpack.c.l.b16 %v388
      %v1703 = vunpack.c.l.b16 %v389
      %v1704 = vunpack.c.l.b16 %v390
      %v1705 = vunpack.c.l.b16 %v391
      %v1706 = vunpack.c.l.b16 %v392
      %v1707 = vpack.c.b16 %v1356, %v1691
      %v1708 = vpack.c.b16 %v1358, %v1692
      %v1709 = vpack.c.b16 %v1360, %v1693
      %v1710 = vpack.c.b16 %v1362, %v1694
      %v1711 = vpack.c.b16 %v1364, %v1695
      %v1712 = vpack.c.b16 %v1366, %v1696
      %v1713 = vpack.c.b16 %v1368, %v1697
      %v1714 = vpack.c.b16 %v1370, %v1698
      %v1715 = vpack.c.b16 %v1372, %v1699
      %v1716 = vpack.c.b16 %v1374, %v1700
      %v1717 = vpack.c.b16 %v1376, %v1701
      %v1718 = vpack.c.b16 %v1378, %v1702
      %v1719 = vpack.c.b16 %v1380, %v1703
      %v1720 = vpack.c.b16 %v1382, %v1704
      %v1721 = vpack.c.b16 %v1384, %v1705
      %v1722 = vpack.c.b16 %v1386, %v1706
      %v1723 = vrot.slane %v1707, 1
      %v1724 = vrot.slane %v1451, 1
      %v1725 = vsel %vm794, %v1723, %v1724
      %v1726 = vrot.slane %v1708, 1
      %v1727 = vrot.slane %v1452, 1
      %v1728 = vsel %vm794, %v1726, %v1727
      %v1729 = vrot.slane %v1709, 1
      %v1730 = vrot.slane %v1453, 1
      %v1731 = vsel %vm794, %v1729, %v1730
      %v1732 = vrot.slane %v1710, 1
      %v1733 = vrot.slane %v1454, 1
      %v1734 = vsel %vm794, %v1732, %v1733
      %v1735 = vrot.slane %v1711, 1
      %v1736 = vrot.slane %v1455, 1
      %v1737 = vsel %vm794, %v1735, %v1736
      %v1738 = vrot.slane %v1712, 1
      %v1739 = vrot.slane %v1456, 1
      %v1740 = vsel %vm794, %v1738, %v1739
      %v1741 = vrot.slane %v1713, 1
      %v1742 = vrot.slane %v1457, 1
      %v1743 = vsel %vm794, %v1741, %v1742
      %v1744 = vrot.slane %v1714, 1
      %v1745 = vrot.slane %v1458, 1
      %v1746 = vsel %vm794, %v1744, %v1745
      %v1747 = vrot.slane %v1715, 1
      %v1748 = vrot.slane %v1459, 1
      %v1749 = vsel %vm794, %v1747, %v1748
      %v1750 = vrot.slane %v1716, 1
      %v1751 = vrot.slane %v1460, 1
      %v1752 = vsel %vm794, %v1750, %v1751
      %v1753 = vrot.slane %v1717, 1
      %v1754 = vrot.slane %v1461, 1
      %v1755 = vsel %vm794, %v1753, %v1754
      %v1756 = vrot.slane %v1718, 1
      %v1757 = vrot.slane %v1462, 1
      %v1758 = vsel %vm794, %v1756, %v1757
      %v1759 = vrot.slane %v1719, 1
      %v1760 = vrot.slane %v1463, 1
      %v1761 = vsel %vm794, %v1759, %v1760
      %v1762 = vrot.slane %v1720, 1
      %v1763 = vrot.slane %v1464, 1
      %v1764 = vsel %vm794, %v1762, %v1763
      %v1765 = vrot.slane %v1721, 1
      %v1766 = vrot.slane %v1465, 1
      %v1767 = vsel %vm794, %v1765, %v1766
      %v1768 = vrot.slane %v1722, 1
      %v1769 = vrot.slane %v1466, 1
      %v1770 = vsel %vm794, %v1768, %v1769
      %v1787 = vld [vmem:[%s1] sm:$0xf]
      %v1788 = vld [vmem:[%s1 + $0x4] sm:$0xf]
      %v1789 = vld [vmem:[%s1 + $0x8] sm:$0xf]
      %v1790 = vld [vmem:[%s1 + $0xc] sm:$0xf]
      %v1791 = vld [vmem:[%s1 + $0x10] sm:$0xf]
      %v1792 = vld [vmem:[%s1 + $0x14] sm:$0xf]
      %v1793 = vld [vmem:[%s1 + $0x18] sm:$0xf]
      %v1794 = vld [vmem:[%s1 + $0x1c] sm:$0xf]
      %v1795 = vld [vmem:[%s1 + $0x20] sm:$0xf]
      %v1796 = vld [vmem:[%s1 + $0x24] sm:$0xf]
      %v1797 = vld [vmem:[%s1 + $0x28] sm:$0xf]
      %v1798 = vld [vmem:[%s1 + $0x2c] sm:$0xf]
      %v1799 = vld [vmem:[%s1 + $0x30] sm:$0xf]
      %v1800 = vld [vmem:[%s1 + $0x34] sm:$0xf]
      %v1801 = vld [vmem:[%s1 + $0x38] sm:$0xf]
      %v1802 = vld [vmem:[%s1 + $0x3c] sm:$0xf]
      %v1803 = vld [vmem:[%s1 + $0x40] sm:$0xf]
      %v1804 = vld [vmem:[%s1 + $0x44] sm:$0xf]
      %v1805 = vld [vmem:[%s1 + $0x48] sm:$0xf]
      %v1806 = vld [vmem:[%s1 + $0x4c] sm:$0xf]
      %v1807 = vld [vmem:[%s1 + $0x50] sm:$0xf]
      %v1808 = vld [vmem:[%s1 + $0x54] sm:$0xf]
      %v1809 = vld [vmem:[%s1 + $0x58] sm:$0xf]
      %v1810 = vld [vmem:[%s1 + $0x5c] sm:$0xf]
      %v1811 = vld [vmem:[%s1 + $0x60] sm:$0xf]
      %v1812 = vld [vmem:[%s1 + $0x64] sm:$0xf]
      %v1813 = vld [vmem:[%s1 + $0x68] sm:$0xf]
      %v1814 = vld [vmem:[%s1 + $0x6c] sm:$0xf]
      %v1815 = vld [vmem:[%s1 + $0x70] sm:$0xf]
      %v1816 = vld [vmem:[%s1 + $0x74] sm:$0xf]
      %v1817 = vld [vmem:[%s1 + $0x78] sm:$0xf]
      %v1818 = vld [vmem:[%s1 + $0x7c] sm:$0xf]
      %v1819 = vld [vmem:[%s1 + $0x80] sm:$0xf]
      %v1820 = vld [vmem:[%s1 + $0x84] sm:$0xf]
      %v1821 = vld [vmem:[%s1 + $0x88] sm:$0xf]
      %v1822 = vld [vmem:[%s1 + $0x8c] sm:$0xf]
      %v1823 = vld [vmem:[%s1 + $0x90] sm:$0xf]
      %v1824 = vld [vmem:[%s1 + $0x94] sm:$0xf]
      %v1825 = vld [vmem:[%s1 + $0x98] sm:$0xf]
      %v1826 = vld [vmem:[%s1 + $0x9c] sm:$0xf]
      %v1827 = vld [vmem:[%s1 + $0xa0] sm:$0xf]
      %v1828 = vld [vmem:[%s1 + $0xa4] sm:$0xf]
      %v1829 = vld [vmem:[%s1 + $0xa8] sm:$0xf]
      %v1830 = vld [vmem:[%s1 + $0xac] sm:$0xf]
      %v1831 = vld [vmem:[%s1 + $0xb0] sm:$0xf]
      %v1832 = vld [vmem:[%s1 + $0xb4] sm:$0xf]
      %v1833 = vld [vmem:[%s1 + $0xb8] sm:$0xf]
      %v1834 = vld [vmem:[%s1 + $0xbc] sm:$0xf]
      %v1835 = vld [vmem:[%s1 + $0xc0] sm:$0xf]
      %v1836 = vld [vmem:[%s1 + $0xc4] sm:$0xf]
      %v1837 = vld [vmem:[%s1 + $0xc8] sm:$0xf]
      %v1838 = vld [vmem:[%s1 + $0xcc] sm:$0xf]
      %v1839 = vld [vmem:[%s1 + $0xd0] sm:$0xf]
      %v1840 = vld [vmem:[%s1 + $0xd4] sm:$0xf]
      %v1841 = vld [vmem:[%s1 + $0xd8] sm:$0xf]
      %v1842 = vld [vmem:[%s1 + $0xdc] sm:$0xf]
      %v1843 = vld [vmem:[%s1 + $0xe0] sm:$0xf]
      %v1844 = vld [vmem:[%s1 + $0xe4] sm:$0xf]
      %v1845 = vld [vmem:[%s1 + $0xe8] sm:$0xf]
      %v1846 = vld [vmem:[%s1 + $0xec] sm:$0xf]
      %v1847 = vld [vmem:[%s1 + $0xf0] sm:$0xf]
      %v1848 = vld [vmem:[%s1 + $0xf4] sm:$0xf]
      %v1849 = vld [vmem:[%s1 + $0xf8] sm:$0xf]
      %v1850 = vld [vmem:[%s1 + $0xfc] sm:$0xf]
      %v1851 = vld [vmem:[%s1 + $0x100] sm:$0xf]
      %v1852 = vld [vmem:[%s1 + $0x104] sm:$0xf]
      %v1853 = vld [vmem:[%s1 + $0x108] sm:$0xf]
      %v1854 = vld [vmem:[%s1 + $0x10c] sm:$0xf]
      %v1855 = vld [vmem:[%s1 + $0x110] sm:$0xf]
      %v1856 = vld [vmem:[%s1 + $0x114] sm:$0xf]
      %v1857 = vld [vmem:[%s1 + $0x118] sm:$0xf]
      %v1858 = vld [vmem:[%s1 + $0x11c] sm:$0xf]
      %v1859 = vld [vmem:[%s1 + $0x120] sm:$0xf]
      %v1860 = vld [vmem:[%s1 + $0x124] sm:$0xf]
      %v1861 = vld [vmem:[%s1 + $0x128] sm:$0xf]
      %v1862 = vld [vmem:[%s1 + $0x12c] sm:$0xf]
      %v1863 = vld [vmem:[%s1 + $0x130] sm:$0xf]
      %v1864 = vld [vmem:[%s1 + $0x134] sm:$0xf]
      %v1865 = vld [vmem:[%s1 + $0x138] sm:$0xf]
      %v1866 = vld [vmem:[%s1 + $0x13c] sm:$0xf]
      %v1867 = vld [vmem:[%s1 + $0x140] sm:$0xf]
      %v1868 = vld [vmem:[%s1 + $0x144] sm:$0xf]
      %v1869 = vld [vmem:[%s1 + $0x148] sm:$0xf]
      %v1870 = vld [vmem:[%s1 + $0x14c] sm:$0xf]
      %v1871 = vld [vmem:[%s1 + $0x150] sm:$0xf]
      %v1872 = vld [vmem:[%s1 + $0x154] sm:$0xf]
      %v1873 = vld [vmem:[%s1 + $0x158] sm:$0xf]
      %v1874 = vld [vmem:[%s1 + $0x15c] sm:$0xf]
      %v1875 = vld [vmem:[%s1 + $0x160] sm:$0xf]
      %v1876 = vld [vmem:[%s1 + $0x164] sm:$0xf]
      %v1877 = vld [vmem:[%s1 + $0x168] sm:$0xf]
      %v1878 = vld [vmem:[%s1 + $0x16c] sm:$0xf]
      %v1879 = vld [vmem:[%s1 + $0x170] sm:$0xf]
      %v1880 = vld [vmem:[%s1 + $0x174] sm:$0xf]
      %v1881 = vld [vmem:[%s1 + $0x178] sm:$0xf]
      %v1882 = vld [vmem:[%s1 + $0x17c] sm:$0xf]
      %v1883 = vld [vmem:[%s1 + $0x180] sm:$0xf]
      %v1884 = vld [vmem:[%s1 + $0x184] sm:$0xf]
      %v1885 = vld [vmem:[%s1 + $0x188] sm:$0xf]
      %v1886 = vld [vmem:[%s1 + $0x18c] sm:$0xf]
      %v1887 = vld [vmem:[%s1 + $0x190] sm:$0xf]
      %v1888 = vld [vmem:[%s1 + $0x194] sm:$0xf]
      %v1889 = vld [vmem:[%s1 + $0x198] sm:$0xf]
      %v1890 = vld [vmem:[%s1 + $0x19c] sm:$0xf]
      %v1891 = vld [vmem:[%s1 + $0x1a0] sm:$0xf]
      %v1892 = vld [vmem:[%s1 + $0x1a4] sm:$0xf]
      %v1893 = vld [vmem:[%s1 + $0x1a8] sm:$0xf]
      %v1894 = vld [vmem:[%s1 + $0x1ac] sm:$0xf]
      %v1895 = vld [vmem:[%s1 + $0x1b0] sm:$0xf]
      %v1896 = vld [vmem:[%s1 + $0x1b4] sm:$0xf]
      %v1897 = vld [vmem:[%s1 + $0x1b8] sm:$0xf]
      %v1898 = vld [vmem:[%s1 + $0x1bc] sm:$0xf]
      %v1899 = vld [vmem:[%s1 + $0x1c0] sm:$0xf]
      %v1900 = vld [vmem:[%s1 + $0x1c4] sm:$0xf]
      %v1901 = vld [vmem:[%s1 + $0x1c8] sm:$0xf]
      %v1902 = vld [vmem:[%s1 + $0x1cc] sm:$0xf]
      %v1903 = vld [vmem:[%s1 + $0x1d0] sm:$0xf]
      %v1904 = vld [vmem:[%s1 + $0x1d4] sm:$0xf]
      %v1905 = vld [vmem:[%s1 + $0x1d8] sm:$0xf]
      %v1906 = vld [vmem:[%s1 + $0x1dc] sm:$0xf]
      %v1907 = vld [vmem:[%s1 + $0x1e0] sm:$0xf]
      %v1908 = vld [vmem:[%s1 + $0x1e4] sm:$0xf]
      %v1909 = vld [vmem:[%s1 + $0x1e8] sm:$0xf]
      %v1910 = vld [vmem:[%s1 + $0x1ec] sm:$0xf]
      %v1911 = vld [vmem:[%s1 + $0x1f0] sm:$0xf]
      %v1912 = vld [vmem:[%s1 + $0x1f4] sm:$0xf]
      %v1913 = vld [vmem:[%s1 + $0x1f8] sm:$0xf]
      %v1914 = vld [vmem:[%s1 + $0x1fc] sm:$0xf]
      %v1915 = vld [vmem:[%s1 + $0x200] sm:$0xf]
      %v1916 = vld [vmem:[%s1 + $0x204] sm:$0xf]
      %v1917 = vld [vmem:[%s1 + $0x208] sm:$0xf]
      %v1918 = vld [vmem:[%s1 + $0x20c] sm:$0xf]
      %v1919 = vld [vmem:[%s1 + $0x210] sm:$0xf]
      %v1920 = vld [vmem:[%s1 + $0x214] sm:$0xf]
      %v1921 = vld [vmem:[%s1 + $0x218] sm:$0xf]
      %v1922 = vld [vmem:[%s1 + $0x21c] sm:$0xf]
      %v1923 = vld [vmem:[%s1 + $0x220] sm:$0xf]
      %v1924 = vld [vmem:[%s1 + $0x224] sm:$0xf]
      %v1925 = vld [vmem:[%s1 + $0x228] sm:$0xf]
      %v1926 = vld [vmem:[%s1 + $0x22c] sm:$0xf]
      %v1927 = vld [vmem:[%s1 + $0x230] sm:$0xf]
      %v1928 = vld [vmem:[%s1 + $0x234] sm:$0xf]
      %v1929 = vld [vmem:[%s1 + $0x238] sm:$0xf]
      %v1930 = vld [vmem:[%s1 + $0x23c] sm:$0xf]
      %v1931 = vld [vmem:[%s3] sm:$0x1]
      %v1932 = vlaneseq
      %v1933 = vshrl.u32 %v1932, 7
      %v1934 = vsub.s32 0, %v1933
      %v1935 = vrot.slane %v1931, %v1934
      %v2080 = vunpack.c.l.b16 %v1787
      %v2081 = vunpack.c.l.b16 %v1788
      %v2082 = vunpack.c.l.b16 %v1789
      %v2083 = vunpack.c.l.b16 %v1790
      %v2084 = vunpack.c.l.b16 %v1791
      %v2085 = vunpack.c.l.b16 %v1792
      %v2086 = vunpack.c.l.b16 %v1793
      %v2087 = vunpack.c.l.b16 %v1794
      %v2088 = vunpack.c.l.b16 %v1795
      %v2089 = vunpack.c.l.b16 %v1796
      %v2090 = vunpack.c.l.b16 %v1797
      %v2091 = vunpack.c.l.b16 %v1798
      %v2092 = vunpack.c.l.b16 %v1799
      %v2093 = vunpack.c.l.b16 %v1800
      %v2094 = vunpack.c.l.b16 %v1801
      %v2095 = vunpack.c.l.b16 %v1802
      %v2096 = vunpack.c.l.b16 %v1803
      %v2097 = vunpack.c.l.b16 %v1804
      %v2098 = vunpack.c.l.b16 %v1805
      %v2099 = vunpack.c.l.b16 %v1806
      %v2100 = vunpack.c.l.b16 %v1807
      %v2101 = vunpack.c.l.b16 %v1808
      %v2102 = vunpack.c.l.b16 %v1809
      %v2103 = vunpack.c.l.b16 %v1810
      %v2104 = vunpack.c.l.b16 %v1811
      %v2105 = vunpack.c.l.b16 %v1812
      %v2106 = vunpack.c.l.b16 %v1813
      %v2107 = vunpack.c.l.b16 %v1814
      %v2108 = vunpack.c.l.b16 %v1815
      %v2109 = vunpack.c.l.b16 %v1816
      %v2110 = vunpack.c.l.b16 %v1817
      %v2111 = vunpack.c.l.b16 %v1818
      %v2112 = vunpack.c.l.b16 %v1819
      %v2113 = vunpack.c.l.b16 %v1820
      %v2114 = vunpack.c.l.b16 %v1821
      %v2115 = vunpack.c.l.b16 %v1822
      %v2116 = vunpack.c.l.b16 %v1823
      %v2117 = vunpack.c.l.b16 %v1824
      %v2118 = vunpack.c.l.b16 %v1825
      %v2119 = vunpack.c.l.b16 %v1826
      %v2120 = vunpack.c.l.b16 %v1827
      %v2121 = vunpack.c.l.b16 %v1828
      %v2122 = vunpack.c.l.b16 %v1829
      %v2123 = vunpack.c.l.b16 %v1830
      %v2124 = vunpack.c.l.b16 %v1831
      %v2125 = vunpack.c.l.b16 %v1832
      %v2126 = vunpack.c.l.b16 %v1833
      %v2127 = vunpack.c.l.b16 %v1834
      %v2128 = vunpack.c.l.b16 %v1835
      %v2129 = vunpack.c.l.b16 %v1836
      %v2130 = vunpack.c.l.b16 %v1837
      %v2131 = vunpack.c.l.b16 %v1838
      %v2132 = vunpack.c.l.b16 %v1839
      %v2133 = vunpack.c.l.b16 %v1840
      %v2134 = vunpack.c.l.b16 %v1841
      %v2135 = vunpack.c.l.b16 %v1842
      %v2136 = vunpack.c.l.b16 %v1843
      %v2137 = vunpack.c.l.b16 %v1844
      %v2138 = vunpack.c.l.b16 %v1845
      %v2139 = vunpack.c.l.b16 %v1846
      %v2140 = vunpack.c.l.b16 %v1847
      %v2141 = vunpack.c.l.b16 %v1848
      %v2142 = vunpack.c.l.b16 %v1849
      %v2143 = vunpack.c.l.b16 %v1850
      %v2144 = vunpack.c.l.b16 %v1851
      %v2145 = vunpack.c.l.b16 %v1852
      %v2146 = vunpack.c.l.b16 %v1853
      %v2147 = vunpack.c.l.b16 %v1854
      %v2148 = vunpack.c.l.b16 %v1855
      %v2149 = vunpack.c.l.b16 %v1856
      %v2150 = vunpack.c.l.b16 %v1857
      %v2151 = vunpack.c.l.b16 %v1858
      %v2152 = vunpack.c.l.b16 %v1859
      %v2153 = vunpack.c.l.b16 %v1860
      %v2154 = vunpack.c.l.b16 %v1861
      %v2155 = vunpack.c.l.b16 %v1862
      %v2156 = vunpack.c.l.b16 %v1863
      %v2157 = vunpack.c.l.b16 %v1864
      %v2158 = vunpack.c.l.b16 %v1865
      %v2159 = vunpack.c.l.b16 %v1866
      %v2160 = vunpack.c.l.b16 %v1867
      %v2161 = vunpack.c.l.b16 %v1868
      %v2162 = vunpack.c.l.b16 %v1869
      %v2163 = vunpack.c.l.b16 %v1870
      %v2164 = vunpack.c.l.b16 %v1871
      %v2165 = vunpack.c.l.b16 %v1872
      %v2166 = vunpack.c.l.b16 %v1873
      %v2167 = vunpack.c.l.b16 %v1874
      %v2168 = vunpack.c.l.b16 %v1875
      %v2169 = vunpack.c.l.b16 %v1876
      %v2170 = vunpack.c.l.b16 %v1877
      %v2171 = vunpack.c.l.b16 %v1878
      %v2172 = vunpack.c.l.b16 %v1879
      %v2173 = vunpack.c.l.b16 %v1880
      %v2174 = vunpack.c.l.b16 %v1881
      %v2175 = vunpack.c.l.b16 %v1882
      %v2176 = vunpack.c.l.b16 %v1883
      %v2177 = vunpack.c.l.b16 %v1884
      %v2178 = vunpack.c.l.b16 %v1885
      %v2179 = vunpack.c.l.b16 %v1886
      %v2180 = vunpack.c.l.b16 %v1887
      %v2181 = vunpack.c.l.b16 %v1888
      %v2182 = vunpack.c.l.b16 %v1889
      %v2183 = vunpack.c.l.b16 %v1890
      %v2184 = vunpack.c.l.b16 %v1891
      %v2185 = vunpack.c.l.b16 %v1892
      %v2186 = vunpack.c.l.b16 %v1893
      %v2187 = vunpack.c.l.b16 %v1894
      %v2188 = vunpack.c.l.b16 %v1895
      %v2189 = vunpack.c.l.b16 %v1896
      %v2190 = vunpack.c.l.b16 %v1897
      %v2191 = vunpack.c.l.b16 %v1898
      %v2192 = vunpack.c.l.b16 %v1899
      %v2193 = vunpack.c.l.b16 %v1900
      %v2194 = vunpack.c.l.b16 %v1901
      %v2195 = vunpack.c.l.b16 %v1902
      %v2196 = vunpack.c.l.b16 %v1903
      %v2197 = vunpack.c.l.b16 %v1904
      %v2198 = vunpack.c.l.b16 %v1905
      %v2199 = vunpack.c.l.b16 %v1906
      %v2200 = vunpack.c.l.b16 %v1907
      %v2201 = vunpack.c.l.b16 %v1908
      %v2202 = vunpack.c.l.b16 %v1909
      %v2203 = vunpack.c.l.b16 %v1910
      %v2204 = vunpack.c.l.b16 %v1911
      %v2205 = vunpack.c.l.b16 %v1912
      %v2206 = vunpack.c.l.b16 %v1913
      %v2207 = vunpack.c.l.b16 %v1914
      %v2208 = vunpack.c.l.b16 %v1915
      %v2209 = vunpack.c.l.b16 %v1916
      %v2210 = vunpack.c.l.b16 %v1917
      %v2211 = vunpack.c.l.b16 %v1918
      %v2212 = vunpack.c.l.b16 %v1919
      %v2213 = vunpack.c.l.b16 %v1920
      %v2214 = vunpack.c.l.b16 %v1921
      %v2215 = vunpack.c.l.b16 %v1922
      %v2216 = vunpack.c.l.b16 %v1923
      %v2217 = vunpack.c.l.b16 %v1924
      %v2218 = vunpack.c.l.b16 %v1925
      %v2219 = vunpack.c.l.b16 %v1926
      %v2220 = vunpack.c.l.b16 %v1927
      %v2221 = vunpack.c.l.b16 %v1928
      %v2222 = vunpack.c.l.b16 %v1929
      %v2223 = vunpack.c.l.b16 %v1930
      %v2224 = vpack.c.b16 %v2081, %v2080
      %v2225 = vpack.c.b16 %v2083, %v2082
      %v2226 = vpack.c.b16 %v2085, %v2084
      %v2227 = vpack.c.b16 %v2087, %v2086
      %v2228 = vpack.c.b16 %v2089, %v2088
      %v2229 = vpack.c.b16 %v2091, %v2090
      %v2230 = vpack.c.b16 %v2093, %v2092
      %v2231 = vpack.c.b16 %v2095, %v2094
      %v2232 = vpack.c.b16 %v2097, %v2096
      %v2233 = vpack.c.b16 %v2099, %v2098
      %v2234 = vpack.c.b16 %v2101, %v2100
      %v2235 = vpack.c.b16 %v2103, %v2102
      %v2236 = vpack.c.b16 %v2105, %v2104
      %v2237 = vpack.c.b16 %v2107, %v2106
      %v2238 = vpack.c.b16 %v2109, %v2108
      %v2239 = vpack.c.b16 %v2111, %v2110
      %v2240 = vpack.c.b16 %v2113, %v2112
      %v2241 = vpack.c.b16 %v2115, %v2114
      %v2242 = vpack.c.b16 %v2117, %v2116
      %v2243 = vpack.c.b16 %v2119, %v2118
      %v2244 = vpack.c.b16 %v2121, %v2120
      %v2245 = vpack.c.b16 %v2123, %v2122
      %v2246 = vpack.c.b16 %v2125, %v2124
      %v2247 = vpack.c.b16 %v2127, %v2126
      %v2248 = vpack.c.b16 %v2129, %v2128
      %v2249 = vpack.c.b16 %v2131, %v2130
      %v2250 = vpack.c.b16 %v2133, %v2132
      %v2251 = vpack.c.b16 %v2135, %v2134
      %v2252 = vpack.c.b16 %v2137, %v2136
      %v2253 = vpack.c.b16 %v2139, %v2138
      %v2254 = vpack.c.b16 %v2141, %v2140
      %v2255 = vpack.c.b16 %v2143, %v2142
      %v2256 = vpack.c.b16 %v2145, %v2144
      %v2257 = vpack.c.b16 %v2147, %v2146
      %v2258 = vpack.c.b16 %v2149, %v2148
      %v2259 = vpack.c.b16 %v2151, %v2150
      %v2260 = vpack.c.b16 %v2153, %v2152
      %v2261 = vpack.c.b16 %v2155, %v2154
      %v2262 = vpack.c.b16 %v2157, %v2156
      %v2263 = vpack.c.b16 %v2159, %v2158
      %v2264 = vpack.c.b16 %v2161, %v2160
      %v2265 = vpack.c.b16 %v2163, %v2162
      %v2266 = vpack.c.b16 %v2165, %v2164
      %v2267 = vpack.c.b16 %v2167, %v2166
      %v2268 = vpack.c.b16 %v2169, %v2168
      %v2269 = vpack.c.b16 %v2171, %v2170
      %v2270 = vpack.c.b16 %v2173, %v2172
      %v2271 = vpack.c.b16 %v2175, %v2174
      %v2272 = vpack.c.b16 %v2177, %v2176
      %v2273 = vpack.c.b16 %v2179, %v2178
      %v2274 = vpack.c.b16 %v2181, %v2180
      %v2275 = vpack.c.b16 %v2183, %v2182
      %v2276 = vpack.c.b16 %v2185, %v2184
      %v2277 = vpack.c.b16 %v2187, %v2186
      %v2278 = vpack.c.b16 %v2189, %v2188
      %v2279 = vpack.c.b16 %v2191, %v2190
      %v2280 = vpack.c.b16 %v2193, %v2192
      %v2281 = vpack.c.b16 %v2195, %v2194
      %v2282 = vpack.c.b16 %v2197, %v2196
      %v2283 = vpack.c.b16 %v2199, %v2198
      %v2284 = vpack.c.b16 %v2201, %v2200
      %v2285 = vpack.c.b16 %v2203, %v2202
      %v2286 = vpack.c.b16 %v2205, %v2204
      %v2287 = vpack.c.b16 %v2207, %v2206
      %v2288 = vpack.c.b16 %v2209, %v2208
      %v2289 = vpack.c.b16 %v2211, %v2210
      %v2290 = vpack.c.b16 %v2213, %v2212
      %v2291 = vpack.c.b16 %v2215, %v2214
      %v2292 = vpack.c.b16 %v2217, %v2216
      %v2293 = vpack.c.b16 %v2219, %v2218
      %v2294 = vpack.c.b16 %v2221, %v2220
      %v2295 = vpack.c.b16 %v2223, %v2222
      %2368 = vmatprep.subr.bf16.mxu0 0
      %2369 = vmatpush1.bf16.msra.mxu0 %v2231
      %2370 = vmatprep.subr.bf16.mxu0 0
      %2371 = vmatpush1.bf16.msra.mxu0 %v2230
      %2372 = vmatprep.subr.bf16.mxu0 0
      %2373 = vmatpush1.bf16.msra.mxu0 %v2229
      %2374 = vmatprep.subr.bf16.mxu0 0
      %2375 = vmatpush1.bf16.msra.mxu0 %v2228
      %2376 = vmatprep.subr.bf16.mxu0 0
      %2377 = vmatpush1.bf16.msra.mxu0 %v2227
      %2378 = vmatprep.subr.bf16.mxu0 0
      %2379 = vmatpush1.bf16.msra.mxu0 %v2226
      %2380 = vmatprep.subr.bf16.mxu0 0
      %2381 = vmatpush1.bf16.msra.mxu0 %v2225
      %2382 = vmatprep.subr.bf16.mxu0 0
      %2383 = vmatpush1.bf16.msra.mxu0 %v2224
      %2384 = vmatprep.subr.bf16.mxu0 0
      %2385 = vmatpush2.bf16.msra.mxu0 %v2239
      %2386 = vmatprep.subr.bf16.mxu0 0
      %2387 = vmatpush2.bf16.msra.mxu0 %v2238
      %2388 = vmatprep.subr.bf16.mxu0 0
      %2389 = vmatpush2.bf16.msra.mxu0 %v2237
      %2390 = vmatprep.subr.bf16.mxu0 0
      %2391 = vmatpush2.bf16.msra.mxu0 %v2236
      %2392 = vmatprep.subr.bf16.mxu0 0
      %2393 = vmatpush2.bf16.msra.mxu0 %v2235
      %2394 = vmatprep.subr.bf16.mxu0 0
      %2395 = vmatpush2.bf16.msra.mxu0 %v2234
      %2396 = vmatprep.subr.bf16.mxu0 0
      %2397 = vmatpush2.bf16.msra.mxu0 %v2233
      %2398 = vmatprep.subr.bf16.mxu0 0
      %2399 = vmatpush2.bf16.msra.mxu0 %v2232
      %2400 = vmatprep.mubr.bf16.mxu0 %v549
      %2401 = vmatmul.mubr.bf16.gmra.mxu0 %v457
      %v2402 = vpop.f32.mrf.mxu0
      %v2403 = vadd.f32 %v1935, %v2402
      %v2404 = vpop.f32.mrf.mxu0
      %v2405 = vpop.f32.mrf.mxu0
      %v2406 = vadd.f32 %v1935, %v2405
      %v2407 = vpop.f32.mrf.mxu0
      %2408 = vmatprep.mubr.bf16.mxu0 %v561
      %2409 = vmatmul.mubr.bf16.gmra.mxu0 %v458
      %v2410 = vpop.f32.mrf.mxu0
      %v2411 = vadd.f32 %v1935, %v2410
      %v2412 = vpop.f32.mrf.mxu0
      %v2413 = vpop.f32.mrf.mxu0
      %v2414 = vadd.f32 %v1935, %v2413
      %v2415 = vpop.f32.mrf.mxu0
      %2416 = vmatprep.mubr.bf16.mxu0 %v573
      %2417 = vmatmul.mubr.bf16.gmra.mxu0 %v459
      %v2418 = vpop.f32.mrf.mxu0
      %v2419 = vadd.f32 %v1935, %v2418
      %v2420 = vpop.f32.mrf.mxu0
      %v2421 = vpop.f32.mrf.mxu0
      %v2422 = vadd.f32 %v1935, %v2421
      %v2423 = vpop.f32.mrf.mxu0
      %2424 = vmatprep.mubr.bf16.mxu0 %v585
      %2425 = vmatmul.mubr.bf16.gmra.mxu0 %v460
      %v2426 = vpop.f32.mrf.mxu0
      %v2427 = vadd.f32 %v1935, %v2426
      %v2428 = vpop.f32.mrf.mxu0
      %v2429 = vpop.f32.mrf.mxu0
      %v2430 = vadd.f32 %v1935, %v2429
      %v2431 = vpop.f32.mrf.mxu0
      %2432 = vmatprep.mubr.bf16.mxu0 %v597
      %2433 = vmatmul.mubr.bf16.gmra.mxu0 %v461
      %v2434 = vpop.f32.mrf.mxu0
      %v2435 = vadd.f32 %v1935, %v2434
      %v2436 = vpop.f32.mrf.mxu0
      %v2437 = vpop.f32.mrf.mxu0
      %v2438 = vadd.f32 %v1935, %v2437
      %v2439 = vpop.f32.mrf.mxu0
      %2440 = vmatprep.mubr.bf16.mxu0 %v609
      %2441 = vmatmul.mubr.bf16.gmra.mxu0 %v462
      %v2442 = vpop.f32.mrf.mxu0
      %v2443 = vadd.f32 %v1935, %v2442
      %v2444 = vpop.f32.mrf.mxu0
      %v2445 = vpop.f32.mrf.mxu0
      %v2446 = vadd.f32 %v1935, %v2445
      %v2447 = vpop.f32.mrf.mxu0
      %2448 = vmatprep.mubr.bf16.mxu0 %v621
      %2449 = vmatmul.mubr.bf16.gmra.mxu0 %v463
      %v2450 = vpop.f32.mrf.mxu0
      %v2451 = vadd.f32 %v1935, %v2450
      %v2452 = vpop.f32.mrf.mxu0
      %v2453 = vpop.f32.mrf.mxu0
      %v2454 = vadd.f32 %v1935, %v2453
      %v2455 = vpop.f32.mrf.mxu0
      %2456 = vmatprep.mubr.bf16.mxu0 %v633
      %2457 = vmatmul.mubr.bf16.gmra.mxu0 %v464
      %v2458 = vpop.f32.mrf.mxu0
      %v2459 = vadd.f32 %v1935, %v2458
      %v2460 = vpop.f32.mrf.mxu0
      %v2461 = vpop.f32.mrf.mxu0
      %v2462 = vadd.f32 %v1935, %v2461
      %v2463 = vpop.f32.mrf.mxu0
      %2464 = vmatprep.mubr.bf16.mxu0 %v645
      %2465 = vmatmul.mubr.bf16.gmra.mxu0 %v465
      %v2466 = vpop.f32.mrf.mxu0
      %v2467 = vadd.f32 %v1935, %v2466
      %v2468 = vpop.f32.mrf.mxu0
      %v2469 = vpop.f32.mrf.mxu0
      %v2470 = vadd.f32 %v1935, %v2469
      %v2471 = vpop.f32.mrf.mxu0
      %2472 = vmatprep.mubr.bf16.mxu0 %v657
      %2473 = vmatmul.mubr.bf16.gmra.mxu0 %v466
      %v2474 = vpop.f32.mrf.mxu0
      %v2475 = vadd.f32 %v1935, %v2474
      %v2476 = vpop.f32.mrf.mxu0
      %v2477 = vpop.f32.mrf.mxu0
      %v2478 = vadd.f32 %v1935, %v2477
      %v2479 = vpop.f32.mrf.mxu0
      %2480 = vmatprep.mubr.bf16.mxu0 %v669
      %2481 = vmatmul.mubr.bf16.gmra.mxu0 %v467
      %v2482 = vpop.f32.mrf.mxu0
      %v2483 = vadd.f32 %v1935, %v2482
      %v2484 = vpop.f32.mrf.mxu0
      %v2485 = vpop.f32.mrf.mxu0
      %v2486 = vadd.f32 %v1935, %v2485
      %v2487 = vpop.f32.mrf.mxu0
      %2488 = vmatprep.mubr.bf16.mxu0 %v681
      %2489 = vmatmul.mubr.bf16.gmra.mxu0 %v468
      %v2490 = vpop.f32.mrf.mxu0
      %v2491 = vadd.f32 %v1935, %v2490
      %v2492 = vpop.f32.mrf.mxu0
      %v2493 = vpop.f32.mrf.mxu0
      %v2494 = vadd.f32 %v1935, %v2493
      %v2495 = vpop.f32.mrf.mxu0
      %2496 = vmatprep.mubr.bf16.mxu0 %v693
      %2497 = vmatmul.mubr.bf16.gmra.mxu0 %v469
      %v2498 = vpop.f32.mrf.mxu0
      %v2499 = vadd.f32 %v1935, %v2498
      %v2500 = vpop.f32.mrf.mxu0
      %v2501 = vpop.f32.mrf.mxu0
      %v2502 = vadd.f32 %v1935, %v2501
      %v2503 = vpop.f32.mrf.mxu0
      %2504 = vmatprep.mubr.bf16.mxu0 %v705
      %2505 = vmatmul.mubr.bf16.gmra.mxu0 %v470
      %v2506 = vpop.f32.mrf.mxu0
      %v2507 = vadd.f32 %v1935, %v2506
      %v2508 = vpop.f32.mrf.mxu0
      %v2509 = vpop.f32.mrf.mxu0
      %v2510 = vadd.f32 %v1935, %v2509
      %v2511 = vpop.f32.mrf.mxu0
      %2512 = vmatprep.mubr.bf16.mxu0 %v717
      %2513 = vmatmul.mubr.bf16.gmra.mxu0 %v471
      %v2514 = vpop.f32.mrf.mxu0
      %v2515 = vadd.f32 %v1935, %v2514
      %v2516 = vpop.f32.mrf.mxu0
      %v2517 = vpop.f32.mrf.mxu0
      %v2518 = vadd.f32 %v1935, %v2517
      %v2519 = vpop.f32.mrf.mxu0
      %2520 = vmatprep.mubr.bf16.mxu0 %v729
      %2521 = vmatmul.mubr.bf16.gmra.mxu0 %v472
      %v2522 = vpop.f32.mrf.mxu0
      %v2523 = vadd.f32 %v1935, %v2522
      %v2524 = vpop.f32.mrf.mxu0
      %v2525 = vpop.f32.mrf.mxu0
      %v2526 = vadd.f32 %v1935, %v2525
      %v2527 = vpop.f32.mrf.mxu0
      %2528 = vdwg.mxu0
      %2529 = vmatprep.subr.bf16.mxu0 0
      %2530 = vmatpush1.bf16.msra.mxu0 %v2247
      %2531 = vmatprep.subr.bf16.mxu0 0
      %2532 = vmatpush1.bf16.msra.mxu0 %v2246
      %2533 = vmatprep.subr.bf16.mxu0 0
      %2534 = vmatpush1.bf16.msra.mxu0 %v2245
      %2535 = vmatprep.subr.bf16.mxu0 0
      %2536 = vmatpush1.bf16.msra.mxu0 %v2244
      %2537 = vmatprep.subr.bf16.mxu0 0
      %2538 = vmatpush1.bf16.msra.mxu0 %v2243
      %2539 = vmatprep.subr.bf16.mxu0 0
      %2540 = vmatpush1.bf16.msra.mxu0 %v2242
      %2541 = vmatprep.subr.bf16.mxu0 0
      %2542 = vmatpush1.bf16.msra.mxu0 %v2241
      %2543 = vmatprep.subr.bf16.mxu0 0
      %2544 = vmatpush1.bf16.msra.mxu0 %v2240
      %2545 = vmatprep.subr.bf16.mxu0 0
      %2546 = vmatpush2.bf16.msra.mxu0 %v2255
      %2547 = vmatprep.subr.bf16.mxu0 0
      %2548 = vmatpush2.bf16.msra.mxu0 %v2254
      %2549 = vmatprep.subr.bf16.mxu0 0
      %2550 = vmatpush2.bf16.msra.mxu0 %v2253
      %2551 = vmatprep.subr.bf16.mxu0 0
      %2552 = vmatpush2.bf16.msra.mxu0 %v2252
      %2553 = vmatprep.subr.bf16.mxu0 0
      %2554 = vmatpush2.bf16.msra.mxu0 %v2251
      %2555 = vmatprep.subr.bf16.mxu0 0
      %2556 = vmatpush2.bf16.msra.mxu0 %v2250
      %2557 = vmatprep.subr.bf16.mxu0 0
      %2558 = vmatpush2.bf16.msra.mxu0 %v2249
      %2559 = vmatprep.subr.bf16.mxu0 0
      %2560 = vmatpush2.bf16.msra.mxu0 %v2248
      %2561 = vmatprep.mubr.bf16.mxu0 %v923
      %2562 = vmatmul.mubr.bf16.gmra.mxu0 %v797
      %v2563 = vpop.f32.mrf.mxu0
      %v2564 = vadd.f32 %v2403, %v2563
      %v2565 = vpop.f32.mrf.mxu0
      %v2566 = vpop.f32.mrf.mxu0
      %v2567 = vadd.f32 %v2406, %v2566
      %v2568 = vpop.f32.mrf.mxu0
      %2569 = vmatprep.mubr.bf16.mxu0 %v924
      %2570 = vmatmul.mubr.bf16.gmra.mxu0 %v800
      %v2571 = vpop.f32.mrf.mxu0
      %v2572 = vadd.f32 %v2411, %v2571
      %v2573 = vpop.f32.mrf.mxu0
      %v2574 = vpop.f32.mrf.mxu0
      %v2575 = vadd.f32 %v2414, %v2574
      %v2576 = vpop.f32.mrf.mxu0
      %2577 = vmatprep.mubr.bf16.mxu0 %v925
      %2578 = vmatmul.mubr.bf16.gmra.mxu0 %v803
      %v2579 = vpop.f32.mrf.mxu0
      %v2580 = vadd.f32 %v2419, %v2579
      %v2581 = vpop.f32.mrf.mxu0
      %v2582 = vpop.f32.mrf.mxu0
      %v2583 = vadd.f32 %v2422, %v2582
      %v2584 = vpop.f32.mrf.mxu0
      %2585 = vmatprep.mubr.bf16.mxu0 %v926
      %2586 = vmatmul.mubr.bf16.gmra.mxu0 %v806
      %v2587 = vpop.f32.mrf.mxu0
      %v2588 = vadd.f32 %v2427, %v2587
      %v2589 = vpop.f32.mrf.mxu0
      %v2590 = vpop.f32.mrf.mxu0
      %v2591 = vadd.f32 %v2430, %v2590
      %v2592 = vpop.f32.mrf.mxu0
      %2593 = vmatprep.mubr.bf16.mxu0 %v927
      %2594 = vmatmul.mubr.bf16.gmra.mxu0 %v809
      %v2595 = vpop.f32.mrf.mxu0
      %v2596 = vadd.f32 %v2435, %v2595
      %v2597 = vpop.f32.mrf.mxu0
      %v2598 = vpop.f32.mrf.mxu0
      %v2599 = vadd.f32 %v2438, %v2598
      %v2600 = vpop.f32.mrf.mxu0
      %2601 = vmatprep.mubr.bf16.mxu0 %v928
      %2602 = vmatmul.mubr.bf16.gmra.mxu0 %v812
      %v2603 = vpop.f32.mrf.mxu0
      %v2604 = vadd.f32 %v2443, %v2603
      %v2605 = vpop.f32.mrf.mxu0
      %v2606 = vpop.f32.mrf.mxu0
      %v2607 = vadd.f32 %v2446, %v2606
      %v2608 = vpop.f32.mrf.mxu0
      %2609 = vmatprep.mubr.bf16.mxu0 %v929
      %2610 = vmatmul.mubr.bf16.gmra.mxu0 %v815
      %v2611 = vpop.f32.mrf.mxu0
      %v2612 = vadd.f32 %v2451, %v2611
      %v2613 = vpop.f32.mrf.mxu0
      %v2614 = vpop.f32.mrf.mxu0
      %v2615 = vadd.f32 %v2454, %v2614
      %v2616 = vpop.f32.mrf.mxu0
      %2617 = vmatprep.mubr.bf16.mxu0 %v930
      %2618 = vmatmul.mubr.bf16.gmra.mxu0 %v818
      %v2619 = vpop.f32.mrf.mxu0
      %v2620 = vadd.f32 %v2459, %v2619
      %v2621 = vpop.f32.mrf.mxu0
      %v2622 = vpop.f32.mrf.mxu0
      %v2623 = vadd.f32 %v2462, %v2622
      %v2624 = vpop.f32.mrf.mxu0
      %2625 = vmatprep.mubr.bf16.mxu0 %v931
      %2626 = vmatmul.mubr.bf16.gmra.mxu0 %v821
      %v2627 = vpop.f32.mrf.mxu0
      %v2628 = vadd.f32 %v2467, %v2627
      %v2629 = vpop.f32.mrf.mxu0
      %v2630 = vpop.f32.mrf.mxu0
      %v2631 = vadd.f32 %v2470, %v2630
      %v2632 = vpop.f32.mrf.mxu0
      %2633 = vmatprep.mubr.bf16.mxu0 %v932
      %2634 = vmatmul.mubr.bf16.gmra.mxu0 %v824
      %v2635 = vpop.f32.mrf.mxu0
      %v2636 = vadd.f32 %v2475, %v2635
      %v2637 = vpop.f32.mrf.mxu0
      %v2638 = vpop.f32.mrf.mxu0
      %v2639 = vadd.f32 %v2478, %v2638
      %v2640 = vpop.f32.mrf.mxu0
      %2641 = vmatprep.mubr.bf16.mxu0 %v933
      %2642 = vmatmul.mubr.bf16.gmra.mxu0 %v827
      %v2643 = vpop.f32.mrf.mxu0
      %v2644 = vadd.f32 %v2483, %v2643
      %v2645 = vpop.f32.mrf.mxu0
      %v2646 = vpop.f32.mrf.mxu0
      %v2647 = vadd.f32 %v2486, %v2646
      %v2648 = vpop.f32.mrf.mxu0
      %2649 = vmatprep.mubr.bf16.mxu0 %v934
      %2650 = vmatmul.mubr.bf16.gmra.mxu0 %v830
      %v2651 = vpop.f32.mrf.mxu0
      %v2652 = vadd.f32 %v2491, %v2651
      %v2653 = vpop.f32.mrf.mxu0
      %v2654 = vpop.f32.mrf.mxu0
      %v2655 = vadd.f32 %v2494, %v2654
      %v2656 = vpop.f32.mrf.mxu0
      %2657 = vmatprep.mubr.bf16.mxu0 %v935
      %2658 = vmatmul.mubr.bf16.gmra.mxu0 %v833
      %v2659 = vpop.f32.mrf.mxu0
      %v2660 = vadd.f32 %v2499, %v2659
      %v2661 = vpop.f32.mrf.mxu0
      %v2662 = vpop.f32.mrf.mxu0
      %v2663 = vadd.f32 %v2502, %v2662
      %v2664 = vpop.f32.mrf.mxu0
      %2665 = vmatprep.mubr.bf16.mxu0 %v936
      %2666 = vmatmul.mubr.bf16.gmra.mxu0 %v836
      %v2667 = vpop.f32.mrf.mxu0
      %v2668 = vadd.f32 %v2507, %v2667
      %v2669 = vpop.f32.mrf.mxu0
      %v2670 = vpop.f32.mrf.mxu0
      %v2671 = vadd.f32 %v2510, %v2670
      %v2672 = vpop.f32.mrf.mxu0
      %2673 = vmatprep.mubr.bf16.mxu0 %v937
      %2674 = vmatmul.mubr.bf16.gmra.mxu0 %v839
      %v2675 = vpop.f32.mrf.mxu0
      %v2676 = vadd.f32 %v2515, %v2675
      %v2677 = vpop.f32.mrf.mxu0
      %v2678 = vpop.f32.mrf.mxu0
      %v2679 = vadd.f32 %v2518, %v2678
      %v2680 = vpop.f32.mrf.mxu0
      %2681 = vmatprep.mubr.bf16.mxu0 %v938
      %2682 = vmatmul.mubr.bf16.gmra.mxu0 %v842
      %v2683 = vpop.f32.mrf.mxu0
      %v2684 = vadd.f32 %v2523, %v2683
      %v2685 = vpop.f32.mrf.mxu0
      %v2686 = vpop.f32.mrf.mxu0
      %v2687 = vadd.f32 %v2526, %v2686
      %v2688 = vpop.f32.mrf.mxu0
      %2689 = vdwg.mxu0
      %2690 = vmatprep.subr.bf16.mxu0 0
      %2691 = vmatpush1.bf16.msra.mxu0 %v2263
      %2692 = vmatprep.subr.bf16.mxu0 0
      %2693 = vmatpush1.bf16.msra.mxu0 %v2262
      %2694 = vmatprep.subr.bf16.mxu0 0
      %2695 = vmatpush1.bf16.msra.mxu0 %v2261
      %2696 = vmatprep.subr.bf16.mxu0 0
      %2697 = vmatpush1.bf16.msra.mxu0 %v2260
      %2698 = vmatprep.subr.bf16.mxu0 0
      %2699 = vmatpush1.bf16.msra.mxu0 %v2259
      %2700 = vmatprep.subr.bf16.mxu0 0
      %2701 = vmatpush1.bf16.msra.mxu0 %v2258
      %2702 = vmatprep.subr.bf16.mxu0 0
      %2703 = vmatpush1.bf16.msra.mxu0 %v2257
      %2704 = vmatprep.subr.bf16.mxu0 0
      %2705 = vmatpush1.bf16.msra.mxu0 %v2256
      %2706 = vmatprep.subr.bf16.mxu0 0
      %2707 = vmatpush2.bf16.msra.mxu0 %v2271
      %2708 = vmatprep.subr.bf16.mxu0 0
      %2709 = vmatpush2.bf16.msra.mxu0 %v2270
      %2710 = vmatprep.subr.bf16.mxu0 0
      %2711 = vmatpush2.bf16.msra.mxu0 %v2269
      %2712 = vmatprep.subr.bf16.mxu0 0
      %2713 = vmatpush2.bf16.msra.mxu0 %v2268
      %2714 = vmatprep.subr.bf16.mxu0 0
      %2715 = vmatpush2.bf16.msra.mxu0 %v2267
      %2716 = vmatprep.subr.bf16.mxu0 0
      %2717 = vmatpush2.bf16.msra.mxu0 %v2266
      %2718 = vmatprep.subr.bf16.mxu0 0
      %2719 = vmatpush2.bf16.msra.mxu0 %v2265
      %2720 = vmatprep.subr.bf16.mxu0 0
      %2721 = vmatpush2.bf16.msra.mxu0 %v2264
      %2722 = vmatprep.mubr.bf16.mxu0 %v1261
      %2723 = vmatmul.mubr.bf16.gmra.mxu0 %v1014
      %v2724 = vpop.f32.mrf.mxu0
      %v2725 = vadd.f32 %v2564, %v2724
      %v2726 = vpop.f32.mrf.mxu0
      %v2727 = vpop.f32.mrf.mxu0
      %v2728 = vadd.f32 %v2567, %v2727
      %v2729 = vpop.f32.mrf.mxu0
      %2730 = vmatprep.mubr.bf16.mxu0 %v1264
      %2731 = vmatmul.mubr.bf16.gmra.mxu0 %v1026
      %v2732 = vpop.f32.mrf.mxu0
      %v2733 = vadd.f32 %v2572, %v2732
      %v2734 = vpop.f32.mrf.mxu0
      %v2735 = vpop.f32.mrf.mxu0
      %v2736 = vadd.f32 %v2575, %v2735
      %v2737 = vpop.f32.mrf.mxu0
      %2738 = vmatprep.mubr.bf16.mxu0 %v1267
      %2739 = vmatmul.mubr.bf16.gmra.mxu0 %v1038
      %v2740 = vpop.f32.mrf.mxu0
      %v2741 = vadd.f32 %v2580, %v2740
      %v2742 = vpop.f32.mrf.mxu0
      %v2743 = vpop.f32.mrf.mxu0
      %v2744 = vadd.f32 %v2583, %v2743
      %v2745 = vpop.f32.mrf.mxu0
      %2746 = vmatprep.mubr.bf16.mxu0 %v1270
      %2747 = vmatmul.mubr.bf16.gmra.mxu0 %v1050
      %v2748 = vpop.f32.mrf.mxu0
      %v2749 = vadd.f32 %v2588, %v2748
      %v2750 = vpop.f32.mrf.mxu0
      %v2751 = vpop.f32.mrf.mxu0
      %v2752 = vadd.f32 %v2591, %v2751
      %v2753 = vpop.f32.mrf.mxu0
      %2754 = vmatprep.mubr.bf16.mxu0 %v1273
      %2755 = vmatmul.mubr.bf16.gmra.mxu0 %v1062
      %v2756 = vpop.f32.mrf.mxu0
      %v2757 = vadd.f32 %v2596, %v2756
      %v2758 = vpop.f32.mrf.mxu0
      %v2759 = vpop.f32.mrf.mxu0
      %v2760 = vadd.f32 %v2599, %v2759
      %v2761 = vpop.f32.mrf.mxu0
      %2762 = vmatprep.mubr.bf16.mxu0 %v1276
      %2763 = vmatmul.mubr.bf16.gmra.mxu0 %v1074
      %v2764 = vpop.f32.mrf.mxu0
      %v2765 = vadd.f32 %v2604, %v2764
      %v2766 = vpop.f32.mrf.mxu0
      %v2767 = vpop.f32.mrf.mxu0
      %v2768 = vadd.f32 %v2607, %v2767
      %v2769 = vpop.f32.mrf.mxu0
      %2770 = vmatprep.mubr.bf16.mxu0 %v1279
      %2771 = vmatmul.mubr.bf16.gmra.mxu0 %v1086
      %v2772 = vpop.f32.mrf.mxu0
      %v2773 = vadd.f32 %v2612, %v2772
      %v2774 = vpop.f32.mrf.mxu0
      %v2775 = vpop.f32.mrf.mxu0
      %v2776 = vadd.f32 %v2615, %v2775
      %v2777 = vpop.f32.mrf.mxu0
      %2778 = vmatprep.mubr.bf16.mxu0 %v1282
      %2779 = vmatmul.mubr.bf16.gmra.mxu0 %v1098
      %v2780 = vpop.f32.mrf.mxu0
      %v2781 = vadd.f32 %v2620, %v2780
      %v2782 = vpop.f32.mrf.mxu0
      %v2783 = vpop.f32.mrf.mxu0
      %v2784 = vadd.f32 %v2623, %v2783
      %v2785 = vpop.f32.mrf.mxu0
      %2786 = vmatprep.mubr.bf16.mxu0 %v1285
      %2787 = vmatmul.mubr.bf16.gmra.mxu0 %v1110
      %v2788 = vpop.f32.mrf.mxu0
      %v2789 = vadd.f32 %v2628, %v2788
      %v2790 = vpop.f32.mrf.mxu0
      %v2791 = vpop.f32.mrf.mxu0
      %v2792 = vadd.f32 %v2631, %v2791
      %v2793 = vpop.f32.mrf.mxu0
      %2794 = vmatprep.mubr.bf16.mxu0 %v1288
      %2795 = vmatmul.mubr.bf16.gmra.mxu0 %v1122
      %v2796 = vpop.f32.mrf.mxu0
      %v2797 = vadd.f32 %v2636, %v2796
      %v2798 = vpop.f32.mrf.mxu0
      %v2799 = vpop.f32.mrf.mxu0
      %v2800 = vadd.f32 %v2639, %v2799
      %v2801 = vpop.f32.mrf.mxu0
      %2802 = vmatprep.mubr.bf16.mxu0 %v1291
      %2803 = vmatmul.mubr.bf16.gmra.mxu0 %v1134
      %v2804 = vpop.f32.mrf.mxu0
      %v2805 = vadd.f32 %v2644, %v2804
      %v2806 = vpop.f32.mrf.mxu0
      %v2807 = vpop.f32.mrf.mxu0
      %v2808 = vadd.f32 %v2647, %v2807
      %v2809 = vpop.f32.mrf.mxu0
      %2810 = vmatprep.mubr.bf16.mxu0 %v1294
      %2811 = vmatmul.mubr.bf16.gmra.mxu0 %v1146
      %v2812 = vpop.f32.mrf.mxu0
      %v2813 = vadd.f32 %v2652, %v2812
      %v2814 = vpop.f32.mrf.mxu0
      %v2815 = vpop.f32.mrf.mxu0
      %v2816 = vadd.f32 %v2655, %v2815
      %v2817 = vpop.f32.mrf.mxu0
      %2818 = vmatprep.mubr.bf16.mxu0 %v1297
      %2819 = vmatmul.mubr.bf16.gmra.mxu0 %v1158
      %v2820 = vpop.f32.mrf.mxu0
      %v2821 = vadd.f32 %v2660, %v2820
      %v2822 = vpop.f32.mrf.mxu0
      %v2823 = vpop.f32.mrf.mxu0
      %v2824 = vadd.f32 %v2663, %v2823
      %v2825 = vpop.f32.mrf.mxu0
      %2826 = vmatprep.mubr.bf16.mxu0 %v1300
      %2827 = vmatmul.mubr.bf16.gmra.mxu0 %v1170
      %v2828 = vpop.f32.mrf.mxu0
      %v2829 = vadd.f32 %v2668, %v2828
      %v2830 = vpop.f32.mrf.mxu0
      %v2831 = vpop.f32.mrf.mxu0
      %v2832 = vadd.f32 %v2671, %v2831
      %v2833 = vpop.f32.mrf.mxu0
      %2834 = vmatprep.mubr.bf16.mxu0 %v1303
      %2835 = vmatmul.mubr.bf16.gmra.mxu0 %v1182
      %v2836 = vpop.f32.mrf.mxu0
      %v2837 = vadd.f32 %v2676, %v2836
      %v2838 = vpop.f32.mrf.mxu0
      %v2839 = vpop.f32.mrf.mxu0
      %v2840 = vadd.f32 %v2679, %v2839
      %v2841 = vpop.f32.mrf.mxu0
      %2842 = vmatprep.mubr.bf16.mxu0 %v1306
      %2843 = vmatmul.mubr.bf16.gmra.mxu0 %v1194
      %v2844 = vpop.f32.mrf.mxu0
      %v2845 = vadd.f32 %v2684, %v2844
      %v2846 = vpop.f32.mrf.mxu0
      %v2847 = vpop.f32.mrf.mxu0
      %v2848 = vadd.f32 %v2687, %v2847
      %v2849 = vpop.f32.mrf.mxu0
      %2850 = vdwg.mxu0
      %2851 = vmatprep.subr.bf16.mxu0 0
      %2852 = vmatpush1.bf16.msra.mxu0 %v2279
      %2853 = vmatprep.subr.bf16.mxu0 0
      %2854 = vmatpush1.bf16.msra.mxu0 %v2278
      %2855 = vmatprep.subr.bf16.mxu0 0
      %2856 = vmatpush1.bf16.msra.mxu0 %v2277
      %2857 = vmatprep.subr.bf16.mxu0 0
      %2858 = vmatpush1.bf16.msra.mxu0 %v2276
      %2859 = vmatprep.subr.bf16.mxu0 0
      %2860 = vmatpush1.bf16.msra.mxu0 %v2275
      %2861 = vmatprep.subr.bf16.mxu0 0
      %2862 = vmatpush1.bf16.msra.mxu0 %v2274
      %2863 = vmatprep.subr.bf16.mxu0 0
      %2864 = vmatpush1.bf16.msra.mxu0 %v2273
      %2865 = vmatprep.subr.bf16.mxu0 0
      %2866 = vmatpush1.bf16.msra.mxu0 %v2272
      %2867 = vmatprep.subr.bf16.mxu0 0
      %2868 = vmatpush2.bf16.msra.mxu0 %v2287
      %2869 = vmatprep.subr.bf16.mxu0 0
      %2870 = vmatpush2.bf16.msra.mxu0 %v2286
      %2871 = vmatprep.subr.bf16.mxu0 0
      %2872 = vmatpush2.bf16.msra.mxu0 %v2285
      %2873 = vmatprep.subr.bf16.mxu0 0
      %2874 = vmatpush2.bf16.msra.mxu0 %v2284
      %2875 = vmatprep.subr.bf16.mxu0 0
      %2876 = vmatpush2.bf16.msra.mxu0 %v2283
      %2877 = vmatprep.subr.bf16.mxu0 0
      %2878 = vmatpush2.bf16.msra.mxu0 %v2282
      %2879 = vmatprep.subr.bf16.mxu0 0
      %2880 = vmatpush2.bf16.msra.mxu0 %v2281
      %2881 = vmatprep.subr.bf16.mxu0 0
      %2882 = vmatpush2.bf16.msra.mxu0 %v2280
      %2883 = vmatprep.mubr.bf16.mxu0 %v1478
      %2884 = vmatmul.mubr.bf16.gmra.mxu0 %v1387
      %v2885 = vpop.f32.mrf.mxu0
      %v2886 = vadd.f32 %v2725, %v2885
      %v2887 = vpop.f32.mrf.mxu0
      %v2888 = vpop.f32.mrf.mxu0
      %v2889 = vadd.f32 %v2728, %v2888
      %v2890 = vpop.f32.mrf.mxu0
      %2891 = vmatprep.mubr.bf16.mxu0 %v1490
      %2892 = vmatmul.mubr.bf16.gmra.mxu0 %v1388
      %v2893 = vpop.f32.mrf.mxu0
      %v2894 = vadd.f32 %v2733, %v2893
      %v2895 = vpop.f32.mrf.mxu0
      %v2896 = vpop.f32.mrf.mxu0
      %v2897 = vadd.f32 %v2736, %v2896
      %v2898 = vpop.f32.mrf.mxu0
      %2899 = vmatprep.mubr.bf16.mxu0 %v1502
      %2900 = vmatmul.mubr.bf16.gmra.mxu0 %v1389
      %v2901 = vpop.f32.mrf.mxu0
      %v2902 = vadd.f32 %v2741, %v2901
      %v2903 = vpop.f32.mrf.mxu0
      %v2904 = vpop.f32.mrf.mxu0
      %v2905 = vadd.f32 %v2744, %v2904
      %v2906 = vpop.f32.mrf.mxu0
      %2907 = vmatprep.mubr.bf16.mxu0 %v1514
      %2908 = vmatmul.mubr.bf16.gmra.mxu0 %v1390
      %v2909 = vpop.f32.mrf.mxu0
      %v2910 = vadd.f32 %v2749, %v2909
      %v2911 = vpop.f32.mrf.mxu0
      %v2912 = vpop.f32.mrf.mxu0
      %v2913 = vadd.f32 %v2752, %v2912
      %v2914 = vpop.f32.mrf.mxu0
      %2915 = vmatprep.mubr.bf16.mxu0 %v1526
      %2916 = vmatmul.mubr.bf16.gmra.mxu0 %v1391
      %v2917 = vpop.f32.mrf.mxu0
      %v2918 = vadd.f32 %v2757, %v2917
      %v2919 = vpop.f32.mrf.mxu0
      %v2920 = vpop.f32.mrf.mxu0
      %v2921 = vadd.f32 %v2760, %v2920
      %v2922 = vpop.f32.mrf.mxu0
      %2923 = vmatprep.mubr.bf16.mxu0 %v1538
      %2924 = vmatmul.mubr.bf16.gmra.mxu0 %v1392
      %v2925 = vpop.f32.mrf.mxu0
      %v2926 = vadd.f32 %v2765, %v2925
      %v2927 = vpop.f32.mrf.mxu0
      %v2928 = vpop.f32.mrf.mxu0
      %v2929 = vadd.f32 %v2768, %v2928
      %v2930 = vpop.f32.mrf.mxu0
      %2931 = vmatprep.mubr.bf16.mxu0 %v1550
      %2932 = vmatmul.mubr.bf16.gmra.mxu0 %v1393
      %v2933 = vpop.f32.mrf.mxu0
      %v2934 = vadd.f32 %v2773, %v2933
      %v2935 = vpop.f32.mrf.mxu0
      %v2936 = vpop.f32.mrf.mxu0
      %v2937 = vadd.f32 %v2776, %v2936
      %v2938 = vpop.f32.mrf.mxu0
      %2939 = vmatprep.mubr.bf16.mxu0 %v1562
      %2940 = vmatmul.mubr.bf16.gmra.mxu0 %v1394
      %v2941 = vpop.f32.mrf.mxu0
      %v2942 = vadd.f32 %v2781, %v2941
      %v2943 = vpop.f32.mrf.mxu0
      %v2944 = vpop.f32.mrf.mxu0
      %v2945 = vadd.f32 %v2784, %v2944
      %v2946 = vpop.f32.mrf.mxu0
      %2947 = vmatprep.mubr.bf16.mxu0 %v1574
      %2948 = vmatmul.mubr.bf16.gmra.mxu0 %v1395
      %v2949 = vpop.f32.mrf.mxu0
      %v2950 = vadd.f32 %v2789, %v2949
      %v2951 = vpop.f32.mrf.mxu0
      %v2952 = vpop.f32.mrf.mxu0
      %v2953 = vadd.f32 %v2792, %v2952
      %v2954 = vpop.f32.mrf.mxu0
      %2955 = vmatprep.mubr.bf16.mxu0 %v1586
      %2956 = vmatmul.mubr.bf16.gmra.mxu0 %v1396
      %v2957 = vpop.f32.mrf.mxu0
      %v2958 = vadd.f32 %v2797, %v2957
      %v2959 = vpop.f32.mrf.mxu0
      %v2960 = vpop.f32.mrf.mxu0
      %v2961 = vadd.f32 %v2800, %v2960
      %v2962 = vpop.f32.mrf.mxu0
      %2963 = vmatprep.mubr.bf16.mxu0 %v1598
      %2964 = vmatmul.mubr.bf16.gmra.mxu0 %v1397
      %v2965 = vpop.f32.mrf.mxu0
      %v2966 = vadd.f32 %v2805, %v2965
      %v2967 = vpop.f32.mrf.mxu0
      %v2968 = vpop.f32.mrf.mxu0
      %v2969 = vadd.f32 %v2808, %v2968
      %v2970 = vpop.f32.mrf.mxu0
      %2971 = vmatprep.mubr.bf16.mxu0 %v1610
      %2972 = vmatmul.mubr.bf16.gmra.mxu0 %v1398
      %v2973 = vpop.f32.mrf.mxu0
      %v2974 = vadd.f32 %v2813, %v2973
      %v2975 = vpop.f32.mrf.mxu0
      %v2976 = vpop.f32.mrf.mxu0
      %v2977 = vadd.f32 %v2816, %v2976
      %v2978 = vpop.f32.mrf.mxu0
      %2979 = vmatprep.mubr.bf16.mxu0 %v1622
      %2980 = vmatmul.mubr.bf16.gmra.mxu0 %v1399
      %v2981 = vpop.f32.mrf.mxu0
      %v2982 = vadd.f32 %v2821, %v2981
      %v2983 = vpop.f32.mrf.mxu0
      %v2984 = vpop.f32.mrf.mxu0
      %v2985 = vadd.f32 %v2824, %v2984
      %v2986 = vpop.f32.mrf.mxu0
      %2987 = vmatprep.mubr.bf16.mxu0 %v1634
      %2988 = vmatmul.mubr.bf16.gmra.mxu0 %v1400
      %v2989 = vpop.f32.mrf.mxu0
      %v2990 = vadd.f32 %v2829, %v2989
      %v2991 = vpop.f32.mrf.mxu0
      %v2992 = vpop.f32.mrf.mxu0
      %v2993 = vadd.f32 %v2832, %v2992
      %v2994 = vpop.f32.mrf.mxu0
      %2995 = vmatprep.mubr.bf16.mxu0 %v1646
      %2996 = vmatmul.mubr.bf16.gmra.mxu0 %v1401
      %v2997 = vpop.f32.mrf.mxu0
      %v2998 = vadd.f32 %v2837, %v2997
      %v2999 = vpop.f32.mrf.mxu0
      %v3000 = vpop.f32.mrf.mxu0
      %v3001 = vadd.f32 %v2840, %v3000
      %v3002 = vpop.f32.mrf.mxu0
      %3003 = vmatprep.mubr.bf16.mxu0 %v1658
      %3004 = vmatmul.mubr.bf16.gmra.mxu0 %v1402
      %v3005 = vpop.f32.mrf.mxu0
      %v3006 = vadd.f32 %v2845, %v3005
      %v3007 = vpop.f32.mrf.mxu0
      %v3008 = vpop.f32.mrf.mxu0
      %v3009 = vadd.f32 %v2848, %v3008
      %v3010 = vpop.f32.mrf.mxu0
      %3011 = vdwg.mxu0
      %3012 = vmatprep.subr.bf16.mxu0 0
      %3013 = vmatpush1.bf16.msra.mxu0 %v2295
      %3014 = vmatprep.subr.bf16.mxu0 0
      %3015 = vmatpush1.bf16.msra.mxu0 %v2294
      %3016 = vmatprep.subr.bf16.mxu0 0
      %3017 = vmatpush1.bf16.msra.mxu0 %v2293
      %3018 = vmatprep.subr.bf16.mxu0 0
      %3019 = vmatpush1.bf16.msra.mxu0 %v2292
      %3020 = vmatprep.subr.bf16.mxu0 0
      %3021 = vmatpush1.bf16.msra.mxu0 %v2291
      %3022 = vmatprep.subr.bf16.mxu0 0
      %3023 = vmatpush1.bf16.msra.mxu0 %v2290
      %3024 = vmatprep.subr.bf16.mxu0 0
      %3025 = vmatpush1.bf16.msra.mxu0 %v2289
      %3026 = vmatprep.subr.bf16.mxu0 0
      %3027 = vmatpush1.bf16.msra.mxu0 %v2288
      %3028 = vmatprep.subr.bf16.mxu0 0
      %3029 = vmatpush2.bf16.msra.mxu0 0
      %3030 = vmatprep.subr.bf16.mxu0 0
      %3031 = vmatpush2.bf16.msra.mxu0 0
      %3032 = vmatprep.subr.bf16.mxu0 0
      %3033 = vmatpush2.bf16.msra.mxu0 0
      %3034 = vmatprep.subr.bf16.mxu0 0
      %3035 = vmatpush2.bf16.msra.mxu0 0
      %3036 = vmatprep.subr.bf16.mxu0 0
      %3037 = vmatpush2.bf16.msra.mxu0 0
      %3038 = vmatprep.subr.bf16.mxu0 0
      %3039 = vmatpush2.bf16.msra.mxu0 0
      %3040 = vmatprep.subr.bf16.mxu0 0
      %3041 = vmatpush2.bf16.msra.mxu0 0
      %3042 = vmatprep.subr.bf16.mxu0 0
      %3043 = vmatpush2.bf16.msra.mxu0 0
      %3044 = vmatprep.mubr.bf16.mxu0 0
      %3045 = vmatmul.mubr.bf16.gmra.mxu0 %v1725
      %v3046 = vpop.f32.mrf.mxu0
      %v3047 = vadd.f32 %v2886, %v3046
      %v3048 = vpop.f32.mrf.mxu0
      %v3049 = vpop.f32.mrf.mxu0
      %v3050 = vadd.f32 %v2889, %v3049
      %v3051 = vpop.f32.mrf.mxu0
      %3052 = vmatprep.mubr.bf16.mxu0 0
      %3053 = vmatmul.mubr.bf16.gmra.mxu0 %v1728
      %v3054 = vpop.f32.mrf.mxu0
      %v3055 = vadd.f32 %v2894, %v3054
      %v3056 = vpop.f32.mrf.mxu0
      %v3057 = vpop.f32.mrf.mxu0
      %v3058 = vadd.f32 %v2897, %v3057
      %v3059 = vpop.f32.mrf.mxu0
      %3060 = vmatprep.mubr.bf16.mxu0 0
      %3061 = vmatmul.mubr.bf16.gmra.mxu0 %v1731
      %v3062 = vpop.f32.mrf.mxu0
      %v3063 = vadd.f32 %v2902, %v3062
      %v3064 = vpop.f32.mrf.mxu0
      %v3065 = vpop.f32.mrf.mxu0
      %v3066 = vadd.f32 %v2905, %v3065
      %v3067 = vpop.f32.mrf.mxu0
      %3068 = vmatprep.mubr.bf16.mxu0 0
      %3069 = vmatmul.mubr.bf16.gmra.mxu0 %v1734
      %v3070 = vpop.f32.mrf.mxu0
      %v3071 = vadd.f32 %v2910, %v3070
      %v3072 = vpop.f32.mrf.mxu0
      %v3073 = vpop.f32.mrf.mxu0
      %v3074 = vadd.f32 %v2913, %v3073
      %v3075 = vpop.f32.mrf.mxu0
      %3076 = vmatprep.mubr.bf16.mxu0 0
      %3077 = vmatmul.mubr.bf16.gmra.mxu0 %v1737
      %v3078 = vpop.f32.mrf.mxu0
      %v3079 = vadd.f32 %v2918, %v3078
      %v3080 = vpop.f32.mrf.mxu0
      %v3081 = vpop.f32.mrf.mxu0
      %v3082 = vadd.f32 %v2921, %v3081
      %v3083 = vpop.f32.mrf.mxu0
      %3084 = vmatprep.mubr.bf16.mxu0 0
      %3085 = vmatmul.mubr.bf16.gmra.mxu0 %v1740
      %v3086 = vpop.f32.mrf.mxu0
      %v3087 = vadd.f32 %v2926, %v3086
      %v3088 = vpop.f32.mrf.mxu0
      %v3089 = vpop.f32.mrf.mxu0
      %v3090 = vadd.f32 %v2929, %v3089
      %v3091 = vpop.f32.mrf.mxu0
      %3092 = vmatprep.mubr.bf16.mxu0 0
      %3093 = vmatmul.mubr.bf16.gmra.mxu0 %v1743
      %v3094 = vpop.f32.mrf.mxu0
      %v3095 = vadd.f32 %v2934, %v3094
      %v3096 = vpop.f32.mrf.mxu0
      %v3097 = vpop.f32.mrf.mxu0
      %v3098 = vadd.f32 %v2937, %v3097
      %v3099 = vpop.f32.mrf.mxu0
      %3100 = vmatprep.mubr.bf16.mxu0 0
      %3101 = vmatmul.mubr.bf16.gmra.mxu0 %v1746
      %v3102 = vpop.f32.mrf.mxu0
      %v3103 = vadd.f32 %v2942, %v3102
      %v3104 = vpop.f32.mrf.mxu0
      %v3105 = vpop.f32.mrf.mxu0
      %v3106 = vadd.f32 %v2945, %v3105
      %v3107 = vpop.f32.mrf.mxu0
      %3108 = vmatprep.mubr.bf16.mxu0 0
      %3109 = vmatmul.mubr.bf16.gmra.mxu0 %v1749
      %v3110 = vpop.f32.mrf.mxu0
      %v3111 = vadd.f32 %v2950, %v3110
      %v3112 = vpop.f32.mrf.mxu0
      %v3113 = vpop.f32.mrf.mxu0
      %v3114 = vadd.f32 %v2953, %v3113
      %v3115 = vpop.f32.mrf.mxu0
      %3116 = vmatprep.mubr.bf16.mxu0 0
      %3117 = vmatmul.mubr.bf16.gmra.mxu0 %v1752
      %v3118 = vpop.f32.mrf.mxu0
      %v3119 = vadd.f32 %v2958, %v3118
      %v3120 = vpop.f32.mrf.mxu0
      %v3121 = vpop.f32.mrf.mxu0
      %v3122 = vadd.f32 %v2961, %v3121
      %v3123 = vpop.f32.mrf.mxu0
      %3124 = vmatprep.mubr.bf16.mxu0 0
      %3125 = vmatmul.mubr.bf16.gmra.mxu0 %v1755
      %v3126 = vpop.f32.mrf.mxu0
      %v3127 = vadd.f32 %v2966, %v3126
      %v3128 = vpop.f32.mrf.mxu0
      %v3129 = vpop.f32.mrf.mxu0
      %v3130 = vadd.f32 %v2969, %v3129
      %v3131 = vpop.f32.mrf.mxu0
      %3132 = vmatprep.mubr.bf16.mxu0 0
      %3133 = vmatmul.mubr.bf16.gmra.mxu0 %v1758
      %v3134 = vpop.f32.mrf.mxu0
      %v3135 = vadd.f32 %v2974, %v3134
      %v3136 = vpop.f32.mrf.mxu0
      %v3137 = vpop.f32.mrf.mxu0
      %v3138 = vadd.f32 %v2977, %v3137
      %v3139 = vpop.f32.mrf.mxu0
      %3140 = vmatprep.mubr.bf16.mxu0 0
      %3141 = vmatmul.mubr.bf16.gmra.mxu0 %v1761
      %v3142 = vpop.f32.mrf.mxu0
      %v3143 = vadd.f32 %v2982, %v3142
      %v3144 = vpop.f32.mrf.mxu0
      %v3145 = vpop.f32.mrf.mxu0
      %v3146 = vadd.f32 %v2985, %v3145
      %v3147 = vpop.f32.mrf.mxu0
      %3148 = vmatprep.mubr.bf16.mxu0 0
      %3149 = vmatmul.mubr.bf16.gmra.mxu0 %v1764
      %v3150 = vpop.f32.mrf.mxu0
      %v3151 = vadd.f32 %v2990, %v3150
      %v3152 = vpop.f32.mrf.mxu0
      %v3153 = vpop.f32.mrf.mxu0
      %v3154 = vadd.f32 %v2993, %v3153
      %v3155 = vpop.f32.mrf.mxu0
      %3156 = vmatprep.mubr.bf16.mxu0 0
      %3157 = vmatmul.mubr.bf16.gmra.mxu0 %v1767
      %v3158 = vpop.f32.mrf.mxu0
      %v3159 = vadd.f32 %v2998, %v3158
      %v3160 = vpop.f32.mrf.mxu0
      %v3161 = vpop.f32.mrf.mxu0
      %v3162 = vadd.f32 %v3001, %v3161
      %v3163 = vpop.f32.mrf.mxu0
      %3164 = vmatprep.mubr.bf16.mxu0 0
      %3165 = vmatmul.mubr.bf16.gmra.mxu0 %v1770
      %v3166 = vpop.f32.mrf.mxu0
      %v3167 = vadd.f32 %v3006, %v3166
      %v3168 = vpop.f32.mrf.mxu0
      %v3169 = vpop.f32.mrf.mxu0
      %v3170 = vadd.f32 %v3009, %v3169
      %v3171 = vpop.f32.mrf.mxu0
      %3172 = vdwg.mxu0
      %v3173 = vmax.f32 %v3047, 0.0
      %v3174 = vmax.f32 %v3050, 0.0
      %v3175 = vmax.f32 %v3055, 0.0
      %v3176 = vmax.f32 %v3058, 0.0
      %v3177 = vmax.f32 %v3063, 0.0
      %v3178 = vmax.f32 %v3066, 0.0
      %v3179 = vmax.f32 %v3071, 0.0
      %v3180 = vmax.f32 %v3074, 0.0
      %v3181 = vmax.f32 %v3079, 0.0
      %v3182 = vmax.f32 %v3082, 0.0
      %v3183 = vmax.f32 %v3087, 0.0
      %v3184 = vmax.f32 %v3090, 0.0
      %v3185 = vmax.f32 %v3095, 0.0
      %v3186 = vmax.f32 %v3098, 0.0
      %v3187 = vmax.f32 %v3103, 0.0
      %v3188 = vmax.f32 %v3106, 0.0
      %v3189 = vmax.f32 %v3111, 0.0
      %v3190 = vmax.f32 %v3114, 0.0
      %v3191 = vmax.f32 %v3119, 0.0
      %v3192 = vmax.f32 %v3122, 0.0
      %v3193 = vmax.f32 %v3127, 0.0
      %v3194 = vmax.f32 %v3130, 0.0
      %v3195 = vmax.f32 %v3135, 0.0
      %v3196 = vmax.f32 %v3138, 0.0
      %v3197 = vmax.f32 %v3143, 0.0
      %v3198 = vmax.f32 %v3146, 0.0
      %v3199 = vmax.f32 %v3151, 0.0
      %v3200 = vmax.f32 %v3154, 0.0
      %v3201 = vmax.f32 %v3159, 0.0
      %v3202 = vmax.f32 %v3162, 0.0
      %v3203 = vmax.f32 %v3167, 0.0
      %v3204 = vmax.f32 %v3170, 0.0
      %3205 = vst [vmem:[#allocation2] sm:$0xf] 0
      %3206 = vst [vmem:[#allocation2 + $0x4] sm:$0xf] 0
      %3207 = vst [vmem:[#allocation2 + $0x8] sm:$0x1] 0
      %s3208 = scalar_lea.vmem [#allocation2], 204
      %3209 = vst [vmem:[%s3208] sm:$0xf] 0
      %3210 = vst [vmem:[%s3208 + $0x4] sm:$0xf] 0
      %3211 = vst [vmem:[%s3208 + $0x8] sm:$0x1] 0
      %s3212 = scalar_lea.vmem [#allocation2], 12
      %vm3213 = vcmask 1040384
      %vm3214 = vsmask.f32 256
      %vm3215 = vmand %vm3213, %vm3214
      %v3216 = vld [vmem:[%s3212] sm:$0x1]
      %v3217 = vsel %vm3215, 0, %v3216
      %3218 = vst [vmem:[%s3212] sm:$0x1] %v3217
      %v3219 = vld [vmem:[%s3212 + $0xc] sm:$0x1]
      %v3220 = vsel %vm3215, 0, %v3219
      %3221 = vst [vmem:[%s3212 + $0xc] sm:$0x1] %v3220
      %v3222 = vld [vmem:[%s3212 + $0x18] sm:$0x1]
      %v3223 = vsel %vm3215, 0, %v3222
      %3224 = vst [vmem:[%s3212 + $0x18] sm:$0x1] %v3223
      %v3225 = vld [vmem:[%s3212 + $0x24] sm:$0x1]
      %v3226 = vsel %vm3215, 0, %v3225
      %3227 = vst [vmem:[%s3212 + $0x24] sm:$0x1] %v3226
      %v3228 = vld [vmem:[%s3212 + $0x30] sm:$0x1]
      %v3229 = vsel %vm3215, 0, %v3228
      %3230 = vst [vmem:[%s3212 + $0x30] sm:$0x1] %v3229
      %v3231 = vld [vmem:[%s3212 + $0x3c] sm:$0x1]
      %v3232 = vsel %vm3215, 0, %v3231
      %3233 = vst [vmem:[%s3212 + $0x3c] sm:$0x1] %v3232
      %v3234 = vld [vmem:[%s3212 + $0x48] sm:$0x1]
      %v3235 = vsel %vm3215, 0, %v3234
      %3236 = vst [vmem:[%s3212 + $0x48] sm:$0x1] %v3235
      %v3237 = vld [vmem:[%s3212 + $0x54] sm:$0x1]
      %v3238 = vsel %vm3215, 0, %v3237
      %3239 = vst [vmem:[%s3212 + $0x54] sm:$0x1] %v3238
      %v3240 = vld [vmem:[%s3212 + $0x60] sm:$0x1]
      %v3241 = vsel %vm3215, 0, %v3240
      %3242 = vst [vmem:[%s3212 + $0x60] sm:$0x1] %v3241
      %v3243 = vld [vmem:[%s3212 + $0x6c] sm:$0x1]
      %v3244 = vsel %vm3215, 0, %v3243
      %3245 = vst [vmem:[%s3212 + $0x6c] sm:$0x1] %v3244
      %v3246 = vld [vmem:[%s3212 + $0x78] sm:$0x1]
      %v3247 = vsel %vm3215, 0, %v3246
      %3248 = vst [vmem:[%s3212 + $0x78] sm:$0x1] %v3247
      %v3249 = vld [vmem:[%s3212 + $0x84] sm:$0x1]
      %v3250 = vsel %vm3215, 0, %v3249
      %3251 = vst [vmem:[%s3212 + $0x84] sm:$0x1] %v3250
      %v3252 = vld [vmem:[%s3212 + $0x90] sm:$0x1]
      %v3253 = vsel %vm3215, 0, %v3252
      %3254 = vst [vmem:[%s3212 + $0x90] sm:$0x1] %v3253
      %v3255 = vld [vmem:[%s3212 + $0x9c] sm:$0x1]
      %v3256 = vsel %vm3215, 0, %v3255
      %3257 = vst [vmem:[%s3212 + $0x9c] sm:$0x1] %v3256
      %v3258 = vld [vmem:[%s3212 + $0xa8] sm:$0x1]
      %v3259 = vsel %vm3215, 0, %v3258
      %3260 = vst [vmem:[%s3212 + $0xa8] sm:$0x1] %v3259
      %v3261 = vld [vmem:[%s3212 + $0xb4] sm:$0x1]
      %v3262 = vsel %vm3215, 0, %v3261
      %3263 = vst [vmem:[%s3212 + $0xb4] sm:$0x1] %v3262
      %vm3264 = vsmask.f32 7938
      %vm3265 = vmand %vm3213, %vm3264
      %v3266 = vld [vmem:[%s3212 + $0x8] sm:$0x1]
      %v3267 = vsel %vm3265, 0, %v3266
      %3268 = vst [vmem:[%s3212 + $0x8] sm:$0x1] %v3267
      %v3269 = vld [vmem:[%s3212 + $0x14] sm:$0x1]
      %v3270 = vsel %vm3265, 0, %v3269
      %3271 = vst [vmem:[%s3212 + $0x14] sm:$0x1] %v3270
      %v3272 = vld [vmem:[%s3212 + $0x20] sm:$0x1]
      %v3273 = vsel %vm3265, 0, %v3272
      %3274 = vst [vmem:[%s3212 + $0x20] sm:$0x1] %v3273
      %v3275 = vld [vmem:[%s3212 + $0x2c] sm:$0x1]
      %v3276 = vsel %vm3265, 0, %v3275
      %3277 = vst [vmem:[%s3212 + $0x2c] sm:$0x1] %v3276
      %v3278 = vld [vmem:[%s3212 + $0x38] sm:$0x1]
      %v3279 = vsel %vm3265, 0, %v3278
      %3280 = vst [vmem:[%s3212 + $0x38] sm:$0x1] %v3279
      %v3281 = vld [vmem:[%s3212 + $0x44] sm:$0x1]
      %v3282 = vsel %vm3265, 0, %v3281
      %3283 = vst [vmem:[%s3212 + $0x44] sm:$0x1] %v3282
      %v3284 = vld [vmem:[%s3212 + $0x50] sm:$0x1]
      %v3285 = vsel %vm3265, 0, %v3284
      %3286 = vst [vmem:[%s3212 + $0x50] sm:$0x1] %v3285
      %v3287 = vld [vmem:[%s3212 + $0x5c] sm:$0x1]
      %v3288 = vsel %vm3265, 0, %v3287
      %3289 = vst [vmem:[%s3212 + $0x5c] sm:$0x1] %v3288
      %v3290 = vld [vmem:[%s3212 + $0x68] sm:$0x1]
      %v3291 = vsel %vm3265, 0, %v3290
      %3292 = vst [vmem:[%s3212 + $0x68] sm:$0x1] %v3291
      %v3293 = vld [vmem:[%s3212 + $0x74] sm:$0x1]
      %v3294 = vsel %vm3265, 0, %v3293
      %3295 = vst [vmem:[%s3212 + $0x74] sm:$0x1] %v3294
      %v3296 = vld [vmem:[%s3212 + $0x80] sm:$0x1]
      %v3297 = vsel %vm3265, 0, %v3296
      %3298 = vst [vmem:[%s3212 + $0x80] sm:$0x1] %v3297
      %v3299 = vld [vmem:[%s3212 + $0x8c] sm:$0x1]
      %v3300 = vsel %vm3265, 0, %v3299
      %3301 = vst [vmem:[%s3212 + $0x8c] sm:$0x1] %v3300
      %v3302 = vld [vmem:[%s3212 + $0x98] sm:$0x1]
      %v3303 = vsel %vm3265, 0, %v3302
      %3304 = vst [vmem:[%s3212 + $0x98] sm:$0x1] %v3303
      %v3305 = vld [vmem:[%s3212 + $0xa4] sm:$0x1]
      %v3306 = vsel %vm3265, 0, %v3305
      %3307 = vst [vmem:[%s3212 + $0xa4] sm:$0x1] %v3306
      %v3308 = vld [vmem:[%s3212 + $0xb0] sm:$0x1]
      %v3309 = vsel %vm3265, 0, %v3308
      %3310 = vst [vmem:[%s3212 + $0xb0] sm:$0x1] %v3309
      %v3311 = vld [vmem:[%s3212 + $0xbc] sm:$0x1]
      %v3312 = vsel %vm3265, 0, %v3311
      %3313 = vst [vmem:[%s3212 + $0xbc] sm:$0x1] %v3312
      %v3314 = vpack.c.bf16 %v3174, %v3173
      %v3315 = vpack.c.bf16 %v3176, %v3175
      %v3316 = vpack.c.bf16 %v3178, %v3177
      %v3317 = vpack.c.bf16 %v3180, %v3179
      %v3318 = vpack.c.bf16 %v3182, %v3181
      %v3319 = vpack.c.bf16 %v3184, %v3183
      %v3320 = vpack.c.bf16 %v3186, %v3185
      %v3321 = vpack.c.bf16 %v3188, %v3187
      %v3322 = vpack.c.bf16 %v3190, %v3189
      %v3323 = vpack.c.bf16 %v3192, %v3191
      %v3324 = vpack.c.bf16 %v3194, %v3193
      %v3325 = vpack.c.bf16 %v3196, %v3195
      %v3326 = vpack.c.bf16 %v3198, %v3197
      %v3327 = vpack.c.bf16 %v3200, %v3199
      %v3328 = vpack.c.bf16 %v3202, %v3201
      %v3329 = vpack.c.bf16 %v3204, %v3203
      %v3346 = vunpack.c.l.b16 %v3314
      %v3347 = vunpack.c.h.b16 %v3314
      %v3348 = vunpack.c.l.b16 %v3315
      %v3349 = vunpack.c.h.b16 %v3315
      %v3350 = vunpack.c.l.b16 %v3316
      %v3351 = vunpack.c.h.b16 %v3316
      %v3352 = vunpack.c.l.b16 %v3317
      %v3353 = vunpack.c.h.b16 %v3317
      %v3354 = vunpack.c.l.b16 %v3318
      %v3355 = vunpack.c.h.b16 %v3318
      %v3356 = vunpack.c.l.b16 %v3319
      %v3357 = vunpack.c.h.b16 %v3319
      %v3358 = vunpack.c.l.b16 %v3320
      %v3359 = vunpack.c.h.b16 %v3320
      %v3360 = vunpack.c.l.b16 %v3321
      %v3361 = vunpack.c.h.b16 %v3321
      %v3362 = vunpack.c.l.b16 %v3322
      %v3363 = vunpack.c.h.b16 %v3322
      %v3364 = vunpack.c.l.b16 %v3323
      %v3365 = vunpack.c.h.b16 %v3323
      %v3366 = vunpack.c.l.b16 %v3324
      %v3367 = vunpack.c.h.b16 %v3324
      %v3368 = vunpack.c.l.b16 %v3325
      %v3369 = vunpack.c.h.b16 %v3325
      %v3370 = vunpack.c.l.b16 %v3326
      %v3371 = vunpack.c.h.b16 %v3326
      %v3372 = vunpack.c.l.b16 %v3327
      %v3373 = vunpack.c.h.b16 %v3327
      %v3374 = vunpack.c.l.b16 %v3328
      %v3375 = vunpack.c.h.b16 %v3328
      %v3376 = vunpack.c.l.b16 %v3329
      %v3377 = vunpack.c.h.b16 %v3329
      %v3378 = vpack.c.b16 %v3346, %v3346
      %v3379 = vpack.c.b16 %v3347, %v3347
      %v3380 = vpack.c.b16 %v3348, %v3348
      %v3381 = vpack.c.b16 %v3349, %v3349
      %v3382 = vpack.c.b16 %v3350, %v3350
      %v3383 = vpack.c.b16 %v3351, %v3351
      %v3384 = vpack.c.b16 %v3352, %v3352
      %v3385 = vpack.c.b16 %v3353, %v3353
      %v3386 = vpack.c.b16 %v3354, %v3354
      %v3387 = vpack.c.b16 %v3355, %v3355
      %v3388 = vpack.c.b16 %v3356, %v3356
      %v3389 = vpack.c.b16 %v3357, %v3357
      %v3390 = vpack.c.b16 %v3358, %v3358
      %v3391 = vpack.c.b16 %v3359, %v3359
      %v3392 = vpack.c.b16 %v3360, %v3360
      %v3393 = vpack.c.b16 %v3361, %v3361
      %v3394 = vpack.c.b16 %v3362, %v3362
      %v3395 = vpack.c.b16 %v3363, %v3363
      %v3396 = vpack.c.b16 %v3364, %v3364
      %v3397 = vpack.c.b16 %v3365, %v3365
      %v3398 = vpack.c.b16 %v3366, %v3366
      %v3399 = vpack.c.b16 %v3367, %v3367
      %v3400 = vpack.c.b16 %v3368, %v3368
      %v3401 = vpack.c.b16 %v3369, %v3369
      %v3402 = vpack.c.b16 %v3370, %v3370
      %v3403 = vpack.c.b16 %v3371, %v3371
      %v3404 = vpack.c.b16 %v3372, %v3372
      %v3405 = vpack.c.b16 %v3373, %v3373
      %v3406 = vpack.c.b16 %v3374, %v3374
      %v3407 = vpack.c.b16 %v3375, %v3375
      %v3408 = vpack.c.b16 %v3376, %v3376
      %v3409 = vpack.c.b16 %v3377, %v3377
      %vm3410 = vsmask.f32 4368
      %vm3411 = vmor %vm3214, %vm3410
      %v3413 = vshrl.u32 %v3378, 16
      %v3415 = vrot.slane %v3413, 7
      %v3416 = vshll.u32 %v3378, 16
      %v3418 = vor.u32 %v3415, %v3416
      %v3419 = vrot.slane %v3415, 4
      %v3421 = vshrl.u32 %v3379, 16
      %v3423 = vrot.slane %v3421, 7
      %v3424 = vshll.u32 %v3379, 16
      %v3426 = vor.u32 %v3423, %v3424
      %v3427 = vsel %vm3411, %v3419, %v3426
      %v3428 = vrot.slane %v3423, 4
      %v3430 = vshrl.u32 %v3380, 16
      %v3432 = vrot.slane %v3430, 7
      %v3433 = vshll.u32 %v3380, 16
      %v3435 = vor.u32 %v3432, %v3433
      %v3436 = vrot.slane %v3432, 4
      %v3438 = vshrl.u32 %v3381, 16
      %v3440 = vrot.slane %v3438, 7
      %v3441 = vshll.u32 %v3381, 16
      %v3443 = vor.u32 %v3440, %v3441
      %v3444 = vsel %vm3411, %v3436, %v3443
      %v3445 = vrot.slane %v3440, 4
      %v3447 = vshrl.u32 %v3382, 16
      %v3449 = vrot.slane %v3447, 7
      %v3450 = vshll.u32 %v3382, 16
      %v3452 = vor.u32 %v3449, %v3450
      %v3453 = vrot.slane %v3449, 4
      %v3455 = vshrl.u32 %v3383, 16
      %v3457 = vrot.slane %v3455, 7
      %v3458 = vshll.u32 %v3383, 16
      %v3460 = vor.u32 %v3457, %v3458
      %v3461 = vsel %vm3411, %v3453, %v3460
      %v3462 = vrot.slane %v3457, 4
      %v3464 = vshrl.u32 %v3384, 16
      %v3466 = vrot.slane %v3464, 7
      %v3467 = vshll.u32 %v3384, 16
      %v3469 = vor.u32 %v3466, %v3467
      %v3470 = vrot.slane %v3466, 4
      %v3472 = vshrl.u32 %v3385, 16
      %v3474 = vrot.slane %v3472, 7
      %v3475 = vshll.u32 %v3385, 16
      %v3477 = vor.u32 %v3474, %v3475
      %v3478 = vsel %vm3411, %v3470, %v3477
      %v3479 = vrot.slane %v3474, 4
      %v3481 = vshrl.u32 %v3386, 16
      %v3483 = vrot.slane %v3481, 7
      %v3484 = vshll.u32 %v3386, 16
      %v3486 = vor.u32 %v3483, %v3484
      %v3487 = vrot.slane %v3483, 4
      %v3489 = vshrl.u32 %v3387, 16
      %v3491 = vrot.slane %v3489, 7
      %v3492 = vshll.u32 %v3387, 16
      %v3494 = vor.u32 %v3491, %v3492
      %v3495 = vsel %vm3411, %v3487, %v3494
      %v3496 = vrot.slane %v3491, 4
      %v3498 = vshrl.u32 %v3388, 16
      %v3500 = vrot.slane %v3498, 7
      %v3501 = vshll.u32 %v3388, 16
      %v3503 = vor.u32 %v3500, %v3501
      %v3504 = vrot.slane %v3500, 4
      %v3506 = vshrl.u32 %v3389, 16
      %v3508 = vrot.slane %v3506, 7
      %v3509 = vshll.u32 %v3389, 16
      %v3511 = vor.u32 %v3508, %v3509
      %v3512 = vsel %vm3411, %v3504, %v3511
      %v3513 = vrot.slane %v3508, 4
      %v3515 = vshrl.u32 %v3390, 16
      %v3517 = vrot.slane %v3515, 7
      %v3518 = vshll.u32 %v3390, 16
      %v3520 = vor.u32 %v3517, %v3518
      %v3521 = vrot.slane %v3517, 4
      %v3523 = vshrl.u32 %v3391, 16
      %v3525 = vrot.slane %v3523, 7
      %v3526 = vshll.u32 %v3391, 16
      %v3528 = vor.u32 %v3525, %v3526
      %v3529 = vsel %vm3411, %v3521, %v3528
      %v3530 = vrot.slane %v3525, 4
      %v3532 = vshrl.u32 %v3392, 16
      %v3534 = vrot.slane %v3532, 7
      %v3535 = vshll.u32 %v3392, 16
      %v3537 = vor.u32 %v3534, %v3535
      %v3538 = vrot.slane %v3534, 4
      %v3540 = vshrl.u32 %v3393, 16
      %v3542 = vrot.slane %v3540, 7
      %v3543 = vshll.u32 %v3393, 16
      %v3545 = vor.u32 %v3542, %v3543
      %v3546 = vsel %vm3411, %v3538, %v3545
      %v3547 = vrot.slane %v3542, 4
      %v3549 = vshrl.u32 %v3394, 16
      %v3551 = vrot.slane %v3549, 7
      %v3552 = vshll.u32 %v3394, 16
      %v3554 = vor.u32 %v3551, %v3552
      %v3555 = vrot.slane %v3551, 4
      %v3557 = vshrl.u32 %v3395, 16
      %v3559 = vrot.slane %v3557, 7
      %v3560 = vshll.u32 %v3395, 16
      %v3562 = vor.u32 %v3559, %v3560
      %v3563 = vsel %vm3411, %v3555, %v3562
      %v3564 = vrot.slane %v3559, 4
      %v3566 = vshrl.u32 %v3396, 16
      %v3568 = vrot.slane %v3566, 7
      %v3569 = vshll.u32 %v3396, 16
      %v3571 = vor.u32 %v3568, %v3569
      %v3572 = vrot.slane %v3568, 4
      %v3574 = vshrl.u32 %v3397, 16
      %v3576 = vrot.slane %v3574, 7
      %v3577 = vshll.u32 %v3397, 16
      %v3579 = vor.u32 %v3576, %v3577
      %v3580 = vsel %vm3411, %v3572, %v3579
      %v3581 = vrot.slane %v3576, 4
      %v3583 = vshrl.u32 %v3398, 16
      %v3585 = vrot.slane %v3583, 7
      %v3586 = vshll.u32 %v3398, 16
      %v3588 = vor.u32 %v3585, %v3586
      %v3589 = vrot.slane %v3585, 4
      %v3591 = vshrl.u32 %v3399, 16
      %v3593 = vrot.slane %v3591, 7
      %v3594 = vshll.u32 %v3399, 16
      %v3596 = vor.u32 %v3593, %v3594
      %v3597 = vsel %vm3411, %v3589, %v3596
      %v3598 = vrot.slane %v3593, 4
      %v3600 = vshrl.u32 %v3400, 16
      %v3602 = vrot.slane %v3600, 7
      %v3603 = vshll.u32 %v3400, 16
      %v3605 = vor.u32 %v3602, %v3603
      %v3606 = vrot.slane %v3602, 4
      %v3608 = vshrl.u32 %v3401, 16
      %v3610 = vrot.slane %v3608, 7
      %v3611 = vshll.u32 %v3401, 16
      %v3613 = vor.u32 %v3610, %v3611
      %v3614 = vsel %vm3411, %v3606, %v3613
      %v3615 = vrot.slane %v3610, 4
      %v3617 = vshrl.u32 %v3402, 16
      %v3619 = vrot.slane %v3617, 7
      %v3620 = vshll.u32 %v3402, 16
      %v3622 = vor.u32 %v3619, %v3620
      %v3623 = vrot.slane %v3619, 4
      %v3625 = vshrl.u32 %v3403, 16
      %v3627 = vrot.slane %v3625, 7
      %v3628 = vshll.u32 %v3403, 16
      %v3630 = vor.u32 %v3627, %v3628
      %v3631 = vsel %vm3411, %v3623, %v3630
      %v3632 = vrot.slane %v3627, 4
      %v3634 = vshrl.u32 %v3404, 16
      %v3636 = vrot.slane %v3634, 7
      %v3637 = vshll.u32 %v3404, 16
      %v3639 = vor.u32 %v3636, %v3637
      %v3640 = vrot.slane %v3636, 4
      %v3642 = vshrl.u32 %v3405, 16
      %v3644 = vrot.slane %v3642, 7
      %v3645 = vshll.u32 %v3405, 16
      %v3647 = vor.u32 %v3644, %v3645
      %v3648 = vsel %vm3411, %v3640, %v3647
      %v3649 = vrot.slane %v3644, 4
      %v3651 = vshrl.u32 %v3406, 16
      %v3653 = vrot.slane %v3651, 7
      %v3654 = vshll.u32 %v3406, 16
      %v3656 = vor.u32 %v3653, %v3654
      %v3657 = vrot.slane %v3653, 4
      %v3659 = vshrl.u32 %v3407, 16
      %v3661 = vrot.slane %v3659, 7
      %v3662 = vshll.u32 %v3407, 16
      %v3664 = vor.u32 %v3661, %v3662
      %v3665 = vsel %vm3411, %v3657, %v3664
      %v3666 = vrot.slane %v3661, 4
      %v3668 = vshrl.u32 %v3408, 16
      %v3670 = vrot.slane %v3668, 7
      %v3671 = vshll.u32 %v3408, 16
      %v3673 = vor.u32 %v3670, %v3671
      %v3674 = vrot.slane %v3670, 4
      %v3676 = vshrl.u32 %v3409, 16
      %v3678 = vrot.slane %v3676, 7
      %v3679 = vshll.u32 %v3409, 16
      %v3681 = vor.u32 %v3678, %v3679
      %v3682 = vsel %vm3411, %v3674, %v3681
      %v3683 = vrot.slane %v3678, 4
      %vm3732 = vcmask 1043456
      %vm3733 = vmand %vm3732, %vm3264
      %v3734 = vld [vmem:[%s3212] sm:$0xf]
      %v3735 = vsel %vm3733, %v3418, %v3734
      %3736 = vst [vmem:[%s3212] sm:$0xf] %v3735
      %3737 = vst [vmem:[%s3212 + $0x4] sm:$0xf] %v3427
      %v3738 = vld [vmem:[%s3212 + $0x8] sm:$0x1]
      %v3739 = vsel %vm3215, %v3428, %v3738
      %3740 = vst [vmem:[%s3212 + $0x8] sm:$0x1] %v3739
      %v3741 = vld [vmem:[%s3212 + $0xc] sm:$0xf]
      %v3742 = vsel %vm3733, %v3435, %v3741
      %3743 = vst [vmem:[%s3212 + $0xc] sm:$0xf] %v3742
      %3744 = vst [vmem:[%s3212 + $0x10] sm:$0xf] %v3444
      %v3745 = vld [vmem:[%s3212 + $0x14] sm:$0x1]
      %v3746 = vsel %vm3215, %v3445, %v3745
      %3747 = vst [vmem:[%s3212 + $0x14] sm:$0x1] %v3746
      %v3748 = vld [vmem:[%s3212 + $0x18] sm:$0xf]
      %v3749 = vsel %vm3733, %v3452, %v3748
      %3750 = vst [vmem:[%s3212 + $0x18] sm:$0xf] %v3749
      %3751 = vst [vmem:[%s3212 + $0x1c] sm:$0xf] %v3461
      %v3752 = vld [vmem:[%s3212 + $0x20] sm:$0x1]
      %v3753 = vsel %vm3215, %v3462, %v3752
      %3754 = vst [vmem:[%s3212 + $0x20] sm:$0x1] %v3753
      %v3755 = vld [vmem:[%s3212 + $0x24] sm:$0xf]
      %v3756 = vsel %vm3733, %v3469, %v3755
      %3757 = vst [vmem:[%s3212 + $0x24] sm:$0xf] %v3756
      %3758 = vst [vmem:[%s3212 + $0x28] sm:$0xf] %v3478
      %v3759 = vld [vmem:[%s3212 + $0x2c] sm:$0x1]
      %v3760 = vsel %vm3215, %v3479, %v3759
      %3761 = vst [vmem:[%s3212 + $0x2c] sm:$0x1] %v3760
      %v3762 = vld [vmem:[%s3212 + $0x30] sm:$0xf]
      %v3763 = vsel %vm3733, %v3486, %v3762
      %3764 = vst [vmem:[%s3212 + $0x30] sm:$0xf] %v3763
      %3765 = vst [vmem:[%s3212 + $0x34] sm:$0xf] %v3495
      %v3766 = vld [vmem:[%s3212 + $0x38] sm:$0x1]
      %v3767 = vsel %vm3215, %v3496, %v3766
      %3768 = vst [vmem:[%s3212 + $0x38] sm:$0x1] %v3767
      %v3769 = vld [vmem:[%s3212 + $0x3c] sm:$0xf]
      %v3770 = vsel %vm3733, %v3503, %v3769
      %3771 = vst [vmem:[%s3212 + $0x3c] sm:$0xf] %v3770
      %3772 = vst [vmem:[%s3212 + $0x40] sm:$0xf] %v3512
      %v3773 = vld [vmem:[%s3212 + $0x44] sm:$0x1]
      %v3774 = vsel %vm3215, %v3513, %v3773
      %3775 = vst [vmem:[%s3212 + $0x44] sm:$0x1] %v3774
      %v3776 = vld [vmem:[%s3212 + $0x48] sm:$0xf]
      %v3777 = vsel %vm3733, %v3520, %v3776
      %3778 = vst [vmem:[%s3212 + $0x48] sm:$0xf] %v3777
      %3779 = vst [vmem:[%s3212 + $0x4c] sm:$0xf] %v3529
      %v3780 = vld [vmem:[%s3212 + $0x50] sm:$0x1]
      %v3781 = vsel %vm3215, %v3530, %v3780
      %3782 = vst [vmem:[%s3212 + $0x50] sm:$0x1] %v3781
      %v3783 = vld [vmem:[%s3212 + $0x54] sm:$0xf]
      %v3784 = vsel %vm3733, %v3537, %v3783
      %3785 = vst [vmem:[%s3212 + $0x54] sm:$0xf] %v3784
      %3786 = vst [vmem:[%s3212 + $0x58] sm:$0xf] %v3546
      %v3787 = vld [vmem:[%s3212 + $0x5c] sm:$0x1]
      %v3788 = vsel %vm3215, %v3547, %v3787
      %3789 = vst [vmem:[%s3212 + $0x5c] sm:$0x1] %v3788
      %v3790 = vld [vmem:[%s3212 + $0x60] sm:$0xf]
      %v3791 = vsel %vm3733, %v3554, %v3790
      %3792 = vst [vmem:[%s3212 + $0x60] sm:$0xf] %v3791
      %3793 = vst [vmem:[%s3212 + $0x64] sm:$0xf] %v3563
      %v3794 = vld [vmem:[%s3212 + $0x68] sm:$0x1]
      %v3795 = vsel %vm3215, %v3564, %v3794
      %3796 = vst [vmem:[%s3212 + $0x68] sm:$0x1] %v3795
      %v3797 = vld [vmem:[%s3212 + $0x6c] sm:$0xf]
      %v3798 = vsel %vm3733, %v3571, %v3797
      %3799 = vst [vmem:[%s3212 + $0x6c] sm:$0xf] %v3798
      %3800 = vst [vmem:[%s3212 + $0x70] sm:$0xf] %v3580
      %v3801 = vld [vmem:[%s3212 + $0x74] sm:$0x1]
      %v3802 = vsel %vm3215, %v3581, %v3801
      %3803 = vst [vmem:[%s3212 + $0x74] sm:$0x1] %v3802
      %v3804 = vld [vmem:[%s3212 + $0x78] sm:$0xf]
      %v3805 = vsel %vm3733, %v3588, %v3804
      %3806 = vst [vmem:[%s3212 + $0x78] sm:$0xf] %v3805
      %3807 = vst [vmem:[%s3212 + $0x7c] sm:$0xf] %v3597
      %v3808 = vld [vmem:[%s3212 + $0x80] sm:$0x1]
      %v3809 = vsel %vm3215, %v3598, %v3808
      %3810 = vst [vmem:[%s3212 + $0x80] sm:$0x1] %v3809
      %v3811 = vld [vmem:[%s3212 + $0x84] sm:$0xf]
      %v3812 = vsel %vm3733, %v3605, %v3811
      %3813 = vst [vmem:[%s3212 + $0x84] sm:$0xf] %v3812
      %3814 = vst [vmem:[%s3212 + $0x88] sm:$0xf] %v3614
      %v3815 = vld [vmem:[%s3212 + $0x8c] sm:$0x1]
      %v3816 = vsel %vm3215, %v3615, %v3815
      %3817 = vst [vmem:[%s3212 + $0x8c] sm:$0x1] %v3816
      %v3818 = vld [vmem:[%s3212 + $0x90] sm:$0xf]
      %v3819 = vsel %vm3733, %v3622, %v3818
      %3820 = vst [vmem:[%s3212 + $0x90] sm:$0xf] %v3819
      %3821 = vst [vmem:[%s3212 + $0x94] sm:$0xf] %v3631
      %v3822 = vld [vmem:[%s3212 + $0x98] sm:$0x1]
      %v3823 = vsel %vm3215, %v3632, %v3822
      %3824 = vst [vmem:[%s3212 + $0x98] sm:$0x1] %v3823
      %v3825 = vld [vmem:[%s3212 + $0x9c] sm:$0xf]
      %v3826 = vsel %vm3733, %v3639, %v3825
      %3827 = vst [vmem:[%s3212 + $0x9c] sm:$0xf] %v3826
      %3828 = vst [vmem:[%s3212 + $0xa0] sm:$0xf] %v3648
      %v3829 = vld [vmem:[%s3212 + $0xa4] sm:$0x1]
      %v3830 = vsel %vm3215, %v3649, %v3829
      %3831 = vst [vmem:[%s3212 + $0xa4] sm:$0x1] %v3830
      %v3832 = vld [vmem:[%s3212 + $0xa8] sm:$0xf]
      %v3833 = vsel %vm3733, %v3656, %v3832
      %3834 = vst [vmem:[%s3212 + $0xa8] sm:$0xf] %v3833
      %3835 = vst [vmem:[%s3212 + $0xac] sm:$0xf] %v3665
      %v3836 = vld [vmem:[%s3212 + $0xb0] sm:$0x1]
      %v3837 = vsel %vm3215, %v3666, %v3836
      %3838 = vst [vmem:[%s3212 + $0xb0] sm:$0x1] %v3837
      %v3839 = vld [vmem:[%s3212 + $0xb4] sm:$0xf]
      %v3840 = vsel %vm3733, %v3673, %v3839
      %3841 = vst [vmem:[%s3212 + $0xb4] sm:$0xf] %v3840
      %3842 = vst [vmem:[%s3212 + $0xb8] sm:$0xf] %v3682
      %v3843 = vld [vmem:[%s3212 + $0xbc] sm:$0x1]
      %v3844 = vsel %vm3215, %v3683, %v3843
      %3845 = vst [vmem:[%s3212 + $0xbc] sm:$0x1] %v3844
      %v3846 = vld [vmem:[#allocation2] sm:$0xf]
      %v3847 = vld [vmem:[#allocation2 + $0x4] sm:$0xf]
      %v3848 = vld [vmem:[#allocation2 + $0xc] sm:$0xf]
      %v3849 = vld [vmem:[#allocation2 + $0x10] sm:$0xf]
      %v3850 = vld [vmem:[#allocation2 + $0x18] sm:$0xf]
      %v3851 = vld [vmem:[#allocation2 + $0x1c] sm:$0xf]
      %v3852 = vld [vmem:[#allocation2 + $0x24] sm:$0xf]
      %v3853 = vld [vmem:[#allocation2 + $0x28] sm:$0xf]
      %v3854 = vld [vmem:[#allocation2 + $0x30] sm:$0xf]
      %v3855 = vld [vmem:[#allocation2 + $0x34] sm:$0xf]
      %v3856 = vld [vmem:[#allocation2 + $0x3c] sm:$0xf]
      %v3857 = vld [vmem:[#allocation2 + $0x40] sm:$0xf]
      %v3858 = vld [vmem:[#allocation2 + $0x48] sm:$0xf]
      %v3859 = vld [vmem:[#allocation2 + $0x4c] sm:$0xf]
      %v3860 = vld [vmem:[#allocation2 + $0x54] sm:$0xf]
      %v3861 = vld [vmem:[#allocation2 + $0x58] sm:$0xf]
      %v3862 = vld [vmem:[#allocation2 + $0x60] sm:$0xf]
      %v3863 = vld [vmem:[#allocation2 + $0x64] sm:$0xf]
      %v3864 = vld [vmem:[#allocation2 + $0x6c] sm:$0xf]
      %v3865 = vld [vmem:[#allocation2 + $0x70] sm:$0xf]
      %v3866 = vld [vmem:[#allocation2 + $0x78] sm:$0xf]
      %v3867 = vld [vmem:[#allocation2 + $0x7c] sm:$0xf]
      %v3868 = vld [vmem:[#allocation2 + $0x84] sm:$0xf]
      %v3869 = vld [vmem:[#allocation2 + $0x88] sm:$0xf]
      %v3870 = vld [vmem:[#allocation2 + $0x90] sm:$0xf]
      %v3871 = vld [vmem:[#allocation2 + $0x94] sm:$0xf]
      %v3872 = vld [vmem:[#allocation2 + $0x9c] sm:$0xf]
      %v3873 = vld [vmem:[#allocation2 + $0xa0] sm:$0xf]
      %v3874 = vld [vmem:[#allocation2 + $0xa8] sm:$0xf]
      %v3875 = vld [vmem:[#allocation2 + $0xac] sm:$0xf]
      %v3876 = vld [vmem:[#allocation2 + $0xb4] sm:$0xf]
      %v3877 = vld [vmem:[#allocation2 + $0xb8] sm:$0xf]
      %v3878 = vld [vmem:[#allocation2 + $0x8] sm:$0x1]
      %v3879 = vld [vmem:[#allocation2 + $0x14] sm:$0x1]
      %v3880 = vld [vmem:[#allocation2 + $0x20] sm:$0x1]
      %v3881 = vld [vmem:[#allocation2 + $0x2c] sm:$0x1]
      %v3882 = vld [vmem:[#allocation2 + $0x38] sm:$0x1]
      %v3883 = vld [vmem:[#allocation2 + $0x44] sm:$0x1]
      %v3884 = vld [vmem:[#allocation2 + $0x50] sm:$0x1]
      %v3885 = vld [vmem:[#allocation2 + $0x5c] sm:$0x1]
      %v3886 = vld [vmem:[#allocation2 + $0x68] sm:$0x1]
      %v3887 = vld [vmem:[#allocation2 + $0x74] sm:$0x1]
      %v3888 = vld [vmem:[#allocation2 + $0x80] sm:$0x1]
      %v3889 = vld [vmem:[#allocation2 + $0x8c] sm:$0x1]
      %v3890 = vld [vmem:[#allocation2 + $0x98] sm:$0x1]
      %v3891 = vld [vmem:[#allocation2 + $0xa4] sm:$0x1]
      %v3892 = vld [vmem:[#allocation2 + $0xb0] sm:$0x1]
      %v3893 = vld [vmem:[#allocation2 + $0xbc] sm:$0x1]
      %v3894 = vld [vmem:[#allocation2] sm:$0xe]
      %v3895 = vld [vmem:[#allocation2 + $0xc] sm:$0xe]
      %v3896 = vld [vmem:[#allocation2 + $0x18] sm:$0xe]
      %v3897 = vld [vmem:[#allocation2 + $0x24] sm:$0xe]
      %v3898 = vld [vmem:[#allocation2 + $0x30] sm:$0xe]
      %v3899 = vld [vmem:[#allocation2 + $0x3c] sm:$0xe]
      %v3900 = vld [vmem:[#allocation2 + $0x48] sm:$0xe]
      %v3901 = vld [vmem:[#allocation2 + $0x54] sm:$0xe]
      %v3902 = vld [vmem:[#allocation2 + $0x60] sm:$0xe]
      %v3903 = vld [vmem:[#allocation2 + $0x6c] sm:$0xe]
      %v3904 = vld [vmem:[#allocation2 + $0x78] sm:$0xe]
      %v3905 = vld [vmem:[#allocation2 + $0x84] sm:$0xe]
      %v3906 = vld [vmem:[#allocation2 + $0x90] sm:$0xe]
      %v3907 = vld [vmem:[#allocation2 + $0x9c] sm:$0xe]
      %v3908 = vld [vmem:[#allocation2 + $0xa8] sm:$0xe]
      %v3909 = vld [vmem:[#allocation2 + $0xb4] sm:$0xe]
      %v3910 = vld [vmem:[%s3212] sm:$0xf]
      %v3911 = vld [vmem:[%s3212 + $0x4] sm:$0xf]
      %v3912 = vld [vmem:[%s3212 + $0xc] sm:$0xf]
      %v3913 = vld [vmem:[%s3212 + $0x10] sm:$0xf]
      %v3914 = vld [vmem:[%s3212 + $0x18] sm:$0xf]
      %v3915 = vld [vmem:[%s3212 + $0x1c] sm:$0xf]
      %v3916 = vld [vmem:[%s3212 + $0x24] sm:$0xf]
      %v3917 = vld [vmem:[%s3212 + $0x28] sm:$0xf]
      %v3918 = vld [vmem:[%s3212 + $0x30] sm:$0xf]
      %v3919 = vld [vmem:[%s3212 + $0x34] sm:$0xf]
      %v3920 = vld [vmem:[%s3212 + $0x3c] sm:$0xf]
      %v3921 = vld [vmem:[%s3212 + $0x40] sm:$0xf]
      %v3922 = vld [vmem:[%s3212 + $0x48] sm:$0xf]
      %v3923 = vld [vmem:[%s3212 + $0x4c] sm:$0xf]
      %v3924 = vld [vmem:[%s3212 + $0x54] sm:$0xf]
      %v3925 = vld [vmem:[%s3212 + $0x58] sm:$0xf]
      %v3926 = vld [vmem:[%s3212 + $0x60] sm:$0xf]
      %v3927 = vld [vmem:[%s3212 + $0x64] sm:$0xf]
      %v3928 = vld [vmem:[%s3212 + $0x6c] sm:$0xf]
      %v3929 = vld [vmem:[%s3212 + $0x70] sm:$0xf]
      %v3930 = vld [vmem:[%s3212 + $0x78] sm:$0xf]
      %v3931 = vld [vmem:[%s3212 + $0x7c] sm:$0xf]
      %v3932 = vld [vmem:[%s3212 + $0x84] sm:$0xf]
      %v3933 = vld [vmem:[%s3212 + $0x88] sm:$0xf]
      %v3934 = vld [vmem:[%s3212 + $0x90] sm:$0xf]
      %v3935 = vld [vmem:[%s3212 + $0x94] sm:$0xf]
      %v3936 = vld [vmem:[%s3212 + $0x9c] sm:$0xf]
      %v3937 = vld [vmem:[%s3212 + $0xa0] sm:$0xf]
      %v3938 = vld [vmem:[%s3212 + $0xa8] sm:$0xf]
      %v3939 = vld [vmem:[%s3212 + $0xac] sm:$0xf]
      %v3940 = vld [vmem:[%s3212 + $0xb4] sm:$0xf]
      %v3941 = vld [vmem:[%s3212 + $0xb8] sm:$0xf]
      %v3942 = vld [vmem:[%s3212 + $0x8] sm:$0x1]
      %v3943 = vld [vmem:[%s3212 + $0x14] sm:$0x1]
      %v3944 = vld [vmem:[%s3212 + $0x20] sm:$0x1]
      %v3945 = vld [vmem:[%s3212 + $0x2c] sm:$0x1]
      %v3946 = vld [vmem:[%s3212 + $0x38] sm:$0x1]
      %v3947 = vld [vmem:[%s3212 + $0x44] sm:$0x1]
      %v3948 = vld [vmem:[%s3212 + $0x50] sm:$0x1]
      %v3949 = vld [vmem:[%s3212 + $0x5c] sm:$0x1]
      %v3950 = vld [vmem:[%s3212 + $0x68] sm:$0x1]
      %v3951 = vld [vmem:[%s3212 + $0x74] sm:$0x1]
      %v3952 = vld [vmem:[%s3212 + $0x80] sm:$0x1]
      %v3953 = vld [vmem:[%s3212 + $0x8c] sm:$0x1]
      %v3954 = vld [vmem:[%s3212 + $0x98] sm:$0x1]
      %v3955 = vld [vmem:[%s3212 + $0xa4] sm:$0x1]
      %v3956 = vld [vmem:[%s3212 + $0xb0] sm:$0x1]
      %v3957 = vld [vmem:[%s3212 + $0xbc] sm:$0x1]
      %v3958 = vld [vmem:[%s3212] sm:$0xe]
      %v3959 = vld [vmem:[%s3212 + $0xc] sm:$0xe]
      %v3960 = vld [vmem:[%s3212 + $0x18] sm:$0xe]
      %v3961 = vld [vmem:[%s3212 + $0x24] sm:$0xe]
      %v3962 = vld [vmem:[%s3212 + $0x30] sm:$0xe]
      %v3963 = vld [vmem:[%s3212 + $0x3c] sm:$0xe]
      %v3964 = vld [vmem:[%s3212 + $0x48] sm:$0xe]
      %v3965 = vld [vmem:[%s3212 + $0x54] sm:$0xe]
      %v3966 = vld [vmem:[%s3212 + $0x60] sm:$0xe]
      %v3967 = vld [vmem:[%s3212 + $0x6c] sm:$0xe]
      %v3968 = vld [vmem:[%s3212 + $0x78] sm:$0xe]
      %v3969 = vld [vmem:[%s3212 + $0x84] sm:$0xe]
      %v3970 = vld [vmem:[%s3212 + $0x90] sm:$0xe]
      %v3971 = vld [vmem:[%s3212 + $0x9c] sm:$0xe]
      %v3972 = vld [vmem:[%s3212 + $0xa8] sm:$0xe]
      %v3973 = vld [vmem:[%s3212 + $0xb4] sm:$0xe]
      %s3974 = scalar_lea.vmem [#allocation2], 24
      %v3975 = vld [vmem:[%s3974] sm:$0xf]
      %v3976 = vld [vmem:[%s3974 + $0x4] sm:$0xf]
      %v3977 = vld [vmem:[%s3974 + $0xc] sm:$0xf]
      %v3978 = vld [vmem:[%s3974 + $0x10] sm:$0xf]
      %v3979 = vld [vmem:[%s3974 + $0x18] sm:$0xf]
      %v3980 = vld [vmem:[%s3974 + $0x1c] sm:$0xf]
      %v3981 = vld [vmem:[%s3974 + $0x24] sm:$0xf]
      %v3982 = vld [vmem:[%s3974 + $0x28] sm:$0xf]
      %v3983 = vld [vmem:[%s3974 + $0x30] sm:$0xf]
      %v3984 = vld [vmem:[%s3974 + $0x34] sm:$0xf]
      %v3985 = vld [vmem:[%s3974 + $0x3c] sm:$0xf]
      %v3986 = vld [vmem:[%s3974 + $0x40] sm:$0xf]
      %v3987 = vld [vmem:[%s3974 + $0x48] sm:$0xf]
      %v3988 = vld [vmem:[%s3974 + $0x4c] sm:$0xf]
      %v3989 = vld [vmem:[%s3974 + $0x54] sm:$0xf]
      %v3990 = vld [vmem:[%s3974 + $0x58] sm:$0xf]
      %v3991 = vld [vmem:[%s3974 + $0x60] sm:$0xf]
      %v3992 = vld [vmem:[%s3974 + $0x64] sm:$0xf]
      %v3993 = vld [vmem:[%s3974 + $0x6c] sm:$0xf]
      %v3994 = vld [vmem:[%s3974 + $0x70] sm:$0xf]
      %v3995 = vld [vmem:[%s3974 + $0x78] sm:$0xf]
      %v3996 = vld [vmem:[%s3974 + $0x7c] sm:$0xf]
      %v3997 = vld [vmem:[%s3974 + $0x84] sm:$0xf]
      %v3998 = vld [vmem:[%s3974 + $0x88] sm:$0xf]
      %v3999 = vld [vmem:[%s3974 + $0x90] sm:$0xf]
      %v4000 = vld [vmem:[%s3974 + $0x94] sm:$0xf]
      %v4001 = vld [vmem:[%s3974 + $0x9c] sm:$0xf]
      %v4002 = vld [vmem:[%s3974 + $0xa0] sm:$0xf]
      %v4003 = vld [vmem:[%s3974 + $0xa8] sm:$0xf]
      %v4004 = vld [vmem:[%s3974 + $0xac] sm:$0xf]
      %v4005 = vld [vmem:[%s3974 + $0xb4] sm:$0xf]
      %v4006 = vld [vmem:[%s3974 + $0xb8] sm:$0xf]
      %v4007 = vld [vmem:[%s3974 + $0x8] sm:$0x1]
      %v4008 = vld [vmem:[%s3974 + $0x14] sm:$0x1]
      %v4009 = vld [vmem:[%s3974 + $0x20] sm:$0x1]
      %v4010 = vld [vmem:[%s3974 + $0x2c] sm:$0x1]
      %v4011 = vld [vmem:[%s3974 + $0x38] sm:$0x1]
      %v4012 = vld [vmem:[%s3974 + $0x44] sm:$0x1]
      %v4013 = vld [vmem:[%s3974 + $0x50] sm:$0x1]
      %v4014 = vld [vmem:[%s3974 + $0x5c] sm:$0x1]
      %v4015 = vld [vmem:[%s3974 + $0x68] sm:$0x1]
      %v4016 = vld [vmem:[%s3974 + $0x74] sm:$0x1]
      %v4017 = vld [vmem:[%s3974 + $0x80] sm:$0x1]
      %v4018 = vld [vmem:[%s3974 + $0x8c] sm:$0x1]
      %v4019 = vld [vmem:[%s3974 + $0x98] sm:$0x1]
      %v4020 = vld [vmem:[%s3974 + $0xa4] sm:$0x1]
      %v4021 = vld [vmem:[%s3974 + $0xb0] sm:$0x1]
      %v4022 = vld [vmem:[%s3974 + $0xbc] sm:$0x1]
      %v4023 = vld [vmem:[%s3974] sm:$0xe]
      %v4024 = vld [vmem:[%s3974 + $0xc] sm:$0xe]
      %v4025 = vld [vmem:[%s3974 + $0x18] sm:$0xe]
      %v4026 = vld [vmem:[%s3974 + $0x24] sm:$0xe]
      %v4027 = vld [vmem:[%s3974 + $0x30] sm:$0xe]
      %v4028 = vld [vmem:[%s3974 + $0x3c] sm:$0xe]
      %v4029 = vld [vmem:[%s3974 + $0x48] sm:$0xe]
      %v4030 = vld [vmem:[%s3974 + $0x54] sm:$0xe]
      %v4031 = vld [vmem:[%s3974 + $0x60] sm:$0xe]
      %v4032 = vld [vmem:[%s3974 + $0x6c] sm:$0xe]
      %v4033 = vld [vmem:[%s3974 + $0x78] sm:$0xe]
      %v4034 = vld [vmem:[%s3974 + $0x84] sm:$0xe]
      %v4035 = vld [vmem:[%s3974 + $0x90] sm:$0xe]
      %v4036 = vld [vmem:[%s3974 + $0x9c] sm:$0xe]
      %v4037 = vld [vmem:[%s3974 + $0xa8] sm:$0xe]
      %v4038 = vld [vmem:[%s3974 + $0xb4] sm:$0xe]
      %v4071 = vunpack.c.l.b16 %v3846
      %v4072 = vunpack.c.l.b16 %v3847
      %v4073 = vunpack.c.l.b16 %v3848
      %v4074 = vunpack.c.l.b16 %v3849
      %v4075 = vunpack.c.l.b16 %v3850
      %v4076 = vunpack.c.l.b16 %v3851
      %v4077 = vunpack.c.l.b16 %v3852
      %v4078 = vunpack.c.l.b16 %v3853
      %v4079 = vunpack.c.l.b16 %v3854
      %v4080 = vunpack.c.l.b16 %v3855
      %v4081 = vunpack.c.l.b16 %v3856
      %v4082 = vunpack.c.l.b16 %v3857
      %v4083 = vunpack.c.l.b16 %v3858
      %v4084 = vunpack.c.l.b16 %v3859
      %v4085 = vunpack.c.l.b16 %v3860
      %v4086 = vunpack.c.l.b16 %v3861
      %v4087 = vunpack.c.l.b16 %v3862
      %v4088 = vunpack.c.l.b16 %v3863
      %v4089 = vunpack.c.l.b16 %v3864
      %v4090 = vunpack.c.l.b16 %v3865
      %v4091 = vunpack.c.l.b16 %v3866
      %v4092 = vunpack.c.l.b16 %v3867
      %v4093 = vunpack.c.l.b16 %v3868
      %v4094 = vunpack.c.l.b16 %v3869
      %v4095 = vunpack.c.l.b16 %v3870
      %v4096 = vunpack.c.l.b16 %v3871
      %v4097 = vunpack.c.l.b16 %v3872
      %v4098 = vunpack.c.l.b16 %v3873
      %v4099 = vunpack.c.l.b16 %v3874
      %v4100 = vunpack.c.l.b16 %v3875
      %v4101 = vunpack.c.l.b16 %v3876
      %v4102 = vunpack.c.l.b16 %v3877
      %v4103 = vpack.c.b16 %v4072, %v4071
      %v4104 = vpack.c.b16 %v4074, %v4073
      %v4105 = vpack.c.b16 %v4076, %v4075
      %v4106 = vpack.c.b16 %v4078, %v4077
      %v4107 = vpack.c.b16 %v4080, %v4079
      %v4108 = vpack.c.b16 %v4082, %v4081
      %v4109 = vpack.c.b16 %v4084, %v4083
      %v4110 = vpack.c.b16 %v4086, %v4085
      %v4111 = vpack.c.b16 %v4088, %v4087
      %v4112 = vpack.c.b16 %v4090, %v4089
      %v4113 = vpack.c.b16 %v4092, %v4091
      %v4114 = vpack.c.b16 %v4094, %v4093
      %v4115 = vpack.c.b16 %v4096, %v4095
      %v4116 = vpack.c.b16 %v4098, %v4097
      %v4117 = vpack.c.b16 %v4100, %v4099
      %v4118 = vpack.c.b16 %v4102, %v4101
      %v4151 = vunpack.c.l.b16 %v3878
      %v4152 = vunpack.c.l.b16 %v3879
      %v4153 = vunpack.c.l.b16 %v3880
      %v4154 = vunpack.c.l.b16 %v3881
      %v4155 = vunpack.c.l.b16 %v3882
      %v4156 = vunpack.c.l.b16 %v3883
      %v4157 = vunpack.c.l.b16 %v3884
      %v4158 = vunpack.c.l.b16 %v3885
      %v4159 = vunpack.c.l.b16 %v3886
      %v4160 = vunpack.c.l.b16 %v3887
      %v4161 = vunpack.c.l.b16 %v3888
      %v4162 = vunpack.c.l.b16 %v3889
      %v4163 = vunpack.c.l.b16 %v3890
      %v4164 = vunpack.c.l.b16 %v3891
      %v4165 = vunpack.c.l.b16 %v3892
      %v4166 = vunpack.c.l.b16 %v3893
      %v4167 = vpack.c.b16 %v4151, %v4151
      %v4168 = vpack.c.b16 %v4152, %v4152
      %v4169 = vpack.c.b16 %v4153, %v4153
      %v4170 = vpack.c.b16 %v4154, %v4154
      %v4171 = vpack.c.b16 %v4155, %v4155
      %v4172 = vpack.c.b16 %v4156, %v4156
      %v4173 = vpack.c.b16 %v4157, %v4157
      %v4174 = vpack.c.b16 %v4158, %v4158
      %v4175 = vpack.c.b16 %v4159, %v4159
      %v4176 = vpack.c.b16 %v4160, %v4160
      %v4177 = vpack.c.b16 %v4161, %v4161
      %v4178 = vpack.c.b16 %v4162, %v4162
      %v4179 = vpack.c.b16 %v4163, %v4163
      %v4180 = vpack.c.b16 %v4164, %v4164
      %v4181 = vpack.c.b16 %v4165, %v4165
      %v4182 = vpack.c.b16 %v4166, %v4166
      %v4184 = vshrl.u32 %v4103, 16
      %v4186 = vshll.u32 %v4103, 16
      %v4188 = vrot.slane %v4186, 1
      %v4189 = vor.u32 %v4184, %v4188
      %v4191 = vshll.u32 %v4167, 16
      %v4193 = vrot.slane %v4191, 1
      %v4194 = vsel %vm537, %v4189, %v4193
      %v4196 = vshrl.u32 %v4104, 16
      %v4198 = vshll.u32 %v4104, 16
      %v4200 = vrot.slane %v4198, 1
      %v4201 = vor.u32 %v4196, %v4200
      %v4203 = vshll.u32 %v4168, 16
      %v4205 = vrot.slane %v4203, 1
      %v4206 = vsel %vm537, %v4201, %v4205
      %v4208 = vshrl.u32 %v4105, 16
      %v4210 = vshll.u32 %v4105, 16
      %v4212 = vrot.slane %v4210, 1
      %v4213 = vor.u32 %v4208, %v4212
      %v4215 = vshll.u32 %v4169, 16
      %v4217 = vrot.slane %v4215, 1
      %v4218 = vsel %vm537, %v4213, %v4217
      %v4220 = vshrl.u32 %v4106, 16
      %v4222 = vshll.u32 %v4106, 16
      %v4224 = vrot.slane %v4222, 1
      %v4225 = vor.u32 %v4220, %v4224
      %v4227 = vshll.u32 %v4170, 16
      %v4229 = vrot.slane %v4227, 1
      %v4230 = vsel %vm537, %v4225, %v4229
      %v4232 = vshrl.u32 %v4107, 16
      %v4234 = vshll.u32 %v4107, 16
      %v4236 = vrot.slane %v4234, 1
      %v4237 = vor.u32 %v4232, %v4236
      %v4239 = vshll.u32 %v4171, 16
      %v4241 = vrot.slane %v4239, 1
      %v4242 = vsel %vm537, %v4237, %v4241
      %v4244 = vshrl.u32 %v4108, 16
      %v4246 = vshll.u32 %v4108, 16
      %v4248 = vrot.slane %v4246, 1
      %v4249 = vor.u32 %v4244, %v4248
      %v4251 = vshll.u32 %v4172, 16
      %v4253 = vrot.slane %v4251, 1
      %v4254 = vsel %vm537, %v4249, %v4253
      %v4256 = vshrl.u32 %v4109, 16
      %v4258 = vshll.u32 %v4109, 16
      %v4260 = vrot.slane %v4258, 1
      %v4261 = vor.u32 %v4256, %v4260
      %v4263 = vshll.u32 %v4173, 16
      %v4265 = vrot.slane %v4263, 1
      %v4266 = vsel %vm537, %v4261, %v4265
      %v4268 = vshrl.u32 %v4110, 16
      %v4270 = vshll.u32 %v4110, 16
      %v4272 = vrot.slane %v4270, 1
      %v4273 = vor.u32 %v4268, %v4272
      %v4275 = vshll.u32 %v4174, 16
      %v4277 = vrot.slane %v4275, 1
      %v4278 = vsel %vm537, %v4273, %v4277
      %v4280 = vshrl.u32 %v4111, 16
      %v4282 = vshll.u32 %v4111, 16
      %v4284 = vrot.slane %v4282, 1
      %v4285 = vor.u32 %v4280, %v4284
      %v4287 = vshll.u32 %v4175, 16
      %v4289 = vrot.slane %v4287, 1
      %v4290 = vsel %vm537, %v4285, %v4289
      %v4292 = vshrl.u32 %v4112, 16
      %v4294 = vshll.u32 %v4112, 16
      %v4296 = vrot.slane %v4294, 1
      %v4297 = vor.u32 %v4292, %v4296
      %v4299 = vshll.u32 %v4176, 16
      %v4301 = vrot.slane %v4299, 1
      %v4302 = vsel %vm537, %v4297, %v4301
      %v4304 = vshrl.u32 %v4113, 16
      %v4306 = vshll.u32 %v4113, 16
      %v4308 = vrot.slane %v4306, 1
      %v4309 = vor.u32 %v4304, %v4308
      %v4311 = vshll.u32 %v4177, 16
      %v4313 = vrot.slane %v4311, 1
      %v4314 = vsel %vm537, %v4309, %v4313
      %v4316 = vshrl.u32 %v4114, 16
      %v4318 = vshll.u32 %v4114, 16
      %v4320 = vrot.slane %v4318, 1
      %v4321 = vor.u32 %v4316, %v4320
      %v4323 = vshll.u32 %v4178, 16
      %v4325 = vrot.slane %v4323, 1
      %v4326 = vsel %vm537, %v4321, %v4325
      %v4328 = vshrl.u32 %v4115, 16
      %v4330 = vshll.u32 %v4115, 16
      %v4332 = vrot.slane %v4330, 1
      %v4333 = vor.u32 %v4328, %v4332
      %v4335 = vshll.u32 %v4179, 16
      %v4337 = vrot.slane %v4335, 1
      %v4338 = vsel %vm537, %v4333, %v4337
      %v4340 = vshrl.u32 %v4116, 16
      %v4342 = vshll.u32 %v4116, 16
      %v4344 = vrot.slane %v4342, 1
      %v4345 = vor.u32 %v4340, %v4344
      %v4347 = vshll.u32 %v4180, 16
      %v4349 = vrot.slane %v4347, 1
      %v4350 = vsel %vm537, %v4345, %v4349
      %v4352 = vshrl.u32 %v4117, 16
      %v4354 = vshll.u32 %v4117, 16
      %v4356 = vrot.slane %v4354, 1
      %v4357 = vor.u32 %v4352, %v4356
      %v4359 = vshll.u32 %v4181, 16
      %v4361 = vrot.slane %v4359, 1
      %v4362 = vsel %vm537, %v4357, %v4361
      %v4364 = vshrl.u32 %v4118, 16
      %v4366 = vshll.u32 %v4118, 16
      %v4368 = vrot.slane %v4366, 1
      %v4369 = vor.u32 %v4364, %v4368
      %v4371 = vshll.u32 %v4182, 16
      %v4373 = vrot.slane %v4371, 1
      %v4374 = vsel %vm537, %v4369, %v4373
      %v4407 = vunpack.c.l.b16 %v3894
      %v4408 = vunpack.c.l.b16 %v3895
      %v4409 = vunpack.c.l.b16 %v3896
      %v4410 = vunpack.c.l.b16 %v3897
      %v4411 = vunpack.c.l.b16 %v3898
      %v4412 = vunpack.c.l.b16 %v3899
      %v4413 = vunpack.c.l.b16 %v3900
      %v4414 = vunpack.c.l.b16 %v3901
      %v4415 = vunpack.c.l.b16 %v3902
      %v4416 = vunpack.c.l.b16 %v3903
      %v4417 = vunpack.c.l.b16 %v3904
      %v4418 = vunpack.c.l.b16 %v3905
      %v4419 = vunpack.c.l.b16 %v3906
      %v4420 = vunpack.c.l.b16 %v3907
      %v4421 = vunpack.c.l.b16 %v3908
      %v4422 = vunpack.c.l.b16 %v3909
      %v4423 = vpack.c.b16 %v4072, %v4407
      %v4424 = vpack.c.b16 %v4074, %v4408
      %v4425 = vpack.c.b16 %v4076, %v4409
      %v4426 = vpack.c.b16 %v4078, %v4410
      %v4427 = vpack.c.b16 %v4080, %v4411
      %v4428 = vpack.c.b16 %v4082, %v4412
      %v4429 = vpack.c.b16 %v4084, %v4413
      %v4430 = vpack.c.b16 %v4086, %v4414
      %v4431 = vpack.c.b16 %v4088, %v4415
      %v4432 = vpack.c.b16 %v4090, %v4416
      %v4433 = vpack.c.b16 %v4092, %v4417
      %v4434 = vpack.c.b16 %v4094, %v4418
      %v4435 = vpack.c.b16 %v4096, %v4419
      %v4436 = vpack.c.b16 %v4098, %v4420
      %v4437 = vpack.c.b16 %v4100, %v4421
      %v4438 = vpack.c.b16 %v4102, %v4422
      %v4439 = vrot.slane %v4423, 1
      %v4440 = vrot.slane %v4167, 1
      %v4441 = vsel %vm794, %v4439, %v4440
      %v4442 = vrot.slane %v4424, 1
      %v4443 = vrot.slane %v4168, 1
      %v4444 = vsel %vm794, %v4442, %v4443
      %v4445 = vrot.slane %v4425, 1
      %v4446 = vrot.slane %v4169, 1
      %v4447 = vsel %vm794, %v4445, %v4446
      %v4448 = vrot.slane %v4426, 1
      %v4449 = vrot.slane %v4170, 1
      %v4450 = vsel %vm794, %v4448, %v4449
      %v4451 = vrot.slane %v4427, 1
      %v4452 = vrot.slane %v4171, 1
      %v4453 = vsel %vm794, %v4451, %v4452
      %v4454 = vrot.slane %v4428, 1
      %v4455 = vrot.slane %v4172, 1
      %v4456 = vsel %vm794, %v4454, %v4455
      %v4457 = vrot.slane %v4429, 1
      %v4458 = vrot.slane %v4173, 1
      %v4459 = vsel %vm794, %v4457, %v4458
      %v4460 = vrot.slane %v4430, 1
      %v4461 = vrot.slane %v4174, 1
      %v4462 = vsel %vm794, %v4460, %v4461
      %v4463 = vrot.slane %v4431, 1
      %v4464 = vrot.slane %v4175, 1
      %v4465 = vsel %vm794, %v4463, %v4464
      %v4466 = vrot.slane %v4432, 1
      %v4467 = vrot.slane %v4176, 1
      %v4468 = vsel %vm794, %v4466, %v4467
      %v4469 = vrot.slane %v4433, 1
      %v4470 = vrot.slane %v4177, 1
      %v4471 = vsel %vm794, %v4469, %v4470
      %v4472 = vrot.slane %v4434, 1
      %v4473 = vrot.slane %v4178, 1
      %v4474 = vsel %vm794, %v4472, %v4473
      %v4475 = vrot.slane %v4435, 1
      %v4476 = vrot.slane %v4179, 1
      %v4477 = vsel %vm794, %v4475, %v4476
      %v4478 = vrot.slane %v4436, 1
      %v4479 = vrot.slane %v4180, 1
      %v4480 = vsel %vm794, %v4478, %v4479
      %v4481 = vrot.slane %v4437, 1
      %v4482 = vrot.slane %v4181, 1
      %v4483 = vsel %vm794, %v4481, %v4482
      %v4484 = vrot.slane %v4438, 1
      %v4485 = vrot.slane %v4182, 1
      %v4486 = vsel %vm794, %v4484, %v4485
      %v4535 = vunpack.c.l.b16 %v3910
      %v4536 = vunpack.c.l.b16 %v3911
      %v4537 = vunpack.c.l.b16 %v3912
      %v4538 = vunpack.c.l.b16 %v3913
      %v4539 = vunpack.c.l.b16 %v3914
      %v4540 = vunpack.c.l.b16 %v3915
      %v4541 = vunpack.c.l.b16 %v3916
      %v4542 = vunpack.c.l.b16 %v3917
      %v4543 = vunpack.c.l.b16 %v3918
      %v4544 = vunpack.c.l.b16 %v3919
      %v4545 = vunpack.c.l.b16 %v3920
      %v4546 = vunpack.c.l.b16 %v3921
      %v4547 = vunpack.c.l.b16 %v3922
      %v4548 = vunpack.c.l.b16 %v3923
      %v4549 = vunpack.c.l.b16 %v3924
      %v4550 = vunpack.c.l.b16 %v3925
      %v4551 = vunpack.c.l.b16 %v3926
      %v4552 = vunpack.c.l.b16 %v3927
      %v4553 = vunpack.c.l.b16 %v3928
      %v4554 = vunpack.c.l.b16 %v3929
      %v4555 = vunpack.c.l.b16 %v3930
      %v4556 = vunpack.c.l.b16 %v3931
      %v4557 = vunpack.c.l.b16 %v3932
      %v4558 = vunpack.c.l.b16 %v3933
      %v4559 = vunpack.c.l.b16 %v3934
      %v4560 = vunpack.c.l.b16 %v3935
      %v4561 = vunpack.c.l.b16 %v3936
      %v4562 = vunpack.c.l.b16 %v3937
      %v4563 = vunpack.c.l.b16 %v3938
      %v4564 = vunpack.c.l.b16 %v3939
      %v4565 = vunpack.c.l.b16 %v3940
      %v4566 = vunpack.c.l.b16 %v3941
      %v4567 = vpack.c.b16 %v4536, %v4535
      %v4568 = vpack.c.b16 %v4538, %v4537
      %v4569 = vpack.c.b16 %v4540, %v4539
      %v4570 = vpack.c.b16 %v4542, %v4541
      %v4571 = vpack.c.b16 %v4544, %v4543
      %v4572 = vpack.c.b16 %v4546, %v4545
      %v4573 = vpack.c.b16 %v4548, %v4547
      %v4574 = vpack.c.b16 %v4550, %v4549
      %v4575 = vpack.c.b16 %v4552, %v4551
      %v4576 = vpack.c.b16 %v4554, %v4553
      %v4577 = vpack.c.b16 %v4556, %v4555
      %v4578 = vpack.c.b16 %v4558, %v4557
      %v4579 = vpack.c.b16 %v4560, %v4559
      %v4580 = vpack.c.b16 %v4562, %v4561
      %v4581 = vpack.c.b16 %v4564, %v4563
      %v4582 = vpack.c.b16 %v4566, %v4565
      %v4615 = vunpack.c.l.b16 %v3942
      %v4616 = vunpack.c.l.b16 %v3943
      %v4617 = vunpack.c.l.b16 %v3944
      %v4618 = vunpack.c.l.b16 %v3945
      %v4619 = vunpack.c.l.b16 %v3946
      %v4620 = vunpack.c.l.b16 %v3947
      %v4621 = vunpack.c.l.b16 %v3948
      %v4622 = vunpack.c.l.b16 %v3949
      %v4623 = vunpack.c.l.b16 %v3950
      %v4624 = vunpack.c.l.b16 %v3951
      %v4625 = vunpack.c.l.b16 %v3952
      %v4626 = vunpack.c.l.b16 %v3953
      %v4627 = vunpack.c.l.b16 %v3954
      %v4628 = vunpack.c.l.b16 %v3955
      %v4629 = vunpack.c.l.b16 %v3956
      %v4630 = vunpack.c.l.b16 %v3957
      %v4631 = vpack.c.b16 %v4615, %v4615
      %v4632 = vpack.c.b16 %v4616, %v4616
      %v4633 = vpack.c.b16 %v4617, %v4617
      %v4634 = vpack.c.b16 %v4618, %v4618
      %v4635 = vpack.c.b16 %v4619, %v4619
      %v4636 = vpack.c.b16 %v4620, %v4620
      %v4637 = vpack.c.b16 %v4621, %v4621
      %v4638 = vpack.c.b16 %v4622, %v4622
      %v4639 = vpack.c.b16 %v4623, %v4623
      %v4640 = vpack.c.b16 %v4624, %v4624
      %v4641 = vpack.c.b16 %v4625, %v4625
      %v4642 = vpack.c.b16 %v4626, %v4626
      %v4643 = vpack.c.b16 %v4627, %v4627
      %v4644 = vpack.c.b16 %v4628, %v4628
      %v4645 = vpack.c.b16 %v4629, %v4629
      %v4646 = vpack.c.b16 %v4630, %v4630
      %v4648 = vshrl.u32 %v4567, 16
      %v4650 = vshll.u32 %v4567, 16
      %v4652 = vrot.slane %v4650, 1
      %v4653 = vor.u32 %v4648, %v4652
      %v4655 = vshll.u32 %v4631, 16
      %v4657 = vrot.slane %v4655, 1
      %v4658 = vsel %vm537, %v4653, %v4657
      %v4660 = vshrl.u32 %v4568, 16
      %v4662 = vshll.u32 %v4568, 16
      %v4664 = vrot.slane %v4662, 1
      %v4665 = vor.u32 %v4660, %v4664
      %v4667 = vshll.u32 %v4632, 16
      %v4669 = vrot.slane %v4667, 1
      %v4670 = vsel %vm537, %v4665, %v4669
      %v4672 = vshrl.u32 %v4569, 16
      %v4674 = vshll.u32 %v4569, 16
      %v4676 = vrot.slane %v4674, 1
      %v4677 = vor.u32 %v4672, %v4676
      %v4679 = vshll.u32 %v4633, 16
      %v4681 = vrot.slane %v4679, 1
      %v4682 = vsel %vm537, %v4677, %v4681
      %v4684 = vshrl.u32 %v4570, 16
      %v4686 = vshll.u32 %v4570, 16
      %v4688 = vrot.slane %v4686, 1
      %v4689 = vor.u32 %v4684, %v4688
      %v4691 = vshll.u32 %v4634, 16
      %v4693 = vrot.slane %v4691, 1
      %v4694 = vsel %vm537, %v4689, %v4693
      %v4696 = vshrl.u32 %v4571, 16
      %v4698 = vshll.u32 %v4571, 16
      %v4700 = vrot.slane %v4698, 1
      %v4701 = vor.u32 %v4696, %v4700
      %v4703 = vshll.u32 %v4635, 16
      %v4705 = vrot.slane %v4703, 1
      %v4706 = vsel %vm537, %v4701, %v4705
      %v4708 = vshrl.u32 %v4572, 16
      %v4710 = vshll.u32 %v4572, 16
      %v4712 = vrot.slane %v4710, 1
      %v4713 = vor.u32 %v4708, %v4712
      %v4715 = vshll.u32 %v4636, 16
      %v4717 = vrot.slane %v4715, 1
      %v4718 = vsel %vm537, %v4713, %v4717
      %v4720 = vshrl.u32 %v4573, 16
      %v4722 = vshll.u32 %v4573, 16
      %v4724 = vrot.slane %v4722, 1
      %v4725 = vor.u32 %v4720, %v4724
      %v4727 = vshll.u32 %v4637, 16
      %v4729 = vrot.slane %v4727, 1
      %v4730 = vsel %vm537, %v4725, %v4729
      %v4732 = vshrl.u32 %v4574, 16
      %v4734 = vshll.u32 %v4574, 16
      %v4736 = vrot.slane %v4734, 1
      %v4737 = vor.u32 %v4732, %v4736
      %v4739 = vshll.u32 %v4638, 16
      %v4741 = vrot.slane %v4739, 1
      %v4742 = vsel %vm537, %v4737, %v4741
      %v4744 = vshrl.u32 %v4575, 16
      %v4746 = vshll.u32 %v4575, 16
      %v4748 = vrot.slane %v4746, 1
      %v4749 = vor.u32 %v4744, %v4748
      %v4751 = vshll.u32 %v4639, 16
      %v4753 = vrot.slane %v4751, 1
      %v4754 = vsel %vm537, %v4749, %v4753
      %v4756 = vshrl.u32 %v4576, 16
      %v4758 = vshll.u32 %v4576, 16
      %v4760 = vrot.slane %v4758, 1
      %v4761 = vor.u32 %v4756, %v4760
      %v4763 = vshll.u32 %v4640, 16
      %v4765 = vrot.slane %v4763, 1
      %v4766 = vsel %vm537, %v4761, %v4765
      %v4768 = vshrl.u32 %v4577, 16
      %v4770 = vshll.u32 %v4577, 16
      %v4772 = vrot.slane %v4770, 1
      %v4773 = vor.u32 %v4768, %v4772
      %v4775 = vshll.u32 %v4641, 16
      %v4777 = vrot.slane %v4775, 1
      %v4778 = vsel %vm537, %v4773, %v4777
      %v4780 = vshrl.u32 %v4578, 16
      %v4782 = vshll.u32 %v4578, 16
      %v4784 = vrot.slane %v4782, 1
      %v4785 = vor.u32 %v4780, %v4784
      %v4787 = vshll.u32 %v4642, 16
      %v4789 = vrot.slane %v4787, 1
      %v4790 = vsel %vm537, %v4785, %v4789
      %v4792 = vshrl.u32 %v4579, 16
      %v4794 = vshll.u32 %v4579, 16
      %v4796 = vrot.slane %v4794, 1
      %v4797 = vor.u32 %v4792, %v4796
      %v4799 = vshll.u32 %v4643, 16
      %v4801 = vrot.slane %v4799, 1
      %v4802 = vsel %vm537, %v4797, %v4801
      %v4804 = vshrl.u32 %v4580, 16
      %v4806 = vshll.u32 %v4580, 16
      %v4808 = vrot.slane %v4806, 1
      %v4809 = vor.u32 %v4804, %v4808
      %v4811 = vshll.u32 %v4644, 16
      %v4813 = vrot.slane %v4811, 1
      %v4814 = vsel %vm537, %v4809, %v4813
      %v4816 = vshrl.u32 %v4581, 16
      %v4818 = vshll.u32 %v4581, 16
      %v4820 = vrot.slane %v4818, 1
      %v4821 = vor.u32 %v4816, %v4820
      %v4823 = vshll.u32 %v4645, 16
      %v4825 = vrot.slane %v4823, 1
      %v4826 = vsel %vm537, %v4821, %v4825
      %v4828 = vshrl.u32 %v4582, 16
      %v4830 = vshll.u32 %v4582, 16
      %v4832 = vrot.slane %v4830, 1
      %v4833 = vor.u32 %v4828, %v4832
      %v4835 = vshll.u32 %v4646, 16
      %v4837 = vrot.slane %v4835, 1
      %v4838 = vsel %vm537, %v4833, %v4837
      %v4871 = vunpack.c.l.b16 %v3958
      %v4872 = vunpack.c.l.b16 %v3959
      %v4873 = vunpack.c.l.b16 %v3960
      %v4874 = vunpack.c.l.b16 %v3961
      %v4875 = vunpack.c.l.b16 %v3962
      %v4876 = vunpack.c.l.b16 %v3963
      %v4877 = vunpack.c.l.b16 %v3964
      %v4878 = vunpack.c.l.b16 %v3965
      %v4879 = vunpack.c.l.b16 %v3966
      %v4880 = vunpack.c.l.b16 %v3967
      %v4881 = vunpack.c.l.b16 %v3968
      %v4882 = vunpack.c.l.b16 %v3969
      %v4883 = vunpack.c.l.b16 %v3970
      %v4884 = vunpack.c.l.b16 %v3971
      %v4885 = vunpack.c.l.b16 %v3972
      %v4886 = vunpack.c.l.b16 %v3973
      %v4887 = vpack.c.b16 %v4536, %v4871
      %v4888 = vpack.c.b16 %v4538, %v4872
      %v4889 = vpack.c.b16 %v4540, %v4873
      %v4890 = vpack.c.b16 %v4542, %v4874
      %v4891 = vpack.c.b16 %v4544, %v4875
      %v4892 = vpack.c.b16 %v4546, %v4876
      %v4893 = vpack.c.b16 %v4548, %v4877
      %v4894 = vpack.c.b16 %v4550, %v4878
      %v4895 = vpack.c.b16 %v4552, %v4879
      %v4896 = vpack.c.b16 %v4554, %v4880
      %v4897 = vpack.c.b16 %v4556, %v4881
      %v4898 = vpack.c.b16 %v4558, %v4882
      %v4899 = vpack.c.b16 %v4560, %v4883
      %v4900 = vpack.c.b16 %v4562, %v4884
      %v4901 = vpack.c.b16 %v4564, %v4885
      %v4902 = vpack.c.b16 %v4566, %v4886
      %v4903 = vrot.slane %v4887, 1
      %v4904 = vrot.slane %v4631, 1
      %v4905 = vsel %vm794, %v4903, %v4904
      %v4906 = vrot.slane %v4888, 1
      %v4907 = vrot.slane %v4632, 1
      %v4908 = vsel %vm794, %v4906, %v4907
      %v4909 = vrot.slane %v4889, 1
      %v4910 = vrot.slane %v4633, 1
      %v4911 = vsel %vm794, %v4909, %v4910
      %v4912 = vrot.slane %v4890, 1
      %v4913 = vrot.slane %v4634, 1
      %v4914 = vsel %vm794, %v4912, %v4913
      %v4915 = vrot.slane %v4891, 1
      %v4916 = vrot.slane %v4635, 1
      %v4917 = vsel %vm794, %v4915, %v4916
      %v4918 = vrot.slane %v4892, 1
      %v4919 = vrot.slane %v4636, 1
      %v4920 = vsel %vm794, %v4918, %v4919
      %v4921 = vrot.slane %v4893, 1
      %v4922 = vrot.slane %v4637, 1
      %v4923 = vsel %vm794, %v4921, %v4922
      %v4924 = vrot.slane %v4894, 1
      %v4925 = vrot.slane %v4638, 1
      %v4926 = vsel %vm794, %v4924, %v4925
      %v4927 = vrot.slane %v4895, 1
      %v4928 = vrot.slane %v4639, 1
      %v4929 = vsel %vm794, %v4927, %v4928
      %v4930 = vrot.slane %v4896, 1
      %v4931 = vrot.slane %v4640, 1
      %v4932 = vsel %vm794, %v4930, %v4931
      %v4933 = vrot.slane %v4897, 1
      %v4934 = vrot.slane %v4641, 1
      %v4935 = vsel %vm794, %v4933, %v4934
      %v4936 = vrot.slane %v4898, 1
      %v4937 = vrot.slane %v4642, 1
      %v4938 = vsel %vm794, %v4936, %v4937
      %v4939 = vrot.slane %v4899, 1
      %v4940 = vrot.slane %v4643, 1
      %v4941 = vsel %vm794, %v4939, %v4940
      %v4942 = vrot.slane %v4900, 1
      %v4943 = vrot.slane %v4644, 1
      %v4944 = vsel %vm794, %v4942, %v4943
      %v4945 = vrot.slane %v4901, 1
      %v4946 = vrot.slane %v4645, 1
      %v4947 = vsel %vm794, %v4945, %v4946
      %v4948 = vrot.slane %v4902, 1
      %v4949 = vrot.slane %v4646, 1
      %v4950 = vsel %vm794, %v4948, %v4949
      %v4999 = vunpack.c.l.b16 %v3975
      %v5000 = vunpack.c.l.b16 %v3976
      %v5001 = vunpack.c.l.b16 %v3977
      %v5002 = vunpack.c.l.b16 %v3978
      %v5003 = vunpack.c.l.b16 %v3979
      %v5004 = vunpack.c.l.b16 %v3980
      %v5005 = vunpack.c.l.b16 %v3981
      %v5006 = vunpack.c.l.b16 %v3982
      %v5007 = vunpack.c.l.b16 %v3983
      %v5008 = vunpack.c.l.b16 %v3984
      %v5009 = vunpack.c.l.b16 %v3985
      %v5010 = vunpack.c.l.b16 %v3986
      %v5011 = vunpack.c.l.b16 %v3987
      %v5012 = vunpack.c.l.b16 %v3988
      %v5013 = vunpack.c.l.b16 %v3989
      %v5014 = vunpack.c.l.b16 %v3990
      %v5015 = vunpack.c.l.b16 %v3991
      %v5016 = vunpack.c.l.b16 %v3992
      %v5017 = vunpack.c.l.b16 %v3993
      %v5018 = vunpack.c.l.b16 %v3994
      %v5019 = vunpack.c.l.b16 %v3995
      %v5020 = vunpack.c.l.b16 %v3996
      %v5021 = vunpack.c.l.b16 %v3997
      %v5022 = vunpack.c.l.b16 %v3998
      %v5023 = vunpack.c.l.b16 %v3999
      %v5024 = vunpack.c.l.b16 %v4000
      %v5025 = vunpack.c.l.b16 %v4001
      %v5026 = vunpack.c.l.b16 %v4002
      %v5027 = vunpack.c.l.b16 %v4003
      %v5028 = vunpack.c.l.b16 %v4004
      %v5029 = vunpack.c.l.b16 %v4005
      %v5030 = vunpack.c.l.b16 %v4006
      %v5031 = vpack.c.b16 %v5000, %v4999
      %v5032 = vpack.c.b16 %v5002, %v5001
      %v5033 = vpack.c.b16 %v5004, %v5003
      %v5034 = vpack.c.b16 %v5006, %v5005
      %v5035 = vpack.c.b16 %v5008, %v5007
      %v5036 = vpack.c.b16 %v5010, %v5009
      %v5037 = vpack.c.b16 %v5012, %v5011
      %v5038 = vpack.c.b16 %v5014, %v5013
      %v5039 = vpack.c.b16 %v5016, %v5015
      %v5040 = vpack.c.b16 %v5018, %v5017
      %v5041 = vpack.c.b16 %v5020, %v5019
      %v5042 = vpack.c.b16 %v5022, %v5021
      %v5043 = vpack.c.b16 %v5024, %v5023
      %v5044 = vpack.c.b16 %v5026, %v5025
      %v5045 = vpack.c.b16 %v5028, %v5027
      %v5046 = vpack.c.b16 %v5030, %v5029
      %v5079 = vunpack.c.l.b16 %v4007
      %v5080 = vunpack.c.l.b16 %v4008
      %v5081 = vunpack.c.l.b16 %v4009
      %v5082 = vunpack.c.l.b16 %v4010
      %v5083 = vunpack.c.l.b16 %v4011
      %v5084 = vunpack.c.l.b16 %v4012
      %v5085 = vunpack.c.l.b16 %v4013
      %v5086 = vunpack.c.l.b16 %v4014
      %v5087 = vunpack.c.l.b16 %v4015
      %v5088 = vunpack.c.l.b16 %v4016
      %v5089 = vunpack.c.l.b16 %v4017
      %v5090 = vunpack.c.l.b16 %v4018
      %v5091 = vunpack.c.l.b16 %v4019
      %v5092 = vunpack.c.l.b16 %v4020
      %v5093 = vunpack.c.l.b16 %v4021
      %v5094 = vunpack.c.l.b16 %v4022
      %v5095 = vpack.c.b16 %v5079, %v5079
      %v5096 = vpack.c.b16 %v5080, %v5080
      %v5097 = vpack.c.b16 %v5081, %v5081
      %v5098 = vpack.c.b16 %v5082, %v5082
      %v5099 = vpack.c.b16 %v5083, %v5083
      %v5100 = vpack.c.b16 %v5084, %v5084
      %v5101 = vpack.c.b16 %v5085, %v5085
      %v5102 = vpack.c.b16 %v5086, %v5086
      %v5103 = vpack.c.b16 %v5087, %v5087
      %v5104 = vpack.c.b16 %v5088, %v5088
      %v5105 = vpack.c.b16 %v5089, %v5089
      %v5106 = vpack.c.b16 %v5090, %v5090
      %v5107 = vpack.c.b16 %v5091, %v5091
      %v5108 = vpack.c.b16 %v5092, %v5092
      %v5109 = vpack.c.b16 %v5093, %v5093
      %v5110 = vpack.c.b16 %v5094, %v5094
      %v5112 = vshrl.u32 %v5031, 16
      %v5114 = vshll.u32 %v5031, 16
      %v5116 = vrot.slane %v5114, 1
      %v5117 = vor.u32 %v5112, %v5116
      %v5119 = vshll.u32 %v5095, 16
      %v5121 = vrot.slane %v5119, 1
      %v5122 = vsel %vm537, %v5117, %v5121
      %v5124 = vshrl.u32 %v5032, 16
      %v5126 = vshll.u32 %v5032, 16
      %v5128 = vrot.slane %v5126, 1
      %v5129 = vor.u32 %v5124, %v5128
      %v5131 = vshll.u32 %v5096, 16
      %v5133 = vrot.slane %v5131, 1
      %v5134 = vsel %vm537, %v5129, %v5133
      %v5136 = vshrl.u32 %v5033, 16
      %v5138 = vshll.u32 %v5033, 16
      %v5140 = vrot.slane %v5138, 1
      %v5141 = vor.u32 %v5136, %v5140
      %v5143 = vshll.u32 %v5097, 16
      %v5145 = vrot.slane %v5143, 1
      %v5146 = vsel %vm537, %v5141, %v5145
      %v5148 = vshrl.u32 %v5034, 16
      %v5150 = vshll.u32 %v5034, 16
      %v5152 = vrot.slane %v5150, 1
      %v5153 = vor.u32 %v5148, %v5152
      %v5155 = vshll.u32 %v5098, 16
      %v5157 = vrot.slane %v5155, 1
      %v5158 = vsel %vm537, %v5153, %v5157
      %v5160 = vshrl.u32 %v5035, 16
      %v5162 = vshll.u32 %v5035, 16
      %v5164 = vrot.slane %v5162, 1
      %v5165 = vor.u32 %v5160, %v5164
      %v5167 = vshll.u32 %v5099, 16
      %v5169 = vrot.slane %v5167, 1
      %v5170 = vsel %vm537, %v5165, %v5169
      %v5172 = vshrl.u32 %v5036, 16
      %v5174 = vshll.u32 %v5036, 16
      %v5176 = vrot.slane %v5174, 1
      %v5177 = vor.u32 %v5172, %v5176
      %v5179 = vshll.u32 %v5100, 16
      %v5181 = vrot.slane %v5179, 1
      %v5182 = vsel %vm537, %v5177, %v5181
      %v5184 = vshrl.u32 %v5037, 16
      %v5186 = vshll.u32 %v5037, 16
      %v5188 = vrot.slane %v5186, 1
      %v5189 = vor.u32 %v5184, %v5188
      %v5191 = vshll.u32 %v5101, 16
      %v5193 = vrot.slane %v5191, 1
      %v5194 = vsel %vm537, %v5189, %v5193
      %v5196 = vshrl.u32 %v5038, 16
      %v5198 = vshll.u32 %v5038, 16
      %v5200 = vrot.slane %v5198, 1
      %v5201 = vor.u32 %v5196, %v5200
      %v5203 = vshll.u32 %v5102, 16
      %v5205 = vrot.slane %v5203, 1
      %v5206 = vsel %vm537, %v5201, %v5205
      %v5208 = vshrl.u32 %v5039, 16
      %v5210 = vshll.u32 %v5039, 16
      %v5212 = vrot.slane %v5210, 1
      %v5213 = vor.u32 %v5208, %v5212
      %v5215 = vshll.u32 %v5103, 16
      %v5217 = vrot.slane %v5215, 1
      %v5218 = vsel %vm537, %v5213, %v5217
      %v5220 = vshrl.u32 %v5040, 16
      %v5222 = vshll.u32 %v5040, 16
      %v5224 = vrot.slane %v5222, 1
      %v5225 = vor.u32 %v5220, %v5224
      %v5227 = vshll.u32 %v5104, 16
      %v5229 = vrot.slane %v5227, 1
      %v5230 = vsel %vm537, %v5225, %v5229
      %v5232 = vshrl.u32 %v5041, 16
      %v5234 = vshll.u32 %v5041, 16
      %v5236 = vrot.slane %v5234, 1
      %v5237 = vor.u32 %v5232, %v5236
      %v5239 = vshll.u32 %v5105, 16
      %v5241 = vrot.slane %v5239, 1
      %v5242 = vsel %vm537, %v5237, %v5241
      %v5244 = vshrl.u32 %v5042, 16
      %v5246 = vshll.u32 %v5042, 16
      %v5248 = vrot.slane %v5246, 1
      %v5249 = vor.u32 %v5244, %v5248
      %v5251 = vshll.u32 %v5106, 16
      %v5253 = vrot.slane %v5251, 1
      %v5254 = vsel %vm537, %v5249, %v5253
      %v5256 = vshrl.u32 %v5043, 16
      %v5258 = vshll.u32 %v5043, 16
      %v5260 = vrot.slane %v5258, 1
      %v5261 = vor.u32 %v5256, %v5260
      %v5263 = vshll.u32 %v5107, 16
      %v5265 = vrot.slane %v5263, 1
      %v5266 = vsel %vm537, %v5261, %v5265
      %v5268 = vshrl.u32 %v5044, 16
      %v5270 = vshll.u32 %v5044, 16
      %v5272 = vrot.slane %v5270, 1
      %v5273 = vor.u32 %v5268, %v5272
      %v5275 = vshll.u32 %v5108, 16
      %v5277 = vrot.slane %v5275, 1
      %v5278 = vsel %vm537, %v5273, %v5277
      %v5280 = vshrl.u32 %v5045, 16
      %v5282 = vshll.u32 %v5045, 16
      %v5284 = vrot.slane %v5282, 1
      %v5285 = vor.u32 %v5280, %v5284
      %v5287 = vshll.u32 %v5109, 16
      %v5289 = vrot.slane %v5287, 1
      %v5290 = vsel %vm537, %v5285, %v5289
      %v5292 = vshrl.u32 %v5046, 16
      %v5294 = vshll.u32 %v5046, 16
      %v5296 = vrot.slane %v5294, 1
      %v5297 = vor.u32 %v5292, %v5296
      %v5299 = vshll.u32 %v5110, 16
      %v5301 = vrot.slane %v5299, 1
      %v5302 = vsel %vm537, %v5297, %v5301
      %v5335 = vunpack.c.l.b16 %v4023
      %v5336 = vunpack.c.l.b16 %v4024
      %v5337 = vunpack.c.l.b16 %v4025
      %v5338 = vunpack.c.l.b16 %v4026
      %v5339 = vunpack.c.l.b16 %v4027
      %v5340 = vunpack.c.l.b16 %v4028
      %v5341 = vunpack.c.l.b16 %v4029
      %v5342 = vunpack.c.l.b16 %v4030
      %v5343 = vunpack.c.l.b16 %v4031
      %v5344 = vunpack.c.l.b16 %v4032
      %v5345 = vunpack.c.l.b16 %v4033
      %v5346 = vunpack.c.l.b16 %v4034
      %v5347 = vunpack.c.l.b16 %v4035
      %v5348 = vunpack.c.l.b16 %v4036
      %v5349 = vunpack.c.l.b16 %v4037
      %v5350 = vunpack.c.l.b16 %v4038
      %v5351 = vpack.c.b16 %v5000, %v5335
      %v5352 = vpack.c.b16 %v5002, %v5336
      %v5353 = vpack.c.b16 %v5004, %v5337
      %v5354 = vpack.c.b16 %v5006, %v5338
      %v5355 = vpack.c.b16 %v5008, %v5339
      %v5356 = vpack.c.b16 %v5010, %v5340
      %v5357 = vpack.c.b16 %v5012, %v5341
      %v5358 = vpack.c.b16 %v5014, %v5342
      %v5359 = vpack.c.b16 %v5016, %v5343
      %v5360 = vpack.c.b16 %v5018, %v5344
      %v5361 = vpack.c.b16 %v5020, %v5345
      %v5362 = vpack.c.b16 %v5022, %v5346
      %v5363 = vpack.c.b16 %v5024, %v5347
      %v5364 = vpack.c.b16 %v5026, %v5348
      %v5365 = vpack.c.b16 %v5028, %v5349
      %v5366 = vpack.c.b16 %v5030, %v5350
      %v5367 = vrot.slane %v5351, 1
      %v5368 = vrot.slane %v5095, 1
      %v5369 = vsel %vm794, %v5367, %v5368
      %v5370 = vrot.slane %v5352, 1
      %v5371 = vrot.slane %v5096, 1
      %v5372 = vsel %vm794, %v5370, %v5371
      %v5373 = vrot.slane %v5353, 1
      %v5374 = vrot.slane %v5097, 1
      %v5375 = vsel %vm794, %v5373, %v5374
      %v5376 = vrot.slane %v5354, 1
      %v5377 = vrot.slane %v5098, 1
      %v5378 = vsel %vm794, %v5376, %v5377
      %v5379 = vrot.slane %v5355, 1
      %v5380 = vrot.slane %v5099, 1
      %v5381 = vsel %vm794, %v5379, %v5380
      %v5382 = vrot.slane %v5356, 1
      %v5383 = vrot.slane %v5100, 1
      %v5384 = vsel %vm794, %v5382, %v5383
      %v5385 = vrot.slane %v5357, 1
      %v5386 = vrot.slane %v5101, 1
      %v5387 = vsel %vm794, %v5385, %v5386
      %v5388 = vrot.slane %v5358, 1
      %v5389 = vrot.slane %v5102, 1
      %v5390 = vsel %vm794, %v5388, %v5389
      %v5391 = vrot.slane %v5359, 1
      %v5392 = vrot.slane %v5103, 1
      %v5393 = vsel %vm794, %v5391, %v5392
      %v5394 = vrot.slane %v5360, 1
      %v5395 = vrot.slane %v5104, 1
      %v5396 = vsel %vm794, %v5394, %v5395
      %v5397 = vrot.slane %v5361, 1
      %v5398 = vrot.slane %v5105, 1
      %v5399 = vsel %vm794, %v5397, %v5398
      %v5400 = vrot.slane %v5362, 1
      %v5401 = vrot.slane %v5106, 1
      %v5402 = vsel %vm794, %v5400, %v5401
      %v5403 = vrot.slane %v5363, 1
      %v5404 = vrot.slane %v5107, 1
      %v5405 = vsel %vm794, %v5403, %v5404
      %v5406 = vrot.slane %v5364, 1
      %v5407 = vrot.slane %v5108, 1
      %v5408 = vsel %vm794, %v5406, %v5407
      %v5409 = vrot.slane %v5365, 1
      %v5410 = vrot.slane %v5109, 1
      %v5411 = vsel %vm794, %v5409, %v5410
      %v5412 = vrot.slane %v5366, 1
      %v5413 = vrot.slane %v5110, 1
      %v5414 = vsel %vm794, %v5412, %v5413
      %v5431 = vld [vmem:[%s2] sm:$0xf]
      %v5432 = vld [vmem:[%s2 + $0x4] sm:$0xf]
      %v5433 = vld [vmem:[%s2 + $0x8] sm:$0xf]
      %v5434 = vld [vmem:[%s2 + $0xc] sm:$0xf]
      %v5435 = vld [vmem:[%s2 + $0x10] sm:$0xf]
      %v5436 = vld [vmem:[%s2 + $0x14] sm:$0xf]
      %v5437 = vld [vmem:[%s2 + $0x18] sm:$0xf]
      %v5438 = vld [vmem:[%s2 + $0x1c] sm:$0xf]
      %v5439 = vld [vmem:[%s2 + $0x20] sm:$0xf]
      %v5440 = vld [vmem:[%s2 + $0x24] sm:$0xf]
      %v5441 = vld [vmem:[%s2 + $0x28] sm:$0xf]
      %v5442 = vld [vmem:[%s2 + $0x2c] sm:$0xf]
      %v5443 = vld [vmem:[%s2 + $0x30] sm:$0xf]
      %v5444 = vld [vmem:[%s2 + $0x34] sm:$0xf]
      %v5445 = vld [vmem:[%s2 + $0x38] sm:$0xf]
      %v5446 = vld [vmem:[%s2 + $0x3c] sm:$0xf]
      %v5447 = vld [vmem:[%s2 + $0x40] sm:$0xf]
      %v5448 = vld [vmem:[%s2 + $0x44] sm:$0xf]
      %v5449 = vld [vmem:[%s2 + $0x48] sm:$0xf]
      %v5450 = vld [vmem:[%s2 + $0x4c] sm:$0xf]
      %v5451 = vld [vmem:[%s2 + $0x50] sm:$0xf]
      %v5452 = vld [vmem:[%s2 + $0x54] sm:$0xf]
      %v5453 = vld [vmem:[%s2 + $0x58] sm:$0xf]
      %v5454 = vld [vmem:[%s2 + $0x5c] sm:$0xf]
      %v5455 = vld [vmem:[%s2 + $0x60] sm:$0xf]
      %v5456 = vld [vmem:[%s2 + $0x64] sm:$0xf]
      %v5457 = vld [vmem:[%s2 + $0x68] sm:$0xf]
      %v5458 = vld [vmem:[%s2 + $0x6c] sm:$0xf]
      %v5459 = vld [vmem:[%s2 + $0x70] sm:$0xf]
      %v5460 = vld [vmem:[%s2 + $0x74] sm:$0xf]
      %v5461 = vld [vmem:[%s2 + $0x78] sm:$0xf]
      %v5462 = vld [vmem:[%s2 + $0x7c] sm:$0xf]
      %v5463 = vld [vmem:[%s2 + $0x80] sm:$0xf]
      %v5464 = vld [vmem:[%s2 + $0x84] sm:$0xf]
      %v5465 = vld [vmem:[%s2 + $0x88] sm:$0xf]
      %v5466 = vld [vmem:[%s2 + $0x8c] sm:$0xf]
      %v5467 = vld [vmem:[%s2 + $0x90] sm:$0xf]
      %v5468 = vld [vmem:[%s2 + $0x94] sm:$0xf]
      %v5469 = vld [vmem:[%s2 + $0x98] sm:$0xf]
      %v5470 = vld [vmem:[%s2 + $0x9c] sm:$0xf]
      %v5471 = vld [vmem:[%s2 + $0xa0] sm:$0xf]
      %v5472 = vld [vmem:[%s2 + $0xa4] sm:$0xf]
      %v5473 = vld [vmem:[%s2 + $0xa8] sm:$0xf]
      %v5474 = vld [vmem:[%s2 + $0xac] sm:$0xf]
      %v5475 = vld [vmem:[%s2 + $0xb0] sm:$0xf]
      %v5476 = vld [vmem:[%s2 + $0xb4] sm:$0xf]
      %v5477 = vld [vmem:[%s2 + $0xb8] sm:$0xf]
      %v5478 = vld [vmem:[%s2 + $0xbc] sm:$0xf]
      %v5479 = vld [vmem:[%s2 + $0xc0] sm:$0xf]
      %v5480 = vld [vmem:[%s2 + $0xc4] sm:$0xf]
      %v5481 = vld [vmem:[%s2 + $0xc8] sm:$0xf]
      %v5482 = vld [vmem:[%s2 + $0xcc] sm:$0xf]
      %v5483 = vld [vmem:[%s2 + $0xd0] sm:$0xf]
      %v5484 = vld [vmem:[%s2 + $0xd4] sm:$0xf]
      %v5485 = vld [vmem:[%s2 + $0xd8] sm:$0xf]
      %v5486 = vld [vmem:[%s2 + $0xdc] sm:$0xf]
      %v5487 = vld [vmem:[%s2 + $0xe0] sm:$0xf]
      %v5488 = vld [vmem:[%s2 + $0xe4] sm:$0xf]
      %v5489 = vld [vmem:[%s2 + $0xe8] sm:$0xf]
      %v5490 = vld [vmem:[%s2 + $0xec] sm:$0xf]
      %v5491 = vld [vmem:[%s2 + $0xf0] sm:$0xf]
      %v5492 = vld [vmem:[%s2 + $0xf4] sm:$0xf]
      %v5493 = vld [vmem:[%s2 + $0xf8] sm:$0xf]
      %v5494 = vld [vmem:[%s2 + $0xfc] sm:$0xf]
      %v5495 = vld [vmem:[%s2 + $0x100] sm:$0xf]
      %v5496 = vld [vmem:[%s2 + $0x104] sm:$0xf]
      %v5497 = vld [vmem:[%s2 + $0x108] sm:$0xf]
      %v5498 = vld [vmem:[%s2 + $0x10c] sm:$0xf]
      %v5499 = vld [vmem:[%s2 + $0x110] sm:$0xf]
      %v5500 = vld [vmem:[%s2 + $0x114] sm:$0xf]
      %v5501 = vld [vmem:[%s2 + $0x118] sm:$0xf]
      %v5502 = vld [vmem:[%s2 + $0x11c] sm:$0xf]
      %v5503 = vld [vmem:[%s2 + $0x120] sm:$0xf]
      %v5504 = vld [vmem:[%s2 + $0x124] sm:$0xf]
      %v5505 = vld [vmem:[%s2 + $0x128] sm:$0xf]
      %v5506 = vld [vmem:[%s2 + $0x12c] sm:$0xf]
      %v5507 = vld [vmem:[%s2 + $0x130] sm:$0xf]
      %v5508 = vld [vmem:[%s2 + $0x134] sm:$0xf]
      %v5509 = vld [vmem:[%s2 + $0x138] sm:$0xf]
      %v5510 = vld [vmem:[%s2 + $0x13c] sm:$0xf]
      %v5511 = vld [vmem:[%s2 + $0x140] sm:$0xf]
      %v5512 = vld [vmem:[%s2 + $0x144] sm:$0xf]
      %v5513 = vld [vmem:[%s2 + $0x148] sm:$0xf]
      %v5514 = vld [vmem:[%s2 + $0x14c] sm:$0xf]
      %v5515 = vld [vmem:[%s2 + $0x150] sm:$0xf]
      %v5516 = vld [vmem:[%s2 + $0x154] sm:$0xf]
      %v5517 = vld [vmem:[%s2 + $0x158] sm:$0xf]
      %v5518 = vld [vmem:[%s2 + $0x15c] sm:$0xf]
      %v5519 = vld [vmem:[%s2 + $0x160] sm:$0xf]
      %v5520 = vld [vmem:[%s2 + $0x164] sm:$0xf]
      %v5521 = vld [vmem:[%s2 + $0x168] sm:$0xf]
      %v5522 = vld [vmem:[%s2 + $0x16c] sm:$0xf]
      %v5523 = vld [vmem:[%s2 + $0x170] sm:$0xf]
      %v5524 = vld [vmem:[%s2 + $0x174] sm:$0xf]
      %v5525 = vld [vmem:[%s2 + $0x178] sm:$0xf]
      %v5526 = vld [vmem:[%s2 + $0x17c] sm:$0xf]
      %v5527 = vld [vmem:[%s2 + $0x180] sm:$0xf]
      %v5528 = vld [vmem:[%s2 + $0x184] sm:$0xf]
      %v5529 = vld [vmem:[%s2 + $0x188] sm:$0xf]
      %v5530 = vld [vmem:[%s2 + $0x18c] sm:$0xf]
      %v5531 = vld [vmem:[%s2 + $0x190] sm:$0xf]
      %v5532 = vld [vmem:[%s2 + $0x194] sm:$0xf]
      %v5533 = vld [vmem:[%s2 + $0x198] sm:$0xf]
      %v5534 = vld [vmem:[%s2 + $0x19c] sm:$0xf]
      %v5535 = vld [vmem:[%s2 + $0x1a0] sm:$0xf]
      %v5536 = vld [vmem:[%s2 + $0x1a4] sm:$0xf]
      %v5537 = vld [vmem:[%s2 + $0x1a8] sm:$0xf]
      %v5538 = vld [vmem:[%s2 + $0x1ac] sm:$0xf]
      %v5539 = vld [vmem:[%s2 + $0x1b0] sm:$0xf]
      %v5540 = vld [vmem:[%s2 + $0x1b4] sm:$0xf]
      %v5541 = vld [vmem:[%s2 + $0x1b8] sm:$0xf]
      %v5542 = vld [vmem:[%s2 + $0x1bc] sm:$0xf]
      %v5543 = vld [vmem:[%s2 + $0x1c0] sm:$0xf]
      %v5544 = vld [vmem:[%s2 + $0x1c4] sm:$0xf]
      %v5545 = vld [vmem:[%s2 + $0x1c8] sm:$0xf]
      %v5546 = vld [vmem:[%s2 + $0x1cc] sm:$0xf]
      %v5547 = vld [vmem:[%s2 + $0x1d0] sm:$0xf]
      %v5548 = vld [vmem:[%s2 + $0x1d4] sm:$0xf]
      %v5549 = vld [vmem:[%s2 + $0x1d8] sm:$0xf]
      %v5550 = vld [vmem:[%s2 + $0x1dc] sm:$0xf]
      %v5551 = vld [vmem:[%s2 + $0x1e0] sm:$0xf]
      %v5552 = vld [vmem:[%s2 + $0x1e4] sm:$0xf]
      %v5553 = vld [vmem:[%s2 + $0x1e8] sm:$0xf]
      %v5554 = vld [vmem:[%s2 + $0x1ec] sm:$0xf]
      %v5555 = vld [vmem:[%s2 + $0x1f0] sm:$0xf]
      %v5556 = vld [vmem:[%s2 + $0x1f4] sm:$0xf]
      %v5557 = vld [vmem:[%s2 + $0x1f8] sm:$0xf]
      %v5558 = vld [vmem:[%s2 + $0x1fc] sm:$0xf]
      %v5559 = vld [vmem:[%s2 + $0x200] sm:$0xf]
      %v5560 = vld [vmem:[%s2 + $0x204] sm:$0xf]
      %v5561 = vld [vmem:[%s2 + $0x208] sm:$0xf]
      %v5562 = vld [vmem:[%s2 + $0x20c] sm:$0xf]
      %v5563 = vld [vmem:[%s2 + $0x210] sm:$0xf]
      %v5564 = vld [vmem:[%s2 + $0x214] sm:$0xf]
      %v5565 = vld [vmem:[%s2 + $0x218] sm:$0xf]
      %v5566 = vld [vmem:[%s2 + $0x21c] sm:$0xf]
      %v5567 = vld [vmem:[%s2 + $0x220] sm:$0xf]
      %v5568 = vld [vmem:[%s2 + $0x224] sm:$0xf]
      %v5569 = vld [vmem:[%s2 + $0x228] sm:$0xf]
      %v5570 = vld [vmem:[%s2 + $0x22c] sm:$0xf]
      %v5571 = vld [vmem:[%s2 + $0x230] sm:$0xf]
      %v5572 = vld [vmem:[%s2 + $0x234] sm:$0xf]
      %v5573 = vld [vmem:[%s2 + $0x238] sm:$0xf]
      %v5574 = vld [vmem:[%s2 + $0x23c] sm:$0xf]
      %v5575 = vld [vmem:[%s3 + $0x1] sm:$0x1]
      %v5576 = vlaneseq
      %v5577 = vshrl.u32 %v5576, 7
      %v5578 = vsub.s32 0, %v5577
      %v5579 = vrot.slane %v5575, %v5578
      %v5724 = vunpack.c.l.b16 %v5431
      %v5725 = vunpack.c.l.b16 %v5432
      %v5726 = vunpack.c.l.b16 %v5433
      %v5727 = vunpack.c.l.b16 %v5434
      %v5728 = vunpack.c.l.b16 %v5435
      %v5729 = vunpack.c.l.b16 %v5436
      %v5730 = vunpack.c.l.b16 %v5437
      %v5731 = vunpack.c.l.b16 %v5438
      %v5732 = vunpack.c.l.b16 %v5439
      %v5733 = vunpack.c.l.b16 %v5440
      %v5734 = vunpack.c.l.b16 %v5441
      %v5735 = vunpack.c.l.b16 %v5442
      %v5736 = vunpack.c.l.b16 %v5443
      %v5737 = vunpack.c.l.b16 %v5444
      %v5738 = vunpack.c.l.b16 %v5445
      %v5739 = vunpack.c.l.b16 %v5446
      %v5740 = vunpack.c.l.b16 %v5447
      %v5741 = vunpack.c.l.b16 %v5448
      %v5742 = vunpack.c.l.b16 %v5449
      %v5743 = vunpack.c.l.b16 %v5450
      %v5744 = vunpack.c.l.b16 %v5451
      %v5745 = vunpack.c.l.b16 %v5452
      %v5746 = vunpack.c.l.b16 %v5453
      %v5747 = vunpack.c.l.b16 %v5454
      %v5748 = vunpack.c.l.b16 %v5455
      %v5749 = vunpack.c.l.b16 %v5456
      %v5750 = vunpack.c.l.b16 %v5457
      %v5751 = vunpack.c.l.b16 %v5458
      %v5752 = vunpack.c.l.b16 %v5459
      %v5753 = vunpack.c.l.b16 %v5460
      %v5754 = vunpack.c.l.b16 %v5461
      %v5755 = vunpack.c.l.b16 %v5462
      %v5756 = vunpack.c.l.b16 %v5463
      %v5757 = vunpack.c.l.b16 %v5464
      %v5758 = vunpack.c.l.b16 %v5465
      %v5759 = vunpack.c.l.b16 %v5466
      %v5760 = vunpack.c.l.b16 %v5467
      %v5761 = vunpack.c.l.b16 %v5468
      %v5762 = vunpack.c.l.b16 %v5469
      %v5763 = vunpack.c.l.b16 %v5470
      %v5764 = vunpack.c.l.b16 %v5471
      %v5765 = vunpack.c.l.b16 %v5472
      %v5766 = vunpack.c.l.b16 %v5473
      %v5767 = vunpack.c.l.b16 %v5474
      %v5768 = vunpack.c.l.b16 %v5475
      %v5769 = vunpack.c.l.b16 %v5476
      %v5770 = vunpack.c.l.b16 %v5477
      %v5771 = vunpack.c.l.b16 %v5478
      %v5772 = vunpack.c.l.b16 %v5479
      %v5773 = vunpack.c.l.b16 %v5480
      %v5774 = vunpack.c.l.b16 %v5481
      %v5775 = vunpack.c.l.b16 %v5482
      %v5776 = vunpack.c.l.b16 %v5483
      %v5777 = vunpack.c.l.b16 %v5484
      %v5778 = vunpack.c.l.b16 %v5485
      %v5779 = vunpack.c.l.b16 %v5486
      %v5780 = vunpack.c.l.b16 %v5487
      %v5781 = vunpack.c.l.b16 %v5488
      %v5782 = vunpack.c.l.b16 %v5489
      %v5783 = vunpack.c.l.b16 %v5490
      %v5784 = vunpack.c.l.b16 %v5491
      %v5785 = vunpack.c.l.b16 %v5492
      %v5786 = vunpack.c.l.b16 %v5493
      %v5787 = vunpack.c.l.b16 %v5494
      %v5788 = vunpack.c.l.b16 %v5495
      %v5789 = vunpack.c.l.b16 %v5496
      %v5790 = vunpack.c.l.b16 %v5497
      %v5791 = vunpack.c.l.b16 %v5498
      %v5792 = vunpack.c.l.b16 %v5499
      %v5793 = vunpack.c.l.b16 %v5500
      %v5794 = vunpack.c.l.b16 %v5501
      %v5795 = vunpack.c.l.b16 %v5502
      %v5796 = vunpack.c.l.b16 %v5503
      %v5797 = vunpack.c.l.b16 %v5504
      %v5798 = vunpack.c.l.b16 %v5505
      %v5799 = vunpack.c.l.b16 %v5506
      %v5800 = vunpack.c.l.b16 %v5507
      %v5801 = vunpack.c.l.b16 %v5508
      %v5802 = vunpack.c.l.b16 %v5509
      %v5803 = vunpack.c.l.b16 %v5510
      %v5804 = vunpack.c.l.b16 %v5511
      %v5805 = vunpack.c.l.b16 %v5512
      %v5806 = vunpack.c.l.b16 %v5513
      %v5807 = vunpack.c.l.b16 %v5514
      %v5808 = vunpack.c.l.b16 %v5515
      %v5809 = vunpack.c.l.b16 %v5516
      %v5810 = vunpack.c.l.b16 %v5517
      %v5811 = vunpack.c.l.b16 %v5518
      %v5812 = vunpack.c.l.b16 %v5519
      %v5813 = vunpack.c.l.b16 %v5520
      %v5814 = vunpack.c.l.b16 %v5521
      %v5815 = vunpack.c.l.b16 %v5522
      %v5816 = vunpack.c.l.b16 %v5523
      %v5817 = vunpack.c.l.b16 %v5524
      %v5818 = vunpack.c.l.b16 %v5525
      %v5819 = vunpack.c.l.b16 %v5526
      %v5820 = vunpack.c.l.b16 %v5527
      %v5821 = vunpack.c.l.b16 %v5528
      %v5822 = vunpack.c.l.b16 %v5529
      %v5823 = vunpack.c.l.b16 %v5530
      %v5824 = vunpack.c.l.b16 %v5531
      %v5825 = vunpack.c.l.b16 %v5532
      %v5826 = vunpack.c.l.b16 %v5533
      %v5827 = vunpack.c.l.b16 %v5534
      %v5828 = vunpack.c.l.b16 %v5535
      %v5829 = vunpack.c.l.b16 %v5536
      %v5830 = vunpack.c.l.b16 %v5537
      %v5831 = vunpack.c.l.b16 %v5538
      %v5832 = vunpack.c.l.b16 %v5539
      %v5833 = vunpack.c.l.b16 %v5540
      %v5834 = vunpack.c.l.b16 %v5541
      %v5835 = vunpack.c.l.b16 %v5542
      %v5836 = vunpack.c.l.b16 %v5543
      %v5837 = vunpack.c.l.b16 %v5544
      %v5838 = vunpack.c.l.b16 %v5545
      %v5839 = vunpack.c.l.b16 %v5546
      %v5840 = vunpack.c.l.b16 %v5547
      %v5841 = vunpack.c.l.b16 %v5548
      %v5842 = vunpack.c.l.b16 %v5549
      %v5843 = vunpack.c.l.b16 %v5550
      %v5844 = vunpack.c.l.b16 %v5551
      %v5845 = vunpack.c.l.b16 %v5552
      %v5846 = vunpack.c.l.b16 %v5553
      %v5847 = vunpack.c.l.b16 %v5554
      %v5848 = vunpack.c.l.b16 %v5555
      %v5849 = vunpack.c.l.b16 %v5556
      %v5850 = vunpack.c.l.b16 %v5557
      %v5851 = vunpack.c.l.b16 %v5558
      %v5852 = vunpack.c.l.b16 %v5559
      %v5853 = vunpack.c.l.b16 %v5560
      %v5854 = vunpack.c.l.b16 %v5561
      %v5855 = vunpack.c.l.b16 %v5562
      %v5856 = vunpack.c.l.b16 %v5563
      %v5857 = vunpack.c.l.b16 %v5564
      %v5858 = vunpack.c.l.b16 %v5565
      %v5859 = vunpack.c.l.b16 %v5566
      %v5860 = vunpack.c.l.b16 %v5567
      %v5861 = vunpack.c.l.b16 %v5568
      %v5862 = vunpack.c.l.b16 %v5569
      %v5863 = vunpack.c.l.b16 %v5570
      %v5864 = vunpack.c.l.b16 %v5571
      %v5865 = vunpack.c.l.b16 %v5572
      %v5866 = vunpack.c.l.b16 %v5573
      %v5867 = vunpack.c.l.b16 %v5574
      %v5868 = vpack.c.b16 %v5725, %v5724
      %v5869 = vpack.c.b16 %v5727, %v5726
      %v5870 = vpack.c.b16 %v5729, %v5728
      %v5871 = vpack.c.b16 %v5731, %v5730
      %v5872 = vpack.c.b16 %v5733, %v5732
      %v5873 = vpack.c.b16 %v5735, %v5734
      %v5874 = vpack.c.b16 %v5737, %v5736
      %v5875 = vpack.c.b16 %v5739, %v5738
      %v5876 = vpack.c.b16 %v5741, %v5740
      %v5877 = vpack.c.b16 %v5743, %v5742
      %v5878 = vpack.c.b16 %v5745, %v5744
      %v5879 = vpack.c.b16 %v5747, %v5746
      %v5880 = vpack.c.b16 %v5749, %v5748
      %v5881 = vpack.c.b16 %v5751, %v5750
      %v5882 = vpack.c.b16 %v5753, %v5752
      %v5883 = vpack.c.b16 %v5755, %v5754
      %v5884 = vpack.c.b16 %v5757, %v5756
      %v5885 = vpack.c.b16 %v5759, %v5758
      %v5886 = vpack.c.b16 %v5761, %v5760
      %v5887 = vpack.c.b16 %v5763, %v5762
      %v5888 = vpack.c.b16 %v5765, %v5764
      %v5889 = vpack.c.b16 %v5767, %v5766
      %v5890 = vpack.c.b16 %v5769, %v5768
      %v5891 = vpack.c.b16 %v5771, %v5770
      %v5892 = vpack.c.b16 %v5773, %v5772
      %v5893 = vpack.c.b16 %v5775, %v5774
      %v5894 = vpack.c.b16 %v5777, %v5776
      %v5895 = vpack.c.b16 %v5779, %v5778
      %v5896 = vpack.c.b16 %v5781, %v5780
      %v5897 = vpack.c.b16 %v5783, %v5782
      %v5898 = vpack.c.b16 %v5785, %v5784
      %v5899 = vpack.c.b16 %v5787, %v5786
      %v5900 = vpack.c.b16 %v5789, %v5788
      %v5901 = vpack.c.b16 %v5791, %v5790
      %v5902 = vpack.c.b16 %v5793, %v5792
      %v5903 = vpack.c.b16 %v5795, %v5794
      %v5904 = vpack.c.b16 %v5797, %v5796
      %v5905 = vpack.c.b16 %v5799, %v5798
      %v5906 = vpack.c.b16 %v5801, %v5800
      %v5907 = vpack.c.b16 %v5803, %v5802
      %v5908 = vpack.c.b16 %v5805, %v5804
      %v5909 = vpack.c.b16 %v5807, %v5806
      %v5910 = vpack.c.b16 %v5809, %v5808
      %v5911 = vpack.c.b16 %v5811, %v5810
      %v5912 = vpack.c.b16 %v5813, %v5812
      %v5913 = vpack.c.b16 %v5815, %v5814
      %v5914 = vpack.c.b16 %v5817, %v5816
      %v5915 = vpack.c.b16 %v5819, %v5818
      %v5916 = vpack.c.b16 %v5821, %v5820
      %v5917 = vpack.c.b16 %v5823, %v5822
      %v5918 = vpack.c.b16 %v5825, %v5824
      %v5919 = vpack.c.b16 %v5827, %v5826
      %v5920 = vpack.c.b16 %v5829, %v5828
      %v5921 = vpack.c.b16 %v5831, %v5830
      %v5922 = vpack.c.b16 %v5833, %v5832
      %v5923 = vpack.c.b16 %v5835, %v5834
      %v5924 = vpack.c.b16 %v5837, %v5836
      %v5925 = vpack.c.b16 %v5839, %v5838
      %v5926 = vpack.c.b16 %v5841, %v5840
      %v5927 = vpack.c.b16 %v5843, %v5842
      %v5928 = vpack.c.b16 %v5845, %v5844
      %v5929 = vpack.c.b16 %v5847, %v5846
      %v5930 = vpack.c.b16 %v5849, %v5848
      %v5931 = vpack.c.b16 %v5851, %v5850
      %v5932 = vpack.c.b16 %v5853, %v5852
      %v5933 = vpack.c.b16 %v5855, %v5854
      %v5934 = vpack.c.b16 %v5857, %v5856
      %v5935 = vpack.c.b16 %v5859, %v5858
      %v5936 = vpack.c.b16 %v5861, %v5860
      %v5937 = vpack.c.b16 %v5863, %v5862
      %v5938 = vpack.c.b16 %v5865, %v5864
      %v5939 = vpack.c.b16 %v5867, %v5866
      %6012 = vmatprep.subr.bf16.mxu0 0
      %6013 = vmatpush1.bf16.msra.mxu0 %v5875
      %6014 = vmatprep.subr.bf16.mxu0 0
      %6015 = vmatpush1.bf16.msra.mxu0 %v5874
      %6016 = vmatprep.subr.bf16.mxu0 0
      %6017 = vmatpush1.bf16.msra.mxu0 %v5873
      %6018 = vmatprep.subr.bf16.mxu0 0
      %6019 = vmatpush1.bf16.msra.mxu0 %v5872
      %6020 = vmatprep.subr.bf16.mxu0 0
      %6021 = vmatpush1.bf16.msra.mxu0 %v5871
      %6022 = vmatprep.subr.bf16.mxu0 0
      %6023 = vmatpush1.bf16.msra.mxu0 %v5870
      %6024 = vmatprep.subr.bf16.mxu0 0
      %6025 = vmatpush1.bf16.msra.mxu0 %v5869
      %6026 = vmatprep.subr.bf16.mxu0 0
      %6027 = vmatpush1.bf16.msra.mxu0 %v5868
      %6028 = vmatprep.subr.bf16.mxu0 0
      %6029 = vmatpush2.bf16.msra.mxu0 %v5883
      %6030 = vmatprep.subr.bf16.mxu0 0
      %6031 = vmatpush2.bf16.msra.mxu0 %v5882
      %6032 = vmatprep.subr.bf16.mxu0 0
      %6033 = vmatpush2.bf16.msra.mxu0 %v5881
      %6034 = vmatprep.subr.bf16.mxu0 0
      %6035 = vmatpush2.bf16.msra.mxu0 %v5880
      %6036 = vmatprep.subr.bf16.mxu0 0
      %6037 = vmatpush2.bf16.msra.mxu0 %v5879
      %6038 = vmatprep.subr.bf16.mxu0 0
      %6039 = vmatpush2.bf16.msra.mxu0 %v5878
      %6040 = vmatprep.subr.bf16.mxu0 0
      %6041 = vmatpush2.bf16.msra.mxu0 %v5877
      %6042 = vmatprep.subr.bf16.mxu0 0
      %6043 = vmatpush2.bf16.msra.mxu0 %v5876
      %6044 = vmatprep.mubr.bf16.mxu0 %v4194
      %6045 = vmatmul.mubr.bf16.gmra.mxu0 %v4103
      %v6046 = vpop.f32.mrf.mxu0
      %v6047 = vadd.f32 %v5579, %v6046
      %v6048 = vpop.f32.mrf.mxu0
      %v6049 = vpop.f32.mrf.mxu0
      %v6050 = vadd.f32 %v5579, %v6049
      %v6051 = vpop.f32.mrf.mxu0
      %6052 = vmatprep.mubr.bf16.mxu0 %v4206
      %6053 = vmatmul.mubr.bf16.gmra.mxu0 %v4104
      %v6054 = vpop.f32.mrf.mxu0
      %v6055 = vadd.f32 %v5579, %v6054
      %v6056 = vpop.f32.mrf.mxu0
      %v6057 = vpop.f32.mrf.mxu0
      %v6058 = vadd.f32 %v5579, %v6057
      %v6059 = vpop.f32.mrf.mxu0
      %6060 = vmatprep.mubr.bf16.mxu0 %v4218
      %6061 = vmatmul.mubr.bf16.gmra.mxu0 %v4105
      %v6062 = vpop.f32.mrf.mxu0
      %v6063 = vadd.f32 %v5579, %v6062
      %v6064 = vpop.f32.mrf.mxu0
      %v6065 = vpop.f32.mrf.mxu0
      %v6066 = vadd.f32 %v5579, %v6065
      %v6067 = vpop.f32.mrf.mxu0
      %6068 = vmatprep.mubr.bf16.mxu0 %v4230
      %6069 = vmatmul.mubr.bf16.gmra.mxu0 %v4106
      %v6070 = vpop.f32.mrf.mxu0
      %v6071 = vadd.f32 %v5579, %v6070
      %v6072 = vpop.f32.mrf.mxu0
      %v6073 = vpop.f32.mrf.mxu0
      %v6074 = vadd.f32 %v5579, %v6073
      %v6075 = vpop.f32.mrf.mxu0
      %6076 = vmatprep.mubr.bf16.mxu0 %v4242
      %6077 = vmatmul.mubr.bf16.gmra.mxu0 %v4107
      %v6078 = vpop.f32.mrf.mxu0
      %v6079 = vadd.f32 %v5579, %v6078
      %v6080 = vpop.f32.mrf.mxu0
      %v6081 = vpop.f32.mrf.mxu0
      %v6082 = vadd.f32 %v5579, %v6081
      %v6083 = vpop.f32.mrf.mxu0
      %6084 = vmatprep.mubr.bf16.mxu0 %v4254
      %6085 = vmatmul.mubr.bf16.gmra.mxu0 %v4108
      %v6086 = vpop.f32.mrf.mxu0
      %v6087 = vadd.f32 %v5579, %v6086
      %v6088 = vpop.f32.mrf.mxu0
      %v6089 = vpop.f32.mrf.mxu0
      %v6090 = vadd.f32 %v5579, %v6089
      %v6091 = vpop.f32.mrf.mxu0
      %6092 = vmatprep.mubr.bf16.mxu0 %v4266
      %6093 = vmatmul.mubr.bf16.gmra.mxu0 %v4109
      %v6094 = vpop.f32.mrf.mxu0
      %v6095 = vadd.f32 %v5579, %v6094
      %v6096 = vpop.f32.mrf.mxu0
      %v6097 = vpop.f32.mrf.mxu0
      %v6098 = vadd.f32 %v5579, %v6097
      %v6099 = vpop.f32.mrf.mxu0
      %6100 = vmatprep.mubr.bf16.mxu0 %v4278
      %6101 = vmatmul.mubr.bf16.gmra.mxu0 %v4110
      %v6102 = vpop.f32.mrf.mxu0
      %v6103 = vadd.f32 %v5579, %v6102
      %v6104 = vpop.f32.mrf.mxu0
      %v6105 = vpop.f32.mrf.mxu0
      %v6106 = vadd.f32 %v5579, %v6105
      %v6107 = vpop.f32.mrf.mxu0
      %6108 = vmatprep.mubr.bf16.mxu0 %v4290
      %6109 = vmatmul.mubr.bf16.gmra.mxu0 %v4111
      %v6110 = vpop.f32.mrf.mxu0
      %v6111 = vadd.f32 %v5579, %v6110
      %v6112 = vpop.f32.mrf.mxu0
      %v6113 = vpop.f32.mrf.mxu0
      %v6114 = vadd.f32 %v5579, %v6113
      %v6115 = vpop.f32.mrf.mxu0
      %6116 = vmatprep.mubr.bf16.mxu0 %v4302
      %6117 = vmatmul.mubr.bf16.gmra.mxu0 %v4112
      %v6118 = vpop.f32.mrf.mxu0
      %v6119 = vadd.f32 %v5579, %v6118
      %v6120 = vpop.f32.mrf.mxu0
      %v6121 = vpop.f32.mrf.mxu0
      %v6122 = vadd.f32 %v5579, %v6121
      %v6123 = vpop.f32.mrf.mxu0
      %6124 = vmatprep.mubr.bf16.mxu0 %v4314
      %6125 = vmatmul.mubr.bf16.gmra.mxu0 %v4113
      %v6126 = vpop.f32.mrf.mxu0
      %v6127 = vadd.f32 %v5579, %v6126
      %v6128 = vpop.f32.mrf.mxu0
      %v6129 = vpop.f32.mrf.mxu0
      %v6130 = vadd.f32 %v5579, %v6129
      %v6131 = vpop.f32.mrf.mxu0
      %6132 = vmatprep.mubr.bf16.mxu0 %v4326
      %6133 = vmatmul.mubr.bf16.gmra.mxu0 %v4114
      %v6134 = vpop.f32.mrf.mxu0
      %v6135 = vadd.f32 %v5579, %v6134
      %v6136 = vpop.f32.mrf.mxu0
      %v6137 = vpop.f32.mrf.mxu0
      %v6138 = vadd.f32 %v5579, %v6137
      %v6139 = vpop.f32.mrf.mxu0
      %6140 = vmatprep.mubr.bf16.mxu0 %v4338
      %6141 = vmatmul.mubr.bf16.gmra.mxu0 %v4115
      %v6142 = vpop.f32.mrf.mxu0
      %v6143 = vadd.f32 %v5579, %v6142
      %v6144 = vpop.f32.mrf.mxu0
      %v6145 = vpop.f32.mrf.mxu0
      %v6146 = vadd.f32 %v5579, %v6145
      %v6147 = vpop.f32.mrf.mxu0
      %6148 = vmatprep.mubr.bf16.mxu0 %v4350
      %6149 = vmatmul.mubr.bf16.gmra.mxu0 %v4116
      %v6150 = vpop.f32.mrf.mxu0
      %v6151 = vadd.f32 %v5579, %v6150
      %v6152 = vpop.f32.mrf.mxu0
      %v6153 = vpop.f32.mrf.mxu0
      %v6154 = vadd.f32 %v5579, %v6153
      %v6155 = vpop.f32.mrf.mxu0
      %6156 = vmatprep.mubr.bf16.mxu0 %v4362
      %6157 = vmatmul.mubr.bf16.gmra.mxu0 %v4117
      %v6158 = vpop.f32.mrf.mxu0
      %v6159 = vadd.f32 %v5579, %v6158
      %v6160 = vpop.f32.mrf.mxu0
      %v6161 = vpop.f32.mrf.mxu0
      %v6162 = vadd.f32 %v5579, %v6161
      %v6163 = vpop.f32.mrf.mxu0
      %6164 = vmatprep.mubr.bf16.mxu0 %v4374
      %6165 = vmatmul.mubr.bf16.gmra.mxu0 %v4118
      %v6166 = vpop.f32.mrf.mxu0
      %v6167 = vadd.f32 %v5579, %v6166
      %v6168 = vpop.f32.mrf.mxu0
      %v6169 = vpop.f32.mrf.mxu0
      %v6170 = vadd.f32 %v5579, %v6169
      %v6171 = vpop.f32.mrf.mxu0
      %6172 = vdwg.mxu0
      %6173 = vmatprep.subr.bf16.mxu0 0
      %6174 = vmatpush1.bf16.msra.mxu0 %v5891
      %6175 = vmatprep.subr.bf16.mxu0 0
      %6176 = vmatpush1.bf16.msra.mxu0 %v5890
      %6177 = vmatprep.subr.bf16.mxu0 0
      %6178 = vmatpush1.bf16.msra.mxu0 %v5889
      %6179 = vmatprep.subr.bf16.mxu0 0
      %6180 = vmatpush1.bf16.msra.mxu0 %v5888
      %6181 = vmatprep.subr.bf16.mxu0 0
      %6182 = vmatpush1.bf16.msra.mxu0 %v5887
      %6183 = vmatprep.subr.bf16.mxu0 0
      %6184 = vmatpush1.bf16.msra.mxu0 %v5886
      %6185 = vmatprep.subr.bf16.mxu0 0
      %6186 = vmatpush1.bf16.msra.mxu0 %v5885
      %6187 = vmatprep.subr.bf16.mxu0 0
      %6188 = vmatpush1.bf16.msra.mxu0 %v5884
      %6189 = vmatprep.subr.bf16.mxu0 0
      %6190 = vmatpush2.bf16.msra.mxu0 %v5899
      %6191 = vmatprep.subr.bf16.mxu0 0
      %6192 = vmatpush2.bf16.msra.mxu0 %v5898
      %6193 = vmatprep.subr.bf16.mxu0 0
      %6194 = vmatpush2.bf16.msra.mxu0 %v5897
      %6195 = vmatprep.subr.bf16.mxu0 0
      %6196 = vmatpush2.bf16.msra.mxu0 %v5896
      %6197 = vmatprep.subr.bf16.mxu0 0
      %6198 = vmatpush2.bf16.msra.mxu0 %v5895
      %6199 = vmatprep.subr.bf16.mxu0 0
      %6200 = vmatpush2.bf16.msra.mxu0 %v5894
      %6201 = vmatprep.subr.bf16.mxu0 0
      %6202 = vmatpush2.bf16.msra.mxu0 %v5893
      %6203 = vmatprep.subr.bf16.mxu0 0
      %6204 = vmatpush2.bf16.msra.mxu0 %v5892
      %6205 = vmatprep.mubr.bf16.mxu0 %v4567
      %6206 = vmatmul.mubr.bf16.gmra.mxu0 %v4441
      %v6207 = vpop.f32.mrf.mxu0
      %v6208 = vadd.f32 %v6047, %v6207
      %v6209 = vpop.f32.mrf.mxu0
      %v6210 = vpop.f32.mrf.mxu0
      %v6211 = vadd.f32 %v6050, %v6210
      %v6212 = vpop.f32.mrf.mxu0
      %6213 = vmatprep.mubr.bf16.mxu0 %v4568
      %6214 = vmatmul.mubr.bf16.gmra.mxu0 %v4444
      %v6215 = vpop.f32.mrf.mxu0
      %v6216 = vadd.f32 %v6055, %v6215
      %v6217 = vpop.f32.mrf.mxu0
      %v6218 = vpop.f32.mrf.mxu0
      %v6219 = vadd.f32 %v6058, %v6218
      %v6220 = vpop.f32.mrf.mxu0
      %6221 = vmatprep.mubr.bf16.mxu0 %v4569
      %6222 = vmatmul.mubr.bf16.gmra.mxu0 %v4447
      %v6223 = vpop.f32.mrf.mxu0
      %v6224 = vadd.f32 %v6063, %v6223
      %v6225 = vpop.f32.mrf.mxu0
      %v6226 = vpop.f32.mrf.mxu0
      %v6227 = vadd.f32 %v6066, %v6226
      %v6228 = vpop.f32.mrf.mxu0
      %6229 = vmatprep.mubr.bf16.mxu0 %v4570
      %6230 = vmatmul.mubr.bf16.gmra.mxu0 %v4450
      %v6231 = vpop.f32.mrf.mxu0
      %v6232 = vadd.f32 %v6071, %v6231
      %v6233 = vpop.f32.mrf.mxu0
      %v6234 = vpop.f32.mrf.mxu0
      %v6235 = vadd.f32 %v6074, %v6234
      %v6236 = vpop.f32.mrf.mxu0
      %6237 = vmatprep.mubr.bf16.mxu0 %v4571
      %6238 = vmatmul.mubr.bf16.gmra.mxu0 %v4453
      %v6239 = vpop.f32.mrf.mxu0
      %v6240 = vadd.f32 %v6079, %v6239
      %v6241 = vpop.f32.mrf.mxu0
      %v6242 = vpop.f32.mrf.mxu0
      %v6243 = vadd.f32 %v6082, %v6242
      %v6244 = vpop.f32.mrf.mxu0
      %6245 = vmatprep.mubr.bf16.mxu0 %v4572
      %6246 = vmatmul.mubr.bf16.gmra.mxu0 %v4456
      %v6247 = vpop.f32.mrf.mxu0
      %v6248 = vadd.f32 %v6087, %v6247
      %v6249 = vpop.f32.mrf.mxu0
      %v6250 = vpop.f32.mrf.mxu0
      %v6251 = vadd.f32 %v6090, %v6250
      %v6252 = vpop.f32.mrf.mxu0
      %6253 = vmatprep.mubr.bf16.mxu0 %v4573
      %6254 = vmatmul.mubr.bf16.gmra.mxu0 %v4459
      %v6255 = vpop.f32.mrf.mxu0
      %v6256 = vadd.f32 %v6095, %v6255
      %v6257 = vpop.f32.mrf.mxu0
      %v6258 = vpop.f32.mrf.mxu0
      %v6259 = vadd.f32 %v6098, %v6258
      %v6260 = vpop.f32.mrf.mxu0
      %6261 = vmatprep.mubr.bf16.mxu0 %v4574
      %6262 = vmatmul.mubr.bf16.gmra.mxu0 %v4462
      %v6263 = vpop.f32.mrf.mxu0
      %v6264 = vadd.f32 %v6103, %v6263
      %v6265 = vpop.f32.mrf.mxu0
      %v6266 = vpop.f32.mrf.mxu0
      %v6267 = vadd.f32 %v6106, %v6266
      %v6268 = vpop.f32.mrf.mxu0
      %6269 = vmatprep.mubr.bf16.mxu0 %v4575
      %6270 = vmatmul.mubr.bf16.gmra.mxu0 %v4465
      %v6271 = vpop.f32.mrf.mxu0
      %v6272 = vadd.f32 %v6111, %v6271
      %v6273 = vpop.f32.mrf.mxu0
      %v6274 = vpop.f32.mrf.mxu0
      %v6275 = vadd.f32 %v6114, %v6274
      %v6276 = vpop.f32.mrf.mxu0
      %6277 = vmatprep.mubr.bf16.mxu0 %v4576
      %6278 = vmatmul.mubr.bf16.gmra.mxu0 %v4468
      %v6279 = vpop.f32.mrf.mxu0
      %v6280 = vadd.f32 %v6119, %v6279
      %v6281 = vpop.f32.mrf.mxu0
      %v6282 = vpop.f32.mrf.mxu0
      %v6283 = vadd.f32 %v6122, %v6282
      %v6284 = vpop.f32.mrf.mxu0
      %6285 = vmatprep.mubr.bf16.mxu0 %v4577
      %6286 = vmatmul.mubr.bf16.gmra.mxu0 %v4471
      %v6287 = vpop.f32.mrf.mxu0
      %v6288 = vadd.f32 %v6127, %v6287
      %v6289 = vpop.f32.mrf.mxu0
      %v6290 = vpop.f32.mrf.mxu0
      %v6291 = vadd.f32 %v6130, %v6290
      %v6292 = vpop.f32.mrf.mxu0
      %6293 = vmatprep.mubr.bf16.mxu0 %v4578
      %6294 = vmatmul.mubr.bf16.gmra.mxu0 %v4474
      %v6295 = vpop.f32.mrf.mxu0
      %v6296 = vadd.f32 %v6135, %v6295
      %v6297 = vpop.f32.mrf.mxu0
      %v6298 = vpop.f32.mrf.mxu0
      %v6299 = vadd.f32 %v6138, %v6298
      %v6300 = vpop.f32.mrf.mxu0
      %6301 = vmatprep.mubr.bf16.mxu0 %v4579
      %6302 = vmatmul.mubr.bf16.gmra.mxu0 %v4477
      %v6303 = vpop.f32.mrf.mxu0
      %v6304 = vadd.f32 %v6143, %v6303
      %v6305 = vpop.f32.mrf.mxu0
      %v6306 = vpop.f32.mrf.mxu0
      %v6307 = vadd.f32 %v6146, %v6306
      %v6308 = vpop.f32.mrf.mxu0
      %6309 = vmatprep.mubr.bf16.mxu0 %v4580
      %6310 = vmatmul.mubr.bf16.gmra.mxu0 %v4480
      %v6311 = vpop.f32.mrf.mxu0
      %v6312 = vadd.f32 %v6151, %v6311
      %v6313 = vpop.f32.mrf.mxu0
      %v6314 = vpop.f32.mrf.mxu0
      %v6315 = vadd.f32 %v6154, %v6314
      %v6316 = vpop.f32.mrf.mxu0
      %6317 = vmatprep.mubr.bf16.mxu0 %v4581
      %6318 = vmatmul.mubr.bf16.gmra.mxu0 %v4483
      %v6319 = vpop.f32.mrf.mxu0
      %v6320 = vadd.f32 %v6159, %v6319
      %v6321 = vpop.f32.mrf.mxu0
      %v6322 = vpop.f32.mrf.mxu0
      %v6323 = vadd.f32 %v6162, %v6322
      %v6324 = vpop.f32.mrf.mxu0
      %6325 = vmatprep.mubr.bf16.mxu0 %v4582
      %6326 = vmatmul.mubr.bf16.gmra.mxu0 %v4486
      %v6327 = vpop.f32.mrf.mxu0
      %v6328 = vadd.f32 %v6167, %v6327
      %v6329 = vpop.f32.mrf.mxu0
      %v6330 = vpop.f32.mrf.mxu0
      %v6331 = vadd.f32 %v6170, %v6330
      %v6332 = vpop.f32.mrf.mxu0
      %6333 = vdwg.mxu0
      %6334 = vmatprep.subr.bf16.mxu0 0
      %6335 = vmatpush1.bf16.msra.mxu0 %v5907
      %6336 = vmatprep.subr.bf16.mxu0 0
      %6337 = vmatpush1.bf16.msra.mxu0 %v5906
      %6338 = vmatprep.subr.bf16.mxu0 0
      %6339 = vmatpush1.bf16.msra.mxu0 %v5905
      %6340 = vmatprep.subr.bf16.mxu0 0
      %6341 = vmatpush1.bf16.msra.mxu0 %v5904
      %6342 = vmatprep.subr.bf16.mxu0 0
      %6343 = vmatpush1.bf16.msra.mxu0 %v5903
      %6344 = vmatprep.subr.bf16.mxu0 0
      %6345 = vmatpush1.bf16.msra.mxu0 %v5902
      %6346 = vmatprep.subr.bf16.mxu0 0
      %6347 = vmatpush1.bf16.msra.mxu0 %v5901
      %6348 = vmatprep.subr.bf16.mxu0 0
      %6349 = vmatpush1.bf16.msra.mxu0 %v5900
      %6350 = vmatprep.subr.bf16.mxu0 0
      %6351 = vmatpush2.bf16.msra.mxu0 %v5915
      %6352 = vmatprep.subr.bf16.mxu0 0
      %6353 = vmatpush2.bf16.msra.mxu0 %v5914
      %6354 = vmatprep.subr.bf16.mxu0 0
      %6355 = vmatpush2.bf16.msra.mxu0 %v5913
      %6356 = vmatprep.subr.bf16.mxu0 0
      %6357 = vmatpush2.bf16.msra.mxu0 %v5912
      %6358 = vmatprep.subr.bf16.mxu0 0
      %6359 = vmatpush2.bf16.msra.mxu0 %v5911
      %6360 = vmatprep.subr.bf16.mxu0 0
      %6361 = vmatpush2.bf16.msra.mxu0 %v5910
      %6362 = vmatprep.subr.bf16.mxu0 0
      %6363 = vmatpush2.bf16.msra.mxu0 %v5909
      %6364 = vmatprep.subr.bf16.mxu0 0
      %6365 = vmatpush2.bf16.msra.mxu0 %v5908
      %6366 = vmatprep.mubr.bf16.mxu0 %v4905
      %6367 = vmatmul.mubr.bf16.gmra.mxu0 %v4658
      %v6368 = vpop.f32.mrf.mxu0
      %v6369 = vadd.f32 %v6208, %v6368
      %v6370 = vpop.f32.mrf.mxu0
      %v6371 = vpop.f32.mrf.mxu0
      %v6372 = vadd.f32 %v6211, %v6371
      %v6373 = vpop.f32.mrf.mxu0
      %6374 = vmatprep.mubr.bf16.mxu0 %v4908
      %6375 = vmatmul.mubr.bf16.gmra.mxu0 %v4670
      %v6376 = vpop.f32.mrf.mxu0
      %v6377 = vadd.f32 %v6216, %v6376
      %v6378 = vpop.f32.mrf.mxu0
      %v6379 = vpop.f32.mrf.mxu0
      %v6380 = vadd.f32 %v6219, %v6379
      %v6381 = vpop.f32.mrf.mxu0
      %6382 = vmatprep.mubr.bf16.mxu0 %v4911
      %6383 = vmatmul.mubr.bf16.gmra.mxu0 %v4682
      %v6384 = vpop.f32.mrf.mxu0
      %v6385 = vadd.f32 %v6224, %v6384
      %v6386 = vpop.f32.mrf.mxu0
      %v6387 = vpop.f32.mrf.mxu0
      %v6388 = vadd.f32 %v6227, %v6387
      %v6389 = vpop.f32.mrf.mxu0
      %6390 = vmatprep.mubr.bf16.mxu0 %v4914
      %6391 = vmatmul.mubr.bf16.gmra.mxu0 %v4694
      %v6392 = vpop.f32.mrf.mxu0
      %v6393 = vadd.f32 %v6232, %v6392
      %v6394 = vpop.f32.mrf.mxu0
      %v6395 = vpop.f32.mrf.mxu0
      %v6396 = vadd.f32 %v6235, %v6395
      %v6397 = vpop.f32.mrf.mxu0
      %6398 = vmatprep.mubr.bf16.mxu0 %v4917
      %6399 = vmatmul.mubr.bf16.gmra.mxu0 %v4706
      %v6400 = vpop.f32.mrf.mxu0
      %v6401 = vadd.f32 %v6240, %v6400
      %v6402 = vpop.f32.mrf.mxu0
      %v6403 = vpop.f32.mrf.mxu0
      %v6404 = vadd.f32 %v6243, %v6403
      %v6405 = vpop.f32.mrf.mxu0
      %6406 = vmatprep.mubr.bf16.mxu0 %v4920
      %6407 = vmatmul.mubr.bf16.gmra.mxu0 %v4718
      %v6408 = vpop.f32.mrf.mxu0
      %v6409 = vadd.f32 %v6248, %v6408
      %v6410 = vpop.f32.mrf.mxu0
      %v6411 = vpop.f32.mrf.mxu0
      %v6412 = vadd.f32 %v6251, %v6411
      %v6413 = vpop.f32.mrf.mxu0
      %6414 = vmatprep.mubr.bf16.mxu0 %v4923
      %6415 = vmatmul.mubr.bf16.gmra.mxu0 %v4730
      %v6416 = vpop.f32.mrf.mxu0
      %v6417 = vadd.f32 %v6256, %v6416
      %v6418 = vpop.f32.mrf.mxu0
      %v6419 = vpop.f32.mrf.mxu0
      %v6420 = vadd.f32 %v6259, %v6419
      %v6421 = vpop.f32.mrf.mxu0
      %6422 = vmatprep.mubr.bf16.mxu0 %v4926
      %6423 = vmatmul.mubr.bf16.gmra.mxu0 %v4742
      %v6424 = vpop.f32.mrf.mxu0
      %v6425 = vadd.f32 %v6264, %v6424
      %v6426 = vpop.f32.mrf.mxu0
      %v6427 = vpop.f32.mrf.mxu0
      %v6428 = vadd.f32 %v6267, %v6427
      %v6429 = vpop.f32.mrf.mxu0
      %6430 = vmatprep.mubr.bf16.mxu0 %v4929
      %6431 = vmatmul.mubr.bf16.gmra.mxu0 %v4754
      %v6432 = vpop.f32.mrf.mxu0
      %v6433 = vadd.f32 %v6272, %v6432
      %v6434 = vpop.f32.mrf.mxu0
      %v6435 = vpop.f32.mrf.mxu0
      %v6436 = vadd.f32 %v6275, %v6435
      %v6437 = vpop.f32.mrf.mxu0
      %6438 = vmatprep.mubr.bf16.mxu0 %v4932
      %6439 = vmatmul.mubr.bf16.gmra.mxu0 %v4766
      %v6440 = vpop.f32.mrf.mxu0
      %v6441 = vadd.f32 %v6280, %v6440
      %v6442 = vpop.f32.mrf.mxu0
      %v6443 = vpop.f32.mrf.mxu0
      %v6444 = vadd.f32 %v6283, %v6443
      %v6445 = vpop.f32.mrf.mxu0
      %6446 = vmatprep.mubr.bf16.mxu0 %v4935
      %6447 = vmatmul.mubr.bf16.gmra.mxu0 %v4778
      %v6448 = vpop.f32.mrf.mxu0
      %v6449 = vadd.f32 %v6288, %v6448
      %v6450 = vpop.f32.mrf.mxu0
      %v6451 = vpop.f32.mrf.mxu0
      %v6452 = vadd.f32 %v6291, %v6451
      %v6453 = vpop.f32.mrf.mxu0
      %6454 = vmatprep.mubr.bf16.mxu0 %v4938
      %6455 = vmatmul.mubr.bf16.gmra.mxu0 %v4790
      %v6456 = vpop.f32.mrf.mxu0
      %v6457 = vadd.f32 %v6296, %v6456
      %v6458 = vpop.f32.mrf.mxu0
      %v6459 = vpop.f32.mrf.mxu0
      %v6460 = vadd.f32 %v6299, %v6459
      %v6461 = vpop.f32.mrf.mxu0
      %6462 = vmatprep.mubr.bf16.mxu0 %v4941
      %6463 = vmatmul.mubr.bf16.gmra.mxu0 %v4802
      %v6464 = vpop.f32.mrf.mxu0
      %v6465 = vadd.f32 %v6304, %v6464
      %v6466 = vpop.f32.mrf.mxu0
      %v6467 = vpop.f32.mrf.mxu0
      %v6468 = vadd.f32 %v6307, %v6467
      %v6469 = vpop.f32.mrf.mxu0
      %6470 = vmatprep.mubr.bf16.mxu0 %v4944
      %6471 = vmatmul.mubr.bf16.gmra.mxu0 %v4814
      %v6472 = vpop.f32.mrf.mxu0
      %v6473 = vadd.f32 %v6312, %v6472
      %v6474 = vpop.f32.mrf.mxu0
      %v6475 = vpop.f32.mrf.mxu0
      %v6476 = vadd.f32 %v6315, %v6475
      %v6477 = vpop.f32.mrf.mxu0
      %6478 = vmatprep.mubr.bf16.mxu0 %v4947
      %6479 = vmatmul.mubr.bf16.gmra.mxu0 %v4826
      %v6480 = vpop.f32.mrf.mxu0
      %v6481 = vadd.f32 %v6320, %v6480
      %v6482 = vpop.f32.mrf.mxu0
      %v6483 = vpop.f32.mrf.mxu0
      %v6484 = vadd.f32 %v6323, %v6483
      %v6485 = vpop.f32.mrf.mxu0
      %6486 = vmatprep.mubr.bf16.mxu0 %v4950
      %6487 = vmatmul.mubr.bf16.gmra.mxu0 %v4838
      %v6488 = vpop.f32.mrf.mxu0
      %v6489 = vadd.f32 %v6328, %v6488
      %v6490 = vpop.f32.mrf.mxu0
      %v6491 = vpop.f32.mrf.mxu0
      %v6492 = vadd.f32 %v6331, %v6491
      %v6493 = vpop.f32.mrf.mxu0
      %6494 = vdwg.mxu0
      %6495 = vmatprep.subr.bf16.mxu0 0
      %6496 = vmatpush1.bf16.msra.mxu0 %v5923
      %6497 = vmatprep.subr.bf16.mxu0 0
      %6498 = vmatpush1.bf16.msra.mxu0 %v5922
      %6499 = vmatprep.subr.bf16.mxu0 0
      %6500 = vmatpush1.bf16.msra.mxu0 %v5921
      %6501 = vmatprep.subr.bf16.mxu0 0
      %6502 = vmatpush1.bf16.msra.mxu0 %v5920
      %6503 = vmatprep.subr.bf16.mxu0 0
      %6504 = vmatpush1.bf16.msra.mxu0 %v5919
      %6505 = vmatprep.subr.bf16.mxu0 0
      %6506 = vmatpush1.bf16.msra.mxu0 %v5918
      %6507 = vmatprep.subr.bf16.mxu0 0
      %6508 = vmatpush1.bf16.msra.mxu0 %v5917
      %6509 = vmatprep.subr.bf16.mxu0 0
      %6510 = vmatpush1.bf16.msra.mxu0 %v5916
      %6511 = vmatprep.subr.bf16.mxu0 0
      %6512 = vmatpush2.bf16.msra.mxu0 %v5931
      %6513 = vmatprep.subr.bf16.mxu0 0
      %6514 = vmatpush2.bf16.msra.mxu0 %v5930
      %6515 = vmatprep.subr.bf16.mxu0 0
      %6516 = vmatpush2.bf16.msra.mxu0 %v5929
      %6517 = vmatprep.subr.bf16.mxu0 0
      %6518 = vmatpush2.bf16.msra.mxu0 %v5928
      %6519 = vmatprep.subr.bf16.mxu0 0
      %6520 = vmatpush2.bf16.msra.mxu0 %v5927
      %6521 = vmatprep.subr.bf16.mxu0 0
      %6522 = vmatpush2.bf16.msra.mxu0 %v5926
      %6523 = vmatprep.subr.bf16.mxu0 0
      %6524 = vmatpush2.bf16.msra.mxu0 %v5925
      %6525 = vmatprep.subr.bf16.mxu0 0
      %6526 = vmatpush2.bf16.msra.mxu0 %v5924
      %6527 = vmatprep.mubr.bf16.mxu0 %v5122
      %6528 = vmatmul.mubr.bf16.gmra.mxu0 %v5031
      %v6529 = vpop.f32.mrf.mxu0
      %v6530 = vadd.f32 %v6369, %v6529
      %v6531 = vpop.f32.mrf.mxu0
      %v6532 = vpop.f32.mrf.mxu0
      %v6533 = vadd.f32 %v6372, %v6532
      %v6534 = vpop.f32.mrf.mxu0
      %6535 = vmatprep.mubr.bf16.mxu0 %v5134
      %6536 = vmatmul.mubr.bf16.gmra.mxu0 %v5032
      %v6537 = vpop.f32.mrf.mxu0
      %v6538 = vadd.f32 %v6377, %v6537
      %v6539 = vpop.f32.mrf.mxu0
      %v6540 = vpop.f32.mrf.mxu0
      %v6541 = vadd.f32 %v6380, %v6540
      %v6542 = vpop.f32.mrf.mxu0
      %6543 = vmatprep.mubr.bf16.mxu0 %v5146
      %6544 = vmatmul.mubr.bf16.gmra.mxu0 %v5033
      %v6545 = vpop.f32.mrf.mxu0
      %v6546 = vadd.f32 %v6385, %v6545
      %v6547 = vpop.f32.mrf.mxu0
      %v6548 = vpop.f32.mrf.mxu0
      %v6549 = vadd.f32 %v6388, %v6548
      %v6550 = vpop.f32.mrf.mxu0
      %6551 = vmatprep.mubr.bf16.mxu0 %v5158
      %6552 = vmatmul.mubr.bf16.gmra.mxu0 %v5034
      %v6553 = vpop.f32.mrf.mxu0
      %v6554 = vadd.f32 %v6393, %v6553
      %v6555 = vpop.f32.mrf.mxu0
      %v6556 = vpop.f32.mrf.mxu0
      %v6557 = vadd.f32 %v6396, %v6556
      %v6558 = vpop.f32.mrf.mxu0
      %6559 = vmatprep.mubr.bf16.mxu0 %v5170
      %6560 = vmatmul.mubr.bf16.gmra.mxu0 %v5035
      %v6561 = vpop.f32.mrf.mxu0
      %v6562 = vadd.f32 %v6401, %v6561
      %v6563 = vpop.f32.mrf.mxu0
      %v6564 = vpop.f32.mrf.mxu0
      %v6565 = vadd.f32 %v6404, %v6564
      %v6566 = vpop.f32.mrf.mxu0
      %6567 = vmatprep.mubr.bf16.mxu0 %v5182
      %6568 = vmatmul.mubr.bf16.gmra.mxu0 %v5036
      %v6569 = vpop.f32.mrf.mxu0
      %v6570 = vadd.f32 %v6409, %v6569
      %v6571 = vpop.f32.mrf.mxu0
      %v6572 = vpop.f32.mrf.mxu0
      %v6573 = vadd.f32 %v6412, %v6572
      %v6574 = vpop.f32.mrf.mxu0
      %6575 = vmatprep.mubr.bf16.mxu0 %v5194
      %6576 = vmatmul.mubr.bf16.gmra.mxu0 %v5037
      %v6577 = vpop.f32.mrf.mxu0
      %v6578 = vadd.f32 %v6417, %v6577
      %v6579 = vpop.f32.mrf.mxu0
      %v6580 = vpop.f32.mrf.mxu0
      %v6581 = vadd.f32 %v6420, %v6580
      %v6582 = vpop.f32.mrf.mxu0
      %6583 = vmatprep.mubr.bf16.mxu0 %v5206
      %6584 = vmatmul.mubr.bf16.gmra.mxu0 %v5038
      %v6585 = vpop.f32.mrf.mxu0
      %v6586 = vadd.f32 %v6425, %v6585
      %v6587 = vpop.f32.mrf.mxu0
      %v6588 = vpop.f32.mrf.mxu0
      %v6589 = vadd.f32 %v6428, %v6588
      %v6590 = vpop.f32.mrf.mxu0
      %6591 = vmatprep.mubr.bf16.mxu0 %v5218
      %6592 = vmatmul.mubr.bf16.gmra.mxu0 %v5039
      %v6593 = vpop.f32.mrf.mxu0
      %v6594 = vadd.f32 %v6433, %v6593
      %v6595 = vpop.f32.mrf.mxu0
      %v6596 = vpop.f32.mrf.mxu0
      %v6597 = vadd.f32 %v6436, %v6596
      %v6598 = vpop.f32.mrf.mxu0
      %6599 = vmatprep.mubr.bf16.mxu0 %v5230
      %6600 = vmatmul.mubr.bf16.gmra.mxu0 %v5040
      %v6601 = vpop.f32.mrf.mxu0
      %v6602 = vadd.f32 %v6441, %v6601
      %v6603 = vpop.f32.mrf.mxu0
      %v6604 = vpop.f32.mrf.mxu0
      %v6605 = vadd.f32 %v6444, %v6604
      %v6606 = vpop.f32.mrf.mxu0
      %6607 = vmatprep.mubr.bf16.mxu0 %v5242
      %6608 = vmatmul.mubr.bf16.gmra.mxu0 %v5041
      %v6609 = vpop.f32.mrf.mxu0
      %v6610 = vadd.f32 %v6449, %v6609
      %v6611 = vpop.f32.mrf.mxu0
      %v6612 = vpop.f32.mrf.mxu0
      %v6613 = vadd.f32 %v6452, %v6612
      %v6614 = vpop.f32.mrf.mxu0
      %6615 = vmatprep.mubr.bf16.mxu0 %v5254
      %6616 = vmatmul.mubr.bf16.gmra.mxu0 %v5042
      %v6617 = vpop.f32.mrf.mxu0
      %v6618 = vadd.f32 %v6457, %v6617
      %v6619 = vpop.f32.mrf.mxu0
      %v6620 = vpop.f32.mrf.mxu0
      %v6621 = vadd.f32 %v6460, %v6620
      %v6622 = vpop.f32.mrf.mxu0
      %6623 = vmatprep.mubr.bf16.mxu0 %v5266
      %6624 = vmatmul.mubr.bf16.gmra.mxu0 %v5043
      %v6625 = vpop.f32.mrf.mxu0
      %v6626 = vadd.f32 %v6465, %v6625
      %v6627 = vpop.f32.mrf.mxu0
      %v6628 = vpop.f32.mrf.mxu0
      %v6629 = vadd.f32 %v6468, %v6628
      %v6630 = vpop.f32.mrf.mxu0
      %6631 = vmatprep.mubr.bf16.mxu0 %v5278
      %6632 = vmatmul.mubr.bf16.gmra.mxu0 %v5044
      %v6633 = vpop.f32.mrf.mxu0
      %v6634 = vadd.f32 %v6473, %v6633
      %v6635 = vpop.f32.mrf.mxu0
      %v6636 = vpop.f32.mrf.mxu0
      %v6637 = vadd.f32 %v6476, %v6636
      %v6638 = vpop.f32.mrf.mxu0
      %6639 = vmatprep.mubr.bf16.mxu0 %v5290
      %6640 = vmatmul.mubr.bf16.gmra.mxu0 %v5045
      %v6641 = vpop.f32.mrf.mxu0
      %v6642 = vadd.f32 %v6481, %v6641
      %v6643 = vpop.f32.mrf.mxu0
      %v6644 = vpop.f32.mrf.mxu0
      %v6645 = vadd.f32 %v6484, %v6644
      %v6646 = vpop.f32.mrf.mxu0
      %6647 = vmatprep.mubr.bf16.mxu0 %v5302
      %6648 = vmatmul.mubr.bf16.gmra.mxu0 %v5046
      %v6649 = vpop.f32.mrf.mxu0
      %v6650 = vadd.f32 %v6489, %v6649
      %v6651 = vpop.f32.mrf.mxu0
      %v6652 = vpop.f32.mrf.mxu0
      %v6653 = vadd.f32 %v6492, %v6652
      %v6654 = vpop.f32.mrf.mxu0
      %6655 = vdwg.mxu0
      %6656 = vmatprep.subr.bf16.mxu0 0
      %6657 = vmatpush1.bf16.msra.mxu0 %v5939
      %6658 = vmatprep.subr.bf16.mxu0 0
      %6659 = vmatpush1.bf16.msra.mxu0 %v5938
      %6660 = vmatprep.subr.bf16.mxu0 0
      %6661 = vmatpush1.bf16.msra.mxu0 %v5937
      %6662 = vmatprep.subr.bf16.mxu0 0
      %6663 = vmatpush1.bf16.msra.mxu0 %v5936
      %6664 = vmatprep.subr.bf16.mxu0 0
      %6665 = vmatpush1.bf16.msra.mxu0 %v5935
      %6666 = vmatprep.subr.bf16.mxu0 0
      %6667 = vmatpush1.bf16.msra.mxu0 %v5934
      %6668 = vmatprep.subr.bf16.mxu0 0
      %6669 = vmatpush1.bf16.msra.mxu0 %v5933
      %6670 = vmatprep.subr.bf16.mxu0 0
      %6671 = vmatpush1.bf16.msra.mxu0 %v5932
      %6672 = vmatprep.subr.bf16.mxu0 0
      %6673 = vmatpush2.bf16.msra.mxu0 0
      %6674 = vmatprep.subr.bf16.mxu0 0
      %6675 = vmatpush2.bf16.msra.mxu0 0
      %6676 = vmatprep.subr.bf16.mxu0 0
      %6677 = vmatpush2.bf16.msra.mxu0 0
      %6678 = vmatprep.subr.bf16.mxu0 0
      %6679 = vmatpush2.bf16.msra.mxu0 0
      %6680 = vmatprep.subr.bf16.mxu0 0
      %6681 = vmatpush2.bf16.msra.mxu0 0
      %6682 = vmatprep.subr.bf16.mxu0 0
      %6683 = vmatpush2.bf16.msra.mxu0 0
      %6684 = vmatprep.subr.bf16.mxu0 0
      %6685 = vmatpush2.bf16.msra.mxu0 0
      %6686 = vmatprep.subr.bf16.mxu0 0
      %6687 = vmatpush2.bf16.msra.mxu0 0
      %6688 = vmatprep.mubr.bf16.mxu0 0
      %6689 = vmatmul.mubr.bf16.gmra.mxu0 %v5369
      %v6690 = vpop.f32.mrf.mxu0
      %v6691 = vadd.f32 %v6530, %v6690
      %v6692 = vpop.f32.mrf.mxu0
      %v6693 = vpop.f32.mrf.mxu0
      %v6694 = vadd.f32 %v6533, %v6693
      %v6695 = vpop.f32.mrf.mxu0
      %6696 = vmatprep.mubr.bf16.mxu0 0
      %6697 = vmatmul.mubr.bf16.gmra.mxu0 %v5372
      %v6698 = vpop.f32.mrf.mxu0
      %v6699 = vadd.f32 %v6538, %v6698
      %v6700 = vpop.f32.mrf.mxu0
      %v6701 = vpop.f32.mrf.mxu0
      %v6702 = vadd.f32 %v6541, %v6701
      %v6703 = vpop.f32.mrf.mxu0
      %6704 = vmatprep.mubr.bf16.mxu0 0
      %6705 = vmatmul.mubr.bf16.gmra.mxu0 %v5375
      %v6706 = vpop.f32.mrf.mxu0
      %v6707 = vadd.f32 %v6546, %v6706
      %v6708 = vpop.f32.mrf.mxu0
      %v6709 = vpop.f32.mrf.mxu0
      %v6710 = vadd.f32 %v6549, %v6709
      %v6711 = vpop.f32.mrf.mxu0
      %6712 = vmatprep.mubr.bf16.mxu0 0
      %6713 = vmatmul.mubr.bf16.gmra.mxu0 %v5378
      %v6714 = vpop.f32.mrf.mxu0
      %v6715 = vadd.f32 %v6554, %v6714
      %v6716 = vpop.f32.mrf.mxu0
      %v6717 = vpop.f32.mrf.mxu0
      %v6718 = vadd.f32 %v6557, %v6717
      %v6719 = vpop.f32.mrf.mxu0
      %6720 = vmatprep.mubr.bf16.mxu0 0
      %6721 = vmatmul.mubr.bf16.gmra.mxu0 %v5381
      %v6722 = vpop.f32.mrf.mxu0
      %v6723 = vadd.f32 %v6562, %v6722
      %v6724 = vpop.f32.mrf.mxu0
      %v6725 = vpop.f32.mrf.mxu0
      %v6726 = vadd.f32 %v6565, %v6725
      %v6727 = vpop.f32.mrf.mxu0
      %6728 = vmatprep.mubr.bf16.mxu0 0
      %6729 = vmatmul.mubr.bf16.gmra.mxu0 %v5384
      %v6730 = vpop.f32.mrf.mxu0
      %v6731 = vadd.f32 %v6570, %v6730
      %v6732 = vpop.f32.mrf.mxu0
      %v6733 = vpop.f32.mrf.mxu0
      %v6734 = vadd.f32 %v6573, %v6733
      %v6735 = vpop.f32.mrf.mxu0
      %6736 = vmatprep.mubr.bf16.mxu0 0
      %6737 = vmatmul.mubr.bf16.gmra.mxu0 %v5387
      %v6738 = vpop.f32.mrf.mxu0
      %v6739 = vadd.f32 %v6578, %v6738
      %v6740 = vpop.f32.mrf.mxu0
      %v6741 = vpop.f32.mrf.mxu0
      %v6742 = vadd.f32 %v6581, %v6741
      %v6743 = vpop.f32.mrf.mxu0
      %6744 = vmatprep.mubr.bf16.mxu0 0
      %6745 = vmatmul.mubr.bf16.gmra.mxu0 %v5390
      %v6746 = vpop.f32.mrf.mxu0
      %v6747 = vadd.f32 %v6586, %v6746
      %v6748 = vpop.f32.mrf.mxu0
      %v6749 = vpop.f32.mrf.mxu0
      %v6750 = vadd.f32 %v6589, %v6749
      %v6751 = vpop.f32.mrf.mxu0
      %6752 = vmatprep.mubr.bf16.mxu0 0
      %6753 = vmatmul.mubr.bf16.gmra.mxu0 %v5393
      %v6754 = vpop.f32.mrf.mxu0
      %v6755 = vadd.f32 %v6594, %v6754
      %v6756 = vpop.f32.mrf.mxu0
      %v6757 = vpop.f32.mrf.mxu0
      %v6758 = vadd.f32 %v6597, %v6757
      %v6759 = vpop.f32.mrf.mxu0
      %6760 = vmatprep.mubr.bf16.mxu0 0
      %6761 = vmatmul.mubr.bf16.gmra.mxu0 %v5396
      %v6762 = vpop.f32.mrf.mxu0
      %v6763 = vadd.f32 %v6602, %v6762
      %v6764 = vpop.f32.mrf.mxu0
      %v6765 = vpop.f32.mrf.mxu0
      %v6766 = vadd.f32 %v6605, %v6765
      %v6767 = vpop.f32.mrf.mxu0
      %6768 = vmatprep.mubr.bf16.mxu0 0
      %6769 = vmatmul.mubr.bf16.gmra.mxu0 %v5399
      %v6770 = vpop.f32.mrf.mxu0
      %v6771 = vadd.f32 %v6610, %v6770
      %v6772 = vpop.f32.mrf.mxu0
      %v6773 = vpop.f32.mrf.mxu0
      %v6774 = vadd.f32 %v6613, %v6773
      %v6775 = vpop.f32.mrf.mxu0
      %6776 = vmatprep.mubr.bf16.mxu0 0
      %6777 = vmatmul.mubr.bf16.gmra.mxu0 %v5402
      %v6778 = vpop.f32.mrf.mxu0
      %v6779 = vadd.f32 %v6618, %v6778
      %v6780 = vpop.f32.mrf.mxu0
      %v6781 = vpop.f32.mrf.mxu0
      %v6782 = vadd.f32 %v6621, %v6781
      %v6783 = vpop.f32.mrf.mxu0
      %6784 = vmatprep.mubr.bf16.mxu0 0
      %6785 = vmatmul.mubr.bf16.gmra.mxu0 %v5405
      %v6786 = vpop.f32.mrf.mxu0
      %v6787 = vadd.f32 %v6626, %v6786
      %v6788 = vpop.f32.mrf.mxu0
      %v6789 = vpop.f32.mrf.mxu0
      %v6790 = vadd.f32 %v6629, %v6789
      %v6791 = vpop.f32.mrf.mxu0
      %6792 = vmatprep.mubr.bf16.mxu0 0
      %6793 = vmatmul.mubr.bf16.gmra.mxu0 %v5408
      %v6794 = vpop.f32.mrf.mxu0
      %v6795 = vadd.f32 %v6634, %v6794
      %v6796 = vpop.f32.mrf.mxu0
      %v6797 = vpop.f32.mrf.mxu0
      %v6798 = vadd.f32 %v6637, %v6797
      %v6799 = vpop.f32.mrf.mxu0
      %6800 = vmatprep.mubr.bf16.mxu0 0
      %6801 = vmatmul.mubr.bf16.gmra.mxu0 %v5411
      %v6802 = vpop.f32.mrf.mxu0
      %v6803 = vadd.f32 %v6642, %v6802
      %v6804 = vpop.f32.mrf.mxu0
      %v6805 = vpop.f32.mrf.mxu0
      %v6806 = vadd.f32 %v6645, %v6805
      %v6807 = vpop.f32.mrf.mxu0
      %6808 = vmatprep.mubr.bf16.mxu0 0
      %6809 = vmatmul.mubr.bf16.gmra.mxu0 %v5414
      %v6810 = vpop.f32.mrf.mxu0
      %v6811 = vadd.f32 %v6650, %v6810
      %v6812 = vpop.f32.mrf.mxu0
      %v6813 = vpop.f32.mrf.mxu0
      %v6814 = vadd.f32 %v6653, %v6813
      %v6815 = vpop.f32.mrf.mxu0
      %6816 = vdwg.mxu0
      %v6817 = vld [vmem:[%s263] sm:$0xf]
      %v6818 = vld [vmem:[%s263 + $0x4] sm:$0xf]
      %v6819 = vld [vmem:[%s263 + $0x8] sm:$0x1]
      %v6820 = vld [vmem:[%s263 + $0xc] sm:$0xf]
      %v6821 = vld [vmem:[%s263 + $0x10] sm:$0xf]
      %v6822 = vld [vmem:[%s263 + $0x14] sm:$0x1]
      %v6823 = vld [vmem:[%s263 + $0x18] sm:$0xf]
      %v6824 = vld [vmem:[%s263 + $0x1c] sm:$0xf]
      %v6825 = vld [vmem:[%s263 + $0x20] sm:$0x1]
      %v6826 = vld [vmem:[%s263 + $0x24] sm:$0xf]
      %v6827 = vld [vmem:[%s263 + $0x28] sm:$0xf]
      %v6828 = vld [vmem:[%s263 + $0x2c] sm:$0x1]
      %v6829 = vld [vmem:[%s263 + $0x30] sm:$0xf]
      %v6830 = vld [vmem:[%s263 + $0x34] sm:$0xf]
      %v6831 = vld [vmem:[%s263 + $0x38] sm:$0x1]
      %v6832 = vld [vmem:[%s263 + $0x3c] sm:$0xf]
      %v6833 = vld [vmem:[%s263 + $0x40] sm:$0xf]
      %v6834 = vld [vmem:[%s263 + $0x44] sm:$0x1]
      %v6835 = vld [vmem:[%s263 + $0x48] sm:$0xf]
      %v6836 = vld [vmem:[%s263 + $0x4c] sm:$0xf]
      %v6837 = vld [vmem:[%s263 + $0x50] sm:$0x1]
      %v6838 = vld [vmem:[%s263 + $0x54] sm:$0xf]
      %v6839 = vld [vmem:[%s263 + $0x58] sm:$0xf]
      %v6840 = vld [vmem:[%s263 + $0x5c] sm:$0x1]
      %v6841 = vld [vmem:[%s263 + $0x60] sm:$0xf]
      %v6842 = vld [vmem:[%s263 + $0x64] sm:$0xf]
      %v6843 = vld [vmem:[%s263 + $0x68] sm:$0x1]
      %v6844 = vld [vmem:[%s263 + $0x6c] sm:$0xf]
      %v6845 = vld [vmem:[%s263 + $0x70] sm:$0xf]
      %v6846 = vld [vmem:[%s263 + $0x74] sm:$0x1]
      %v6847 = vld [vmem:[%s263 + $0x78] sm:$0xf]
      %v6848 = vld [vmem:[%s263 + $0x7c] sm:$0xf]
      %v6849 = vld [vmem:[%s263 + $0x80] sm:$0x1]
      %v6850 = vld [vmem:[%s263 + $0x84] sm:$0xf]
      %v6851 = vld [vmem:[%s263 + $0x88] sm:$0xf]
      %v6852 = vld [vmem:[%s263 + $0x8c] sm:$0x1]
      %v6853 = vld [vmem:[%s263 + $0x90] sm:$0xf]
      %v6854 = vld [vmem:[%s263 + $0x94] sm:$0xf]
      %v6855 = vld [vmem:[%s263 + $0x98] sm:$0x1]
      %v6856 = vld [vmem:[%s263 + $0x9c] sm:$0xf]
      %v6857 = vld [vmem:[%s263 + $0xa0] sm:$0xf]
      %v6858 = vld [vmem:[%s263 + $0xa4] sm:$0x1]
      %v6859 = vld [vmem:[%s263 + $0xa8] sm:$0xf]
      %v6860 = vld [vmem:[%s263 + $0xac] sm:$0xf]
      %v6861 = vld [vmem:[%s263 + $0xb0] sm:$0x1]
      %v6862 = vld [vmem:[%s263 + $0xb4] sm:$0xf]
      %v6863 = vld [vmem:[%s263 + $0xb8] sm:$0xf]
      %v6864 = vld [vmem:[%s263 + $0xbc] sm:$0x1]
      %v6865 = vunpack.c.l.bf16 %v6817
      %v6866 = vunpack.c.l.bf16 %v6818
      %v6867 = vunpack.c.l.bf16 %v6819
      %v6868 = vunpack.c.l.bf16 %v6820
      %v6869 = vunpack.c.l.bf16 %v6821
      %v6870 = vunpack.c.l.bf16 %v6822
      %v6871 = vunpack.c.l.bf16 %v6823
      %v6872 = vunpack.c.l.bf16 %v6824
      %v6873 = vunpack.c.l.bf16 %v6825
      %v6874 = vunpack.c.l.bf16 %v6826
      %v6875 = vunpack.c.l.bf16 %v6827
      %v6876 = vunpack.c.l.bf16 %v6828
      %v6877 = vunpack.c.l.bf16 %v6829
      %v6878 = vunpack.c.l.bf16 %v6830
      %v6879 = vunpack.c.l.bf16 %v6831
      %v6880 = vunpack.c.l.bf16 %v6832
      %v6881 = vunpack.c.l.bf16 %v6833
      %v6882 = vunpack.c.l.bf16 %v6834
      %v6883 = vunpack.c.l.bf16 %v6835
      %v6884 = vunpack.c.l.bf16 %v6836
      %v6885 = vunpack.c.l.bf16 %v6837
      %v6886 = vunpack.c.l.bf16 %v6838
      %v6887 = vunpack.c.l.bf16 %v6839
      %v6888 = vunpack.c.l.bf16 %v6840
      %v6889 = vunpack.c.l.bf16 %v6841
      %v6890 = vunpack.c.l.bf16 %v6842
      %v6891 = vunpack.c.l.bf16 %v6843
      %v6892 = vunpack.c.l.bf16 %v6844
      %v6893 = vunpack.c.l.bf16 %v6845
      %v6894 = vunpack.c.l.bf16 %v6846
      %v6895 = vunpack.c.l.bf16 %v6847
      %v6896 = vunpack.c.l.bf16 %v6848
      %v6897 = vunpack.c.l.bf16 %v6849
      %v6898 = vunpack.c.l.bf16 %v6850
      %v6899 = vunpack.c.l.bf16 %v6851
      %v6900 = vunpack.c.l.bf16 %v6852
      %v6901 = vunpack.c.l.bf16 %v6853
      %v6902 = vunpack.c.l.bf16 %v6854
      %v6903 = vunpack.c.l.bf16 %v6855
      %v6904 = vunpack.c.l.bf16 %v6856
      %v6905 = vunpack.c.l.bf16 %v6857
      %v6906 = vunpack.c.l.bf16 %v6858
      %v6907 = vunpack.c.l.bf16 %v6859
      %v6908 = vunpack.c.l.bf16 %v6860
      %v6909 = vunpack.c.l.bf16 %v6861
      %v6910 = vunpack.c.l.bf16 %v6862
      %v6911 = vunpack.c.l.bf16 %v6863
      %v6912 = vunpack.c.l.bf16 %v6864
      %vm6961 = vcmask 1046528
      %v6962 = vrot.slane %v6865, 1
      %v6963 = vrot.slane %v6866, 1
      %v6964 = vsel %vm6961, %v6962, %v6963
      %v6965 = vrot.slane %v6867, 1
      %v6966 = vsel %vm6961, %v6963, %v6965
      %v6967 = vrot.slane %v6868, 1
      %v6968 = vrot.slane %v6869, 1
      %v6969 = vsel %vm6961, %v6967, %v6968
      %v6970 = vrot.slane %v6870, 1
      %v6971 = vsel %vm6961, %v6968, %v6970
      %v6972 = vrot.slane %v6871, 1
      %v6973 = vrot.slane %v6872, 1
      %v6974 = vsel %vm6961, %v6972, %v6973
      %v6975 = vrot.slane %v6873, 1
      %v6976 = vsel %vm6961, %v6973, %v6975
      %v6977 = vrot.slane %v6874, 1
      %v6978 = vrot.slane %v6875, 1
      %v6979 = vsel %vm6961, %v6977, %v6978
      %v6980 = vrot.slane %v6876, 1
      %v6981 = vsel %vm6961, %v6978, %v6980
      %v6982 = vrot.slane %v6877, 1
      %v6983 = vrot.slane %v6878, 1
      %v6984 = vsel %vm6961, %v6982, %v6983
      %v6985 = vrot.slane %v6879, 1
      %v6986 = vsel %vm6961, %v6983, %v6985
      %v6987 = vrot.slane %v6880, 1
      %v6988 = vrot.slane %v6881, 1
      %v6989 = vsel %vm6961, %v6987, %v6988
      %v6990 = vrot.slane %v6882, 1
      %v6991 = vsel %vm6961, %v6988, %v6990
      %v6992 = vrot.slane %v6883, 1
      %v6993 = vrot.slane %v6884, 1
      %v6994 = vsel %vm6961, %v6992, %v6993
      %v6995 = vrot.slane %v6885, 1
      %v6996 = vsel %vm6961, %v6993, %v6995
      %v6997 = vrot.slane %v6886, 1
      %v6998 = vrot.slane %v6887, 1
      %v6999 = vsel %vm6961, %v6997, %v6998
      %v7000 = vrot.slane %v6888, 1
      %v7001 = vsel %vm6961, %v6998, %v7000
      %v7002 = vrot.slane %v6889, 1
      %v7003 = vrot.slane %v6890, 1
      %v7004 = vsel %vm6961, %v7002, %v7003
      %v7005 = vrot.slane %v6891, 1
      %v7006 = vsel %vm6961, %v7003, %v7005
      %v7007 = vrot.slane %v6892, 1
      %v7008 = vrot.slane %v6893, 1
      %v7009 = vsel %vm6961, %v7007, %v7008
      %v7010 = vrot.slane %v6894, 1
      %v7011 = vsel %vm6961, %v7008, %v7010
      %v7012 = vrot.slane %v6895, 1
      %v7013 = vrot.slane %v6896, 1
      %v7014 = vsel %vm6961, %v7012, %v7013
      %v7015 = vrot.slane %v6897, 1
      %v7016 = vsel %vm6961, %v7013, %v7015
      %v7017 = vrot.slane %v6898, 1
      %v7018 = vrot.slane %v6899, 1
      %v7019 = vsel %vm6961, %v7017, %v7018
      %v7020 = vrot.slane %v6900, 1
      %v7021 = vsel %vm6961, %v7018, %v7020
      %v7022 = vrot.slane %v6901, 1
      %v7023 = vrot.slane %v6902, 1
      %v7024 = vsel %vm6961, %v7022, %v7023
      %v7025 = vrot.slane %v6903, 1
      %v7026 = vsel %vm6961, %v7023, %v7025
      %v7027 = vrot.slane %v6904, 1
      %v7028 = vrot.slane %v6905, 1
      %v7029 = vsel %vm6961, %v7027, %v7028
      %v7030 = vrot.slane %v6906, 1
      %v7031 = vsel %vm6961, %v7028, %v7030
      %v7032 = vrot.slane %v6907, 1
      %v7033 = vrot.slane %v6908, 1
      %v7034 = vsel %vm6961, %v7032, %v7033
      %v7035 = vrot.slane %v6909, 1
      %v7036 = vsel %vm6961, %v7033, %v7035
      %v7037 = vrot.slane %v6910, 1
      %v7038 = vrot.slane %v6911, 1
      %v7039 = vsel %vm6961, %v7037, %v7038
      %v7040 = vrot.slane %v6912, 1
      %v7041 = vsel %vm6961, %v7038, %v7040
      %v7074 = vadd.f32 %v6691, %v6964
      %v7075 = vadd.f32 %v6694, %v6966
      %v7076 = vadd.f32 %v6699, %v6969
      %v7077 = vadd.f32 %v6702, %v6971
      %v7078 = vadd.f32 %v6707, %v6974
      %v7079 = vadd.f32 %v6710, %v6976
      %v7080 = vadd.f32 %v6715, %v6979
      %v7081 = vadd.f32 %v6718, %v6981
      %v7082 = vadd.f32 %v6723, %v6984
      %v7083 = vadd.f32 %v6726, %v6986
      %v7084 = vadd.f32 %v6731, %v6989
      %v7085 = vadd.f32 %v6734, %v6991
      %v7086 = vadd.f32 %v6739, %v6994
      %v7087 = vadd.f32 %v6742, %v6996
      %v7088 = vadd.f32 %v6747, %v6999
      %v7089 = vadd.f32 %v6750, %v7001
      %v7090 = vadd.f32 %v6755, %v7004
      %v7091 = vadd.f32 %v6758, %v7006
      %v7092 = vadd.f32 %v6763, %v7009
      %v7093 = vadd.f32 %v6766, %v7011
      %v7094 = vadd.f32 %v6771, %v7014
      %v7095 = vadd.f32 %v6774, %v7016
      %v7096 = vadd.f32 %v6779, %v7019
      %v7097 = vadd.f32 %v6782, %v7021
      %v7098 = vadd.f32 %v6787, %v7024
      %v7099 = vadd.f32 %v6790, %v7026
      %v7100 = vadd.f32 %v6795, %v7029
      %v7101 = vadd.f32 %v6798, %v7031
      %v7102 = vadd.f32 %v6803, %v7034
      %v7103 = vadd.f32 %v6806, %v7036
      %v7104 = vadd.f32 %v6811, %v7039
      %v7105 = vadd.f32 %v6814, %v7041
      %v7106 = vmax.f32 %v7074, 0.0
      %v7107 = vmax.f32 %v7075, 0.0
      %v7108 = vmax.f32 %v7076, 0.0
      %v7109 = vmax.f32 %v7077, 0.0
      %v7110 = vmax.f32 %v7078, 0.0
      %v7111 = vmax.f32 %v7079, 0.0
      %v7112 = vmax.f32 %v7080, 0.0
      %v7113 = vmax.f32 %v7081, 0.0
      %v7114 = vmax.f32 %v7082, 0.0
      %v7115 = vmax.f32 %v7083, 0.0
      %v7116 = vmax.f32 %v7084, 0.0
      %v7117 = vmax.f32 %v7085, 0.0
      %v7118 = vmax.f32 %v7086, 0.0
      %v7119 = vmax.f32 %v7087, 0.0
      %v7120 = vmax.f32 %v7088, 0.0
      %v7121 = vmax.f32 %v7089, 0.0
      %v7122 = vmax.f32 %v7090, 0.0
      %v7123 = vmax.f32 %v7091, 0.0
      %v7124 = vmax.f32 %v7092, 0.0
      %v7125 = vmax.f32 %v7093, 0.0
      %v7126 = vmax.f32 %v7094, 0.0
      %v7127 = vmax.f32 %v7095, 0.0
      %v7128 = vmax.f32 %v7096, 0.0
      %v7129 = vmax.f32 %v7097, 0.0
      %v7130 = vmax.f32 %v7098, 0.0
      %v7131 = vmax.f32 %v7099, 0.0
      %v7132 = vmax.f32 %v7100, 0.0
      %v7133 = vmax.f32 %v7101, 0.0
      %v7134 = vmax.f32 %v7102, 0.0
      %v7135 = vmax.f32 %v7103, 0.0
      %v7136 = vmax.f32 %v7104, 0.0
      %v7137 = vmax.f32 %v7105, 0.0
      %7138 = vst [vmem:[%s197] sm:$0xff] %v7106
      %7139 = vst [vmem:[%s197 + $0x8] sm:$0xff] %v7107
      %7140 = vst [vmem:[%s197 + $0x10] sm:$0xff] %v7108
      %7141 = vst [vmem:[%s197 + $0x18] sm:$0xff] %v7109
      %7142 = vst [vmem:[%s197 + $0x20] sm:$0xff] %v7110
      %7143 = vst [vmem:[%s197 + $0x28] sm:$0xff] %v7111
      %7144 = vst [vmem:[%s197 + $0x30] sm:$0xff] %v7112
      %7145 = vst [vmem:[%s197 + $0x38] sm:$0xff] %v7113
      %7146 = vst [vmem:[%s197 + $0x40] sm:$0xff] %v7114
      %7147 = vst [vmem:[%s197 + $0x48] sm:$0xff] %v7115
      %7148 = vst [vmem:[%s197 + $0x50] sm:$0xff] %v7116
      %7149 = vst [vmem:[%s197 + $0x58] sm:$0xff] %v7117
      %7150 = vst [vmem:[%s197 + $0x60] sm:$0xff] %v7118
      %7151 = vst [vmem:[%s197 + $0x68] sm:$0xff] %v7119
      %7152 = vst [vmem:[%s197 + $0x70] sm:$0xff] %v7120
      %7153 = vst [vmem:[%s197 + $0x78] sm:$0xff] %v7121
      %7154 = vst [vmem:[%s197 + $0x80] sm:$0xff] %v7122
      %7155 = vst [vmem:[%s197 + $0x88] sm:$0xff] %v7123
      %7156 = vst [vmem:[%s197 + $0x90] sm:$0xff] %v7124
      %7157 = vst [vmem:[%s197 + $0x98] sm:$0xff] %v7125
      %7158 = vst [vmem:[%s197 + $0xa0] sm:$0xff] %v7126
      %7159 = vst [vmem:[%s197 + $0xa8] sm:$0xff] %v7127
      %7160 = vst [vmem:[%s197 + $0xb0] sm:$0xff] %v7128
      %7161 = vst [vmem:[%s197 + $0xb8] sm:$0xff] %v7129
      %7162 = vst [vmem:[%s197 + $0xc0] sm:$0xff] %v7130
      %7163 = vst [vmem:[%s197 + $0xc8] sm:$0xff] %v7131
      %7164 = vst [vmem:[%s197 + $0xd0] sm:$0xff] %v7132
      %7165 = vst [vmem:[%s197 + $0xd8] sm:$0xff] %v7133
      %7166 = vst [vmem:[%s197 + $0xe0] sm:$0xff] %v7134
      %7167 = vst [vmem:[%s197 + $0xe8] sm:$0xff] %v7135
      %7168 = vst [vmem:[%s197 + $0xf0] sm:$0xff] %v7136
      %7169 = vst [vmem:[%s197 + $0xf8] sm:$0xff] %v7137
      %p7170 = scmp.lt.s32.totalorder %s15, 1
      %s7171 = scalar_select %p7170, %s15, 1
      %s7172 = smul.addr %s7171, 32
      %s7173 = smul.addr %s7172, 8
      %s7174 = scalar_lea.vmem %s4, %s7173
      // Predicated region
      $region37: #{basic_block.1} parent=35 // pred_check
        %p7175 = pneg %p122
      $region38: #{basic_block.1} parent=35 // pred_check_branch
        %7177 = sbr.rel (%p7175) target = $region40
      $region39: #{basic_block.1} parent=35 // pred_region
        _
      $region40: #{basic_block.1} parent=35 // pred_fallthru
        _
    $region36: #{basic_block.1} parent=5 // pred_fallthru
      _
    %p7178 = scmp.le.s32.totalorder 2, %s10
    // Predicated region
    $region41: #{basic_block.1} parent=5 // pred_check
      %p7179 = pneg %p7178
    $region42: #{basic_block.1} parent=5 // pred_check_branch
      %7181 = sbr.rel (%p7179) target = $region44
    $region43: #{basic_block.1} parent=5 // pred_region
      %s7182 = ssub.s32 %s10, 2
      // Predicated region
      $region45: #{basic_block.1} parent=43 // pred_check
        %p7183 = pneg %p128
      $region46: #{basic_block.1} parent=43 // pred_check_branch
        %7185 = sbr.rel (%p7183) target = $region48
      $region47: #{basic_block.1} parent=43 // pred_region
        %p7186 = scmp.lt.s32.totalorder %s16, 1
        %s7187 = scalar_select %p7186, %s16, 1
        %s7188 = smul.addr %s7187, 32
        %s7189 = smul.addr %s7188, 8
        %s7190 = scalar_lea.vmem %s4, %s7189
      $region48: #{basic_block.1} parent=43 // pred_fallthru
        _
    $region44: #{basic_block.1} parent=5 // pred_fallthru
      _
  $region6: #{basic_block.1} parent=0 // loop_footer
    %s14 = sadd.s32 1, %s10
  $region7: #{basic_block.1} parent=0 // loop_footer_branch
    %9 = sbr.rel target = $region3
  $region8: #{basic_block.1} parent=0 // loop_exit
    _

</llo_original>
